<compile_context>
chip_gen: v6e
topology: v6e:2x2x1
jax: 0.10.0
libtpu: 0.0.40
codegen_flags: <defaults>
</compile_context>

<pallas_src>
import functools

import jax
import jax.numpy as jnp
from jax.experimental import pallas as pl
from jax.experimental.pallas import tpu as pltpu


def _make_lstm_fc_kernel(n_layers: int, seq_len: int, hidden_dim: int,
                         batch_pad: int, output_size: int):
    """Stacked LSTM (batch_first) + final Linear on the flattened sequence output."""
    H = hidden_dim
    T = seq_len
    Bp = batch_pad

    def kernel(*refs):
        # refs: x_flat, [wih_l, whh_l, b_l] * n_layers, wfc, bfc, out, gx_scr, hseq_scr
        x_ref = refs[0]
        layer_refs = refs[1:1 + 3 * n_layers]
        wfc_ref = refs[1 + 3 * n_layers]
        bfc_ref = refs[2 + 3 * n_layers]
        out_ref = refs[3 + 3 * n_layers]
        gx_scr = refs[4 + 3 * n_layers]      # VMEM (T*Bp, 4H): hoisted input proj
        hseq_scr = refs[5 + 3 * n_layers]    # VMEM (T*Bp, H):  inter-layer sequence

        # Fold the FC bias in once.  Padded batch rows carry garbage that the
        # wrapper slices off -- never reduce across the batch axis in here.
        acc = jnp.zeros((Bp, output_size), jnp.float32) + bfc_ref[...]

        for l in range(n_layers):
            wih = layer_refs[3 * l][...]      # (in_l, 4H), gate cols (i, f, o, g)
            whh = layer_refs[3 * l + 1][...]  # (H, 4H)
            b = layer_refs[3 * l + 2][...]    # (1, 4H) == b_ih + b_hh

            # Hoisted input projection + bias: ONE matmul / broadcast per layer,
            # parked in VMEM scratch so it doesn't pin vregs across the loop.
            cur = x_ref[...] if l == 0 else hseq_scr[...]
            gx_scr[...] = jnp.dot(cur, wih, preferred_element_type=jnp.float32) + b

            h = jnp.zeros((Bp, H), jnp.float32)
            c = jnp.zeros((Bp, H), jnp.float32)
            last = (l == n_layers - 1)
            # T is small: static unroll keeps full LLO visibility; all slice
            # starts below are static multiples of 8 sublanes (aligned views).
            for t in range(T):
                gates = gx_scr[t * Bp:(t + 1) * Bp, :] + jnp.dot(
                    h, whh, preferred_element_type=jnp.float32)        # (Bp, 4H)
                # (i, f, o, g) layout: sigmoid region is lane-contiguous.
                # (Sub-vreg lane slices below are off the critical MXU/EUP path;
                #  restructure only if rotates show up in the bundle dump.)
                sig = jax.nn.sigmoid(gates[:, :3 * H])
                g_g = jnp.tanh(gates[:, 3 * H:])
                i_g = sig[:, :H]
                f_g = sig[:, H:2 * H]
                o_g = sig[:, 2 * H:3 * H]
                c = f_g * c + i_g * g_g
                h = o_g * jnp.tanh(c)
                if last:
                    # FC folded into the last layer's loop -> no (B, T*H) concat.
                    acc = acc + jnp.dot(h, wfc_ref[t * H:(t + 1) * H, :],
                                        preferred_element_type=jnp.float32)
                else:
                    # Park the step output in VMEM scratch for the next layer:
                    # bounds h's live range, removes the end-of-layer copy chain.
                    hseq_scr[t * Bp:(t + 1) * Bp, :] = h

        out_ref[...] = acc

    return kernel


def rnn_forward(x, params, *, n_layers, seq_len, hidden_dim, output_size):
    """Pallas-backed forward pass equivalent to RNN.forward (net_type='LSTM')."""
    B, T, in_size = x.shape
    assert T == seq_len
    H = hidden_dim

    # Pad batch up to a full f32 sublane group so vregs / MXU rows are dense.
    # (Co-batching more sequences toward >=128 rows is the biggest remaining
    # throughput lever, but batch size is dictated by the caller.)
    Bp = max(8, ((B + 7) // 8) * 8)
    x_pad = jnp.zeros((Bp, T, in_size), jnp.float32).at[:B].set(x.astype(jnp.float32))
    # Lane-dense 2-D slab, (t, b) row order -> feeds the batched layer-0 projection.
    x_flat = x_pad.transpose(1, 0, 2).reshape(T * Bp, in_size)

    def permute_gates(w):
        # PyTorch gate columns (i, f, g, o) -> (i, f, o, g).
        return jnp.concatenate([w[:, :2 * H], w[:, 3 * H:], w[:, 2 * H:3 * H]], axis=1)

    inputs = [x_flat]
    for l in range(n_layers):
        inputs += [permute_gates(params[f"wih{l}"]),
                   permute_gates(params[f"whh{l}"]),
                   permute_gates(params[f"b{l}"])]
    inputs += [params["wfc"], params["bfc"]]

    kernel = _make_lstm_fc_kernel(n_layers, seq_len, hidden_dim, Bp, output_size)

    # All operands are tiny (a few KiB): whole-array VMEM residency is fine on
    # every generation.  Explicit vmem limit keeps the hoisted slabs honest on
    # v7x (64 MiB physical VMEM) as T / B grow.
    vmem = pl.BlockSpec(memory_space=pltpu.MemorySpace.VMEM)
    out = pl.pallas_call(
        kernel,
        out_shape=jax.ShapeDtypeStruct((Bp, output_size), jnp.float32),
        in_specs=[vmem] * len(inputs),
        out_specs=vmem,
        scratch_shapes=[
            pltpu.VMEM((T * Bp, 4 * H), jnp.float32),   # gx slab
            pltpu.VMEM((T * Bp, H), jnp.float32),       # inter-layer sequence
        ],
        compiler_params=pltpu.CompilerParams(vmem_limit_bytes=32 * 1024 * 1024),
    )(*inputs)
    return out[:B]


def init_params(key, *, input_size, hidden_dim, n_layers, seq_len, output_size):
    """Deterministic PyTorch-style uniform(-1/sqrt(H), 1/sqrt(H)) init.

    Weights stored transposed, (in_features, 4H), with PyTorch gate order (i,f,g,o);
    the wrapper permutes gate columns for the kernel.
    """
    H = hidden_dim
    k = 1.0 / jnp.sqrt(jnp.asarray(H, jnp.float32))
    params = {}
    for l in range(n_layers):
        in_f = input_size if l == 0 else H
        key, k1, k2, k3, k4 = jax.random.split(key, 5)
        params[f"wih{l}"] = jax.random.uniform(k1, (in_f, 4 * H), jnp.float32, -k, k)
        params[f"whh{l}"] = jax.random.uniform(k2, (H, 4 * H), jnp.float32, -k, k)
        b_ih = jax.random.uniform(k3, (1, 4 * H), jnp.float32, -k, k)
        b_hh = jax.random.uniform(k4, (1, 4 * H), jnp.float32, -k, k)
        params[f"b{l}"] = b_ih + b_hh
    key, k5, k6 = jax.random.split(key, 3)
    kf = 1.0 / jnp.sqrt(jnp.asarray(H * seq_len, jnp.float32))
    params["wfc"] = jax.random.uniform(k5, (H * seq_len, output_size), jnp.float32, -kf, kf)
    params["bfc"] = jax.random.uniform(k6, (1, output_size), jnp.float32, -kf, kf)
    return params


def reference_forward(x, params, *, n_layers, seq_len, hidden_dim, output_size):
    """Pure-JAX reference (same math as the PyTorch module, PyTorch gate order)."""
    H = hidden_dim
    B = x.shape[0]
    layer_in = [x[:, t, :] for t in range(seq_len)]
    for l in range(n_layers):
        wih, whh, b = params[f"wih{l}"], params[f"whh{l}"], params[f"b{l}"]
        h = jnp.zeros((B, H), jnp.float32)
        c = jnp.zeros((B, H), jnp.float32)
        outs = []
        for t in range(seq_len):
            g = layer_in[t] @ wih + h @ whh + b
            i_g = jax.nn.sigmoid(g[:, 0 * H:1 * H])
            f_g = jax.nn.sigmoid(g[:, 1 * H:2 * H])
            g_g = jnp.tanh(g[:, 2 * H:3 * H])
            o_g = jax.nn.sigmoid(g[:, 3 * H:4 * H])
            c = f_g * c + i_g * g_g
            h = o_g * jnp.tanh(c)
            outs.append(h)
        layer_in = outs
    flat = jnp.concatenate(layer_in, axis=1)
    return flat @ params["wfc"] + params["bfc"]


if __name__ == "__main__":
    # Small shapes consistent with the module's forward.
    batch = 2
    seq_len = 8
    input_size = 8
    hidden_dim = 32
    n_layers = 2
    output_size = 4

    key = jax.random.PRNGKey(0)
    key, kx = jax.random.split(key)
    x = jax.random.normal(kx, (batch, seq_len, input_size), jnp.float32)

    params = init_params(key, input_size=input_size, hidden_dim=hidden_dim,
                         n_layers=n_layers, seq_len=seq_len, output_size=output_size)

    fwd = functools.partial(rnn_forward, n_layers=n_layers, seq_len=seq_len,
                            hidden_dim=hidden_dim, output_size=output_size)
    out = jax.jit(fwd)(x, params)
    out = jax.block_until_ready(out)

    ref = reference_forward(x, params, n_layers=n_layers, seq_len=seq_len,
                            hidden_dim=hidden_dim, output_size=output_size)
    assert out.shape == (batch, output_size)
    assert jnp.allclose(out, ref, rtol=1e-4, atol=1e-4)

    print("KERNEL_OK")
</pallas_src>

<mosaic_0001>
module attributes {stable_mosaic.version = 11 : i64} {
  func.func @kernel(%arg0: memref<64x8xf32, #tpu.memory_space<vmem>>, %arg1: memref<8x128xf32, #tpu.memory_space<vmem>>, %arg2: memref<32x128xf32, #tpu.memory_space<vmem>>, %arg3: memref<1x128xf32, #tpu.memory_space<vmem>>, %arg4: memref<32x128xf32, #tpu.memory_space<vmem>>, %arg5: memref<32x128xf32, #tpu.memory_space<vmem>>, %arg6: memref<1x128xf32, #tpu.memory_space<vmem>>, %arg7: memref<256x4xf32, #tpu.memory_space<vmem>>, %arg8: memref<1x4xf32, #tpu.memory_space<vmem>>, %arg9: memref<8x4xf32, #tpu.memory_space<vmem>>, %arg10: memref<64x128xf32, #tpu.memory_space<vmem>>, %arg11: memref<64x32xf32, #tpu.memory_space<vmem>>) attributes {dimension_semantics = [], scalar_prefetch = 0 : i64, scratch_operands = 2 : i64, tpu.core_type = #tpu.core_type<tc>} {
    %cst = arith.constant 0.000000e+00 : f32
    %0 = vector.broadcast %cst : f32 to vector<8x4xf32>
    %c0 = arith.constant 0 : index
    %c0_0 = arith.constant 0 : index
    %1 = vector.load %arg8[%c0, %c0_0] : memref<1x4xf32, #tpu.memory_space<vmem>>, vector<1x4xf32>
    %2 = vector.broadcast %1 : vector<1x4xf32> to vector<8x4xf32>
    %3 = arith.addf %0, %2 : vector<8x4xf32>
    %c0_1 = arith.constant 0 : index
    %c0_2 = arith.constant 0 : index
    %4 = vector.load %arg1[%c0_1, %c0_2] : memref<8x128xf32, #tpu.memory_space<vmem>>, vector<8x128xf32>
    %c0_3 = arith.constant 0 : index
    %c0_4 = arith.constant 0 : index
    %5 = vector.load %arg2[%c0_3, %c0_4] : memref<32x128xf32, #tpu.memory_space<vmem>>, vector<32x128xf32>
    %c0_5 = arith.constant 0 : index
    %c0_6 = arith.constant 0 : index
    %6 = vector.load %arg3[%c0_5, %c0_6] : memref<1x128xf32, #tpu.memory_space<vmem>>, vector<1x128xf32>
    %c0_7 = arith.constant 0 : index
    %c0_8 = arith.constant 0 : index
    %7 = vector.load %arg0[%c0_7, %c0_8] : memref<64x8xf32, #tpu.memory_space<vmem>>, vector<64x8xf32>
    %cst_9 = arith.constant dense<0.000000e+00> : vector<64x128xf32>
    %8 = tpu.matmul %7, %4, %cst_9 {dimension_numbers = #tpu.dot_dimension_numbers<[1], [0], [0], [1], [0, 0, 1, 1], [], []>} : vector<64x8xf32>, vector<8x128xf32>, vector<64x128xf32> -> vector<64x128xf32>
    %9 = vector.broadcast %6 : vector<1x128xf32> to vector<64x128xf32>
    %10 = arith.addf %8, %9 : vector<64x128xf32>
    %c0_10 = arith.constant 0 : index
    %c0_11 = arith.constant 0 : index
    %11 = vector.load %arg10[%c0_10, %c0_11] : memref<64x128xf32, #tpu.memory_space<vmem>>, vector<64x128xf32>
    tpu.vector_store %arg10[%c0_10, %c0_11], %10 {strides = array<i32>} : memref<64x128xf32, #tpu.memory_space<vmem>>, vector<64x128xf32>,
    %cst_12 = arith.constant 0.000000e+00 : f32
    %12 = vector.broadcast %cst_12 : f32 to vector<8x32xf32>
    %cst_13 = arith.constant 0.000000e+00 : f32
    %13 = vector.broadcast %cst_13 : f32 to vector<8x32xf32>
    %c0_14 = arith.constant 0 : index
    %c0_15 = arith.constant 0 : index
    %14 = vector.load %arg10[%c0_14, %c0_15] : memref<64x128xf32, #tpu.memory_space<vmem>>, vector<8x128xf32>
    %cst_16 = arith.constant dense<0.000000e+00> : vector<8x128xf32>
    %15 = tpu.matmul %12, %5, %cst_16 {dimension_numbers = #tpu.dot_dimension_numbers<[1], [0], [0], [1], [0, 0, 1, 1], [], []>} : vector<8x32xf32>, vector<32x128xf32>, vector<8x128xf32> -> vector<8x128xf32>
    %16 = arith.addf %14, %15 : vector<8x128xf32>
    %17 = vector.extract_strided_slice %16 {offsets = [0, 0], sizes = [8, 96], strides = [1, 1]} : vector<8x128xf32> to vector<8x96xf32>
    %18 = arith.negf %17 : vector<8x96xf32>
    %19 = math.exp %18 : vector<8x96xf32>
    %cst_17 = arith.constant 1.000000e+00 : f32
    %20 = vector.broadcast %cst_17 : f32 to vector<8x96xf32>
    %21 = arith.addf %20, %19 : vector<8x96xf32>
    %22 = arith.divf %20, %21 : vector<8x96xf32>
    %23 = vector.extract_strided_slice %16 {offsets = [0, 96], sizes = [8, 32], strides = [1, 1]} : vector<8x128xf32> to vector<8x32xf32>
    %24 = math.tanh %23 : vector<8x32xf32>
    %25 = vector.extract_strided_slice %22 {offsets = [0, 0], sizes = [8, 32], strides = [1, 1]} : vector<8x96xf32> to vector<8x32xf32>
    %26 = vector.extract_strided_slice %22 {offsets = [0, 32], sizes = [8, 32], strides = [1, 1]} : vector<8x96xf32> to vector<8x32xf32>
    %27 = vector.extract_strided_slice %22 {offsets = [0, 64], sizes = [8, 32], strides = [1, 1]} : vector<8x96xf32> to vector<8x32xf32>
    %28 = arith.mulf %26, %13 : vector<8x32xf32>
    %29 = arith.mulf %25, %24 : vector<8x32xf32>
    %30 = arith.addf %28, %29 : vector<8x32xf32>
    %31 = math.tanh %30 : vector<8x32xf32>
    %32 = arith.mulf %27, %31 : vector<8x32xf32>
    %c0_18 = arith.constant 0 : index
    %c0_19 = arith.constant 0 : index
    %33 = vector.load %arg11[%c0_18, %c0_19] : memref<64x32xf32, #tpu.memory_space<vmem>>, vector<8x32xf32>
    tpu.vector_store %arg11[%c0_18, %c0_19], %32 {strides = array<i32>} : memref<64x32xf32, #tpu.memory_space<vmem>>, vector<8x32xf32>,
    %c8 = arith.constant 8 : index
    %c0_20 = arith.constant 0 : index
    %34 = vector.load %arg10[%c8, %c0_20] : memref<64x128xf32, #tpu.memory_space<vmem>>, vector<8x128xf32>
    %cst_21 = arith.constant dense<0.000000e+00> : vector<8x128xf32>
    %35 = tpu.matmul %32, %5, %cst_21 {dimension_numbers = #tpu.dot_dimension_numbers<[1], [0], [0], [1], [0, 0, 1, 1], [], []>} : vector<8x32xf32>, vector<32x128xf32>, vector<8x128xf32> -> vector<8x128xf32>
    %36 = arith.addf %34, %35 : vector<8x128xf32>
    %37 = vector.extract_strided_slice %36 {offsets = [0, 0], sizes = [8, 96], strides = [1, 1]} : vector<8x128xf32> to vector<8x96xf32>
    %38 = arith.negf %37 : vector<8x96xf32>
    %39 = math.exp %38 : vector<8x96xf32>
    %cst_22 = arith.constant 1.000000e+00 : f32
    %40 = vector.broadcast %cst_22 : f32 to vector<8x96xf32>
    %41 = arith.addf %40, %39 : vector<8x96xf32>
    %42 = arith.divf %40, %41 : vector<8x96xf32>
    %43 = vector.extract_strided_slice %36 {offsets = [0, 96], sizes = [8, 32], strides = [1, 1]} : vector<8x128xf32> to vector<8x32xf32>
    %44 = math.tanh %43 : vector<8x32xf32>
    %45 = vector.extract_strided_slice %42 {offsets = [0, 0], sizes = [8, 32], strides = [1, 1]} : vector<8x96xf32> to vector<8x32xf32>
    %46 = vector.extract_strided_slice %42 {offsets = [0, 32], sizes = [8, 32], strides = [1, 1]} : vector<8x96xf32> to vector<8x32xf32>
    %47 = vector.extract_strided_slice %42 {offsets = [0, 64], sizes = [8, 32], strides = [1, 1]} : vector<8x96xf32> to vector<8x32xf32>
    %48 = arith.mulf %46, %30 : vector<8x32xf32>
    %49 = arith.mulf %45, %44 : vector<8x32xf32>
    %50 = arith.addf %48, %49 : vector<8x32xf32>
    %51 = math.tanh %50 : vector<8x32xf32>
    %52 = arith.mulf %47, %51 : vector<8x32xf32>
    %c8_23 = arith.constant 8 : index
    %c0_24 = arith.constant 0 : index
    %53 = vector.load %arg11[%c8_23, %c0_24] : memref<64x32xf32, #tpu.memory_space<vmem>>, vector<8x32xf32>
    tpu.vector_store %arg11[%c8_23, %c0_24], %52 {strides = array<i32>} : memref<64x32xf32, #tpu.memory_space<vmem>>, vector<8x32xf32>,
    %c16 = arith.constant 16 : index
    %c0_25 = arith.constant 0 : index
    %54 = vector.load %arg10[%c16, %c0_25] : memref<64x128xf32, #tpu.memory_space<vmem>>, vector<8x128xf32>
    %cst_26 = arith.constant dense<0.000000e+00> : vector<8x128xf32>
    %55 = tpu.matmul %52, %5, %cst_26 {dimension_numbers = #tpu.dot_dimension_numbers<[1], [0], [0], [1], [0, 0, 1, 1], [], []>} : vector<8x32xf32>, vector<32x128xf32>, vector<8x128xf32> -> vector<8x128xf32>
    %56 = arith.addf %54, %55 : vector<8x128xf32>
    %57 = vector.extract_strided_slice %56 {offsets = [0, 0], sizes = [8, 96], strides = [1, 1]} : vector<8x128xf32> to vector<8x96xf32>
    %58 = arith.negf %57 : vector<8x96xf32>
    %59 = math.exp %58 : vector<8x96xf32>
    %cst_27 = arith.constant 1.000000e+00 : f32
    %60 = vector.broadcast %cst_27 : f32 to vector<8x96xf32>
    %61 = arith.addf %60, %59 : vector<8x96xf32>
    %62 = arith.divf %60, %61 : vector<8x96xf32>
    %63 = vector.extract_strided_slice %56 {offsets = [0, 96], sizes = [8, 32], strides = [1, 1]} : vector<8x128xf32> to vector<8x32xf32>
    %64 = math.tanh %63 : vector<8x32xf32>
    %65 = vector.extract_strided_slice %62 {offsets = [0, 0], sizes = [8, 32], strides = [1, 1]} : vector<8x96xf32> to vector<8x32xf32>
    %66 = vector.extract_strided_slice %62 {offsets = [0, 32], sizes = [8, 32], strides = [1, 1]} : vector<8x96xf32> to vector<8x32xf32>
    %67 = vector.extract_strided_slice %62 {offsets = [0, 64], sizes = [8, 32], strides = [1, 1]} : vector<8x96xf32> to vector<8x32xf32>
    %68 = arith.mulf %66, %50 : vector<8x32xf32>
    %69 = arith.mulf %65, %64 : vector<8x32xf32>
    %70 = arith.addf %68, %69 : vector<8x32xf32>
    %71 = math.tanh %70 : vector<8x32xf32>
    %72 = arith.mulf %67, %71 : vector<8x32xf32>
    %c16_28 = arith.constant 16 : index
    %c0_29 = arith.constant 0 : index
    %73 = vector.load %arg11[%c16_28, %c0_29] : memref<64x32xf32, #tpu.memory_space<vmem>>, vector<8x32xf32>
    tpu.vector_store %arg11[%c16_28, %c0_29], %72 {strides = array<i32>} : memref<64x32xf32, #tpu.memory_space<vmem>>, vector<8x32xf32>,
    %c24 = arith.constant 24 : index
    %c0_30 = arith.constant 0 : index
    %74 = vector.load %arg10[%c24, %c0_30] : memref<64x128xf32, #tpu.memory_space<vmem>>, vector<8x128xf32>
    %cst_31 = arith.constant dense<0.000000e+00> : vector<8x128xf32>
    %75 = tpu.matmul %72, %5, %cst_31 {dimension_numbers = #tpu.dot_dimension_numbers<[1], [0], [0], [1], [0, 0, 1, 1], [], []>} : vector<8x32xf32>, vector<32x128xf32>, vector<8x128xf32> -> vector<8x128xf32>
    %76 = arith.addf %74, %75 : vector<8x128xf32>
    %77 = vector.extract_strided_slice %76 {offsets = [0, 0], sizes = [8, 96], strides = [1, 1]} : vector<8x128xf32> to vector<8x96xf32>
    %78 = arith.negf %77 : vector<8x96xf32>
    %79 = math.exp %78 : vector<8x96xf32>
    %cst_32 = arith.constant 1.000000e+00 : f32
    %80 = vector.broadcast %cst_32 : f32 to vector<8x96xf32>
    %81 = arith.addf %80, %79 : vector<8x96xf32>
    %82 = arith.divf %80, %81 : vector<8x96xf32>
    %83 = vector.extract_strided_slice %76 {offsets = [0, 96], sizes = [8, 32], strides = [1, 1]} : vector<8x128xf32> to vector<8x32xf32>
    %84 = math.tanh %83 : vector<8x32xf32>
    %85 = vector.extract_strided_slice %82 {offsets = [0, 0], sizes = [8, 32], strides = [1, 1]} : vector<8x96xf32> to vector<8x32xf32>
    %86 = vector.extract_strided_slice %82 {offsets = [0, 32], sizes = [8, 32], strides = [1, 1]} : vector<8x96xf32> to vector<8x32xf32>
    %87 = vector.extract_strided_slice %82 {offsets = [0, 64], sizes = [8, 32], strides = [1, 1]} : vector<8x96xf32> to vector<8x32xf32>
    %88 = arith.mulf %86, %70 : vector<8x32xf32>
    %89 = arith.mulf %85, %84 : vector<8x32xf32>
    %90 = arith.addf %88, %89 : vector<8x32xf32>
    %91 = math.tanh %90 : vector<8x32xf32>
    %92 = arith.mulf %87, %91 : vector<8x32xf32>
    %c24_33 = arith.constant 24 : index
    %c0_34 = arith.constant 0 : index
    %93 = vector.load %arg11[%c24_33, %c0_34] : memref<64x32xf32, #tpu.memory_space<vmem>>, vector<8x32xf32>
    tpu.vector_store %arg11[%c24_33, %c0_34], %92 {strides = array<i32>} : memref<64x32xf32, #tpu.memory_space<vmem>>, vector<8x32xf32>,
    %c32 = arith.constant 32 : index
    %c0_35 = arith.constant 0 : index
    %94 = vector.load %arg10[%c32, %c0_35] : memref<64x128xf32, #tpu.memory_space<vmem>>, vector<8x128xf32>
    %cst_36 = arith.constant dense<0.000000e+00> : vector<8x128xf32>
    %95 = tpu.matmul %92, %5, %cst_36 {dimension_numbers = #tpu.dot_dimension_numbers<[1], [0], [0], [1], [0, 0, 1, 1], [], []>} : vector<8x32xf32>, vector<32x128xf32>, vector<8x128xf32> -> vector<8x128xf32>
    %96 = arith.addf %94, %95 : vector<8x128xf32>
    %97 = vector.extract_strided_slice %96 {offsets = [0, 0], sizes = [8, 96], strides = [1, 1]} : vector<8x128xf32> to vector<8x96xf32>
    %98 = arith.negf %97 : vector<8x96xf32>
    %99 = math.exp %98 : vector<8x96xf32>
    %cst_37 = arith.constant 1.000000e+00 : f32
    %100 = vector.broadcast %cst_37 : f32 to vector<8x96xf32>
    %101 = arith.addf %100, %99 : vector<8x96xf32>
    %102 = arith.divf %100, %101 : vector<8x96xf32>
    %103 = vector.extract_strided_slice %96 {offsets = [0, 96], sizes = [8, 32], strides = [1, 1]} : vector<8x128xf32> to vector<8x32xf32>
    %104 = math.tanh %103 : vector<8x32xf32>
    %105 = vector.extract_strided_slice %102 {offsets = [0, 0], sizes = [8, 32], strides = [1, 1]} : vector<8x96xf32> to vector<8x32xf32>
    %106 = vector.extract_strided_slice %102 {offsets = [0, 32], sizes = [8, 32], strides = [1, 1]} : vector<8x96xf32> to vector<8x32xf32>
    %107 = vector.extract_strided_slice %102 {offsets = [0, 64], sizes = [8, 32], strides = [1, 1]} : vector<8x96xf32> to vector<8x32xf32>
    %108 = arith.mulf %106, %90 : vector<8x32xf32>
    %109 = arith.mulf %105, %104 : vector<8x32xf32>
    %110 = arith.addf %108, %109 : vector<8x32xf32>
    %111 = math.tanh %110 : vector<8x32xf32>
    %112 = arith.mulf %107, %111 : vector<8x32xf32>
    %c32_38 = arith.constant 32 : index
    %c0_39 = arith.constant 0 : index
    %113 = vector.load %arg11[%c32_38, %c0_39] : memref<64x32xf32, #tpu.memory_space<vmem>>, vector<8x32xf32>
    tpu.vector_store %arg11[%c32_38, %c0_39], %112 {strides = array<i32>} : memref<64x32xf32, #tpu.memory_space<vmem>>, vector<8x32xf32>,
    %c40 = arith.constant 40 : index
    %c0_40 = arith.constant 0 : index
    %114 = vector.load %arg10[%c40, %c0_40] : memref<64x128xf32, #tpu.memory_space<vmem>>, vector<8x128xf32>
    %cst_41 = arith.constant dense<0.000000e+00> : vector<8x128xf32>
    %115 = tpu.matmul %112, %5, %cst_41 {dimension_numbers = #tpu.dot_dimension_numbers<[1], [0], [0], [1], [0, 0, 1, 1], [], []>} : vector<8x32xf32>, vector<32x128xf32>, vector<8x128xf32> -> vector<8x128xf32>
    %116 = arith.addf %114, %115 : vector<8x128xf32>
    %117 = vector.extract_strided_slice %116 {offsets = [0, 0], sizes = [8, 96], strides = [1, 1]} : vector<8x128xf32> to vector<8x96xf32>
    %118 = arith.negf %117 : vector<8x96xf32>
    %119 = math.exp %118 : vector<8x96xf32>
    %cst_42 = arith.constant 1.000000e+00 : f32
    %120 = vector.broadcast %cst_42 : f32 to vector<8x96xf32>
    %121 = arith.addf %120, %119 : vector<8x96xf32>
    %122 = arith.divf %120, %121 : vector<8x96xf32>
    %123 = vector.extract_strided_slice %116 {offsets = [0, 96], sizes = [8, 32], strides = [1, 1]} : vector<8x128xf32> to vector<8x32xf32>
    %124 = math.tanh %123 : vector<8x32xf32>
    %125 = vector.extract_strided_slice %122 {offsets = [0, 0], sizes = [8, 32], strides = [1, 1]} : vector<8x96xf32> to vector<8x32xf32>
    %126 = vector.extract_strided_slice %122 {offsets = [0, 32], sizes = [8, 32], strides = [1, 1]} : vector<8x96xf32> to vector<8x32xf32>
    %127 = vector.extract_strided_slice %122 {offsets = [0, 64], sizes = [8, 32], strides = [1, 1]} : vector<8x96xf32> to vector<8x32xf32>
    %128 = arith.mulf %126, %110 : vector<8x32xf32>
    %129 = arith.mulf %125, %124 : vector<8x32xf32>
    %130 = arith.addf %128, %129 : vector<8x32xf32>
    %131 = math.tanh %130 : vector<8x32xf32>
    %132 = arith.mulf %127, %131 : vector<8x32xf32>
    %c40_43 = arith.constant 40 : index
    %c0_44 = arith.constant 0 : index
    %133 = vector.load %arg11[%c40_43, %c0_44] : memref<64x32xf32, #tpu.memory_space<vmem>>, vector<8x32xf32>
    tpu.vector_store %arg11[%c40_43, %c0_44], %132 {strides = array<i32>} : memref<64x32xf32, #tpu.memory_space<vmem>>, vector<8x32xf32>,
    %c48 = arith.constant 48 : index
    %c0_45 = arith.constant 0 : index
    %134 = vector.load %arg10[%c48, %c0_45] : memref<64x128xf32, #tpu.memory_space<vmem>>, vector<8x128xf32>
    %cst_46 = arith.constant dense<0.000000e+00> : vector<8x128xf32>
    %135 = tpu.matmul %132, %5, %cst_46 {dimension_numbers = #tpu.dot_dimension_numbers<[1], [0], [0], [1], [0, 0, 1, 1], [], []>} : vector<8x32xf32>, vector<32x128xf32>, vector<8x128xf32> -> vector<8x128xf32>
    %136 = arith.addf %134, %135 : vector<8x128xf32>
    %137 = vector.extract_strided_slice %136 {offsets = [0, 0], sizes = [8, 96], strides = [1, 1]} : vector<8x128xf32> to vector<8x96xf32>
    %138 = arith.negf %137 : vector<8x96xf32>
    %139 = math.exp %138 : vector<8x96xf32>
    %cst_47 = arith.constant 1.000000e+00 : f32
    %140 = vector.broadcast %cst_47 : f32 to vector<8x96xf32>
    %141 = arith.addf %140, %139 : vector<8x96xf32>
    %142 = arith.divf %140, %141 : vector<8x96xf32>
    %143 = vector.extract_strided_slice %136 {offsets = [0, 96], sizes = [8, 32], strides = [1, 1]} : vector<8x128xf32> to vector<8x32xf32>
    %144 = math.tanh %143 : vector<8x32xf32>
    %145 = vector.extract_strided_slice %142 {offsets = [0, 0], sizes = [8, 32], strides = [1, 1]} : vector<8x96xf32> to vector<8x32xf32>
    %146 = vector.extract_strided_slice %142 {offsets = [0, 32], sizes = [8, 32], strides = [1, 1]} : vector<8x96xf32> to vector<8x32xf32>
    %147 = vector.extract_strided_slice %142 {offsets = [0, 64], sizes = [8, 32], strides = [1, 1]} : vector<8x96xf32> to vector<8x32xf32>
    %148 = arith.mulf %146, %130 : vector<8x32xf32>
    %149 = arith.mulf %145, %144 : vector<8x32xf32>
    %150 = arith.addf %148, %149 : vector<8x32xf32>
    %151 = math.tanh %150 : vector<8x32xf32>
    %152 = arith.mulf %147, %151 : vector<8x32xf32>
    %c48_48 = arith.constant 48 : index
    %c0_49 = arith.constant 0 : index
    %153 = vector.load %arg11[%c48_48, %c0_49] : memref<64x32xf32, #tpu.memory_space<vmem>>, vector<8x32xf32>
    tpu.vector_store %arg11[%c48_48, %c0_49], %152 {strides = array<i32>} : memref<64x32xf32, #tpu.memory_space<vmem>>, vector<8x32xf32>,
    %c56 = arith.constant 56 : index
    %c0_50 = arith.constant 0 : index
    %154 = vector.load %arg10[%c56, %c0_50] : memref<64x128xf32, #tpu.memory_space<vmem>>, vector<8x128xf32>
    %cst_51 = arith.constant dense<0.000000e+00> : vector<8x128xf32>
    %155 = tpu.matmul %152, %5, %cst_51 {dimension_numbers = #tpu.dot_dimension_numbers<[1], [0], [0], [1], [0, 0, 1, 1], [], []>} : vector<8x32xf32>, vector<32x128xf32>, vector<8x128xf32> -> vector<8x128xf32>
    %156 = arith.addf %154, %155 : vector<8x128xf32>
    %157 = vector.extract_strided_slice %156 {offsets = [0, 0], sizes = [8, 96], strides = [1, 1]} : vector<8x128xf32> to vector<8x96xf32>
    %158 = arith.negf %157 : vector<8x96xf32>
    %159 = math.exp %158 : vector<8x96xf32>
    %cst_52 = arith.constant 1.000000e+00 : f32
    %160 = vector.broadcast %cst_52 : f32 to vector<8x96xf32>
    %161 = arith.addf %160, %159 : vector<8x96xf32>
    %162 = arith.divf %160, %161 : vector<8x96xf32>
    %163 = vector.extract_strided_slice %156 {offsets = [0, 96], sizes = [8, 32], strides = [1, 1]} : vector<8x128xf32> to vector<8x32xf32>
    %164 = math.tanh %163 : vector<8x32xf32>
    %165 = vector.extract_strided_slice %162 {offsets = [0, 0], sizes = [8, 32], strides = [1, 1]} : vector<8x96xf32> to vector<8x32xf32>
    %166 = vector.extract_strided_slice %162 {offsets = [0, 32], sizes = [8, 32], strides = [1, 1]} : vector<8x96xf32> to vector<8x32xf32>
    %167 = vector.extract_strided_slice %162 {offsets = [0, 64], sizes = [8, 32], strides = [1, 1]} : vector<8x96xf32> to vector<8x32xf32>
    %168 = arith.mulf %166, %150 : vector<8x32xf32>
    %169 = arith.mulf %165, %164 : vector<8x32xf32>
    %170 = arith.addf %168, %169 : vector<8x32xf32>
    %171 = math.tanh %170 : vector<8x32xf32>
    %172 = arith.mulf %167, %171 : vector<8x32xf32>
    %c56_53 = arith.constant 56 : index
    %c0_54 = arith.constant 0 : index
    %173 = vector.load %arg11[%c56_53, %c0_54] : memref<64x32xf32, #tpu.memory_space<vmem>>, vector<8x32xf32>
    tpu.vector_store %arg11[%c56_53, %c0_54], %172 {strides = array<i32>} : memref<64x32xf32, #tpu.memory_space<vmem>>, vector<8x32xf32>,
    %c0_55 = arith.constant 0 : index
    %c0_56 = arith.constant 0 : index
    %174 = vector.load %arg4[%c0_55, %c0_56] : memref<32x128xf32, #tpu.memory_space<vmem>>, vector<32x128xf32>
    %c0_57 = arith.constant 0 : index
    %c0_58 = arith.constant 0 : index
    %175 = vector.load %arg5[%c0_57, %c0_58] : memref<32x128xf32, #tpu.memory_space<vmem>>, vector<32x128xf32>
    %c0_59 = arith.constant 0 : index
    %c0_60 = arith.constant 0 : index
    %176 = vector.load %arg6[%c0_59, %c0_60] : memref<1x128xf32, #tpu.memory_space<vmem>>, vector<1x128xf32>
    %c0_61 = arith.constant 0 : index
    %c0_62 = arith.constant 0 : index
    %177 = vector.load %arg11[%c0_61, %c0_62] : memref<64x32xf32, #tpu.memory_space<vmem>>, vector<64x32xf32>
    %cst_63 = arith.constant dense<0.000000e+00> : vector<64x128xf32>
    %178 = tpu.matmul %177, %174, %cst_63 {dimension_numbers = #tpu.dot_dimension_numbers<[1], [0], [0], [1], [0, 0, 1, 1], [], []>} : vector<64x32xf32>, vector<32x128xf32>, vector<64x128xf32> -> vector<64x128xf32>
    %179 = vector.broadcast %176 : vector<1x128xf32> to vector<64x128xf32>
    %180 = arith.addf %178, %179 : vector<64x128xf32>
    %c0_64 = arith.constant 0 : index
    %c0_65 = arith.constant 0 : index
    %181 = vector.load %arg10[%c0_64, %c0_65] : memref<64x128xf32, #tpu.memory_space<vmem>>, vector<64x128xf32>
    tpu.vector_store %arg10[%c0_64, %c0_65], %180 {strides = array<i32>} : memref<64x128xf32, #tpu.memory_space<vmem>>, vector<64x128xf32>,
    %cst_66 = arith.constant 0.000000e+00 : f32
    %182 = vector.broadcast %cst_66 : f32 to vector<8x32xf32>
    %cst_67 = arith.constant 0.000000e+00 : f32
    %183 = vector.broadcast %cst_67 : f32 to vector<8x32xf32>
    %c0_68 = arith.constant 0 : index
    %c0_69 = arith.constant 0 : index
    %184 = vector.load %arg10[%c0_68, %c0_69] : memref<64x128xf32, #tpu.memory_space<vmem>>, vector<8x128xf32>
    %cst_70 = arith.constant dense<0.000000e+00> : vector<8x128xf32>
    %185 = tpu.matmul %182, %175, %cst_70 {dimension_numbers = #tpu.dot_dimension_numbers<[1], [0], [0], [1], [0, 0, 1, 1], [], []>} : vector<8x32xf32>, vector<32x128xf32>, vector<8x128xf32> -> vector<8x128xf32>
    %186 = arith.addf %184, %185 : vector<8x128xf32>
    %187 = vector.extract_strided_slice %186 {offsets = [0, 0], sizes = [8, 96], strides = [1, 1]} : vector<8x128xf32> to vector<8x96xf32>
    %188 = arith.negf %187 : vector<8x96xf32>
    %189 = math.exp %188 : vector<8x96xf32>
    %cst_71 = arith.constant 1.000000e+00 : f32
    %190 = vector.broadcast %cst_71 : f32 to vector<8x96xf32>
    %191 = arith.addf %190, %189 : vector<8x96xf32>
    %192 = arith.divf %190, %191 : vector<8x96xf32>
    %193 = vector.extract_strided_slice %186 {offsets = [0, 96], sizes = [8, 32], strides = [1, 1]} : vector<8x128xf32> to vector<8x32xf32>
    %194 = math.tanh %193 : vector<8x32xf32>
    %195 = vector.extract_strided_slice %192 {offsets = [0, 0], sizes = [8, 32], strides = [1, 1]} : vector<8x96xf32> to vector<8x32xf32>
    %196 = vector.extract_strided_slice %192 {offsets = [0, 32], sizes = [8, 32], strides = [1, 1]} : vector<8x96xf32> to vector<8x32xf32>
    %197 = vector.extract_strided_slice %192 {offsets = [0, 64], sizes = [8, 32], strides = [1, 1]} : vector<8x96xf32> to vector<8x32xf32>
    %198 = arith.mulf %196, %183 : vector<8x32xf32>
    %199 = arith.mulf %195, %194 : vector<8x32xf32>
    %200 = arith.addf %198, %199 : vector<8x32xf32>
    %201 = math.tanh %200 : vector<8x32xf32>
    %202 = arith.mulf %197, %201 : vector<8x32xf32>
    %c0_72 = arith.constant 0 : index
    %c0_73 = arith.constant 0 : index
    %203 = vector.load %arg7[%c0_72, %c0_73] : memref<256x4xf32, #tpu.memory_space<vmem>>, vector<32x4xf32>
    %cst_74 = arith.constant dense<0.000000e+00> : vector<8x4xf32>
    %204 = tpu.matmul %202, %203, %cst_74 {dimension_numbers = #tpu.dot_dimension_numbers<[1], [0], [0], [1], [0, 0, 1, 1], [], []>} : vector<8x32xf32>, vector<32x4xf32>, vector<8x4xf32> -> vector<8x4xf32>
    %205 = arith.addf %3, %204 : vector<8x4xf32>
    %c8_75 = arith.constant 8 : index
    %c0_76 = arith.constant 0 : index
    %206 = vector.load %arg10[%c8_75, %c0_76] : memref<64x128xf32, #tpu.memory_space<vmem>>, vector<8x128xf32>
    %cst_77 = arith.constant dense<0.000000e+00> : vector<8x128xf32>
    %207 = tpu.matmul %202, %175, %cst_77 {dimension_numbers = #tpu.dot_dimension_numbers<[1], [0], [0], [1], [0, 0, 1, 1], [], []>} : vector<8x32xf32>, vector<32x128xf32>, vector<8x128xf32> -> vector<8x128xf32>
    %208 = arith.addf %206, %207 : vector<8x128xf32>
    %209 = vector.extract_strided_slice %208 {offsets = [0, 0], sizes = [8, 96], strides = [1, 1]} : vector<8x128xf32> to vector<8x96xf32>
    %210 = arith.negf %209 : vector<8x96xf32>
    %211 = math.exp %210 : vector<8x96xf32>
    %cst_78 = arith.constant 1.000000e+00 : f32
    %212 = vector.broadcast %cst_78 : f32 to vector<8x96xf32>
    %213 = arith.addf %212, %211 : vector<8x96xf32>
    %214 = arith.divf %212, %213 : vector<8x96xf32>
    %215 = vector.extract_strided_slice %208 {offsets = [0, 96], sizes = [8, 32], strides = [1, 1]} : vector<8x128xf32> to vector<8x32xf32>
    %216 = math.tanh %215 : vector<8x32xf32>
    %217 = vector.extract_strided_slice %214 {offsets = [0, 0], sizes = [8, 32], strides = [1, 1]} : vector<8x96xf32> to vector<8x32xf32>
    %218 = vector.extract_strided_slice %214 {offsets = [0, 32], sizes = [8, 32], strides = [1, 1]} : vector<8x96xf32> to vector<8x32xf32>
    %219 = vector.extract_strided_slice %214 {offsets = [0, 64], sizes = [8, 32], strides = [1, 1]} : vector<8x96xf32> to vector<8x32xf32>
    %220 = arith.mulf %218, %200 : vector<8x32xf32>
    %221 = arith.mulf %217, %216 : vector<8x32xf32>
    %222 = arith.addf %220, %221 : vector<8x32xf32>
    %223 = math.tanh %222 : vector<8x32xf32>
    %224 = arith.mulf %219, %223 : vector<8x32xf32>
    %c32_79 = arith.constant 32 : index
    %c0_80 = arith.constant 0 : index
    %225 = vector.load %arg7[%c32_79, %c0_80] : memref<256x4xf32, #tpu.memory_space<vmem>>, vector<32x4xf32>
    %cst_81 = arith.constant dense<0.000000e+00> : vector<8x4xf32>
    %226 = tpu.matmul %224, %225, %cst_81 {dimension_numbers = #tpu.dot_dimension_numbers<[1], [0], [0], [1], [0, 0, 1, 1], [], []>} : vector<8x32xf32>, vector<32x4xf32>, vector<8x4xf32> -> vector<8x4xf32>
    %227 = arith.addf %205, %226 : vector<8x4xf32>
    %c16_82 = arith.constant 16 : index
    %c0_83 = arith.constant 0 : index
    %228 = vector.load %arg10[%c16_82, %c0_83] : memref<64x128xf32, #tpu.memory_space<vmem>>, vector<8x128xf32>
    %cst_84 = arith.constant dense<0.000000e+00> : vector<8x128xf32>
    %229 = tpu.matmul %224, %175, %cst_84 {dimension_numbers = #tpu.dot_dimension_numbers<[1], [0], [0], [1], [0, 0, 1, 1], [], []>} : vector<8x32xf32>, vector<32x128xf32>, vector<8x128xf32> -> vector<8x128xf32>
    %230 = arith.addf %228, %229 : vector<8x128xf32>
    %231 = vector.extract_strided_slice %230 {offsets = [0, 0], sizes = [8, 96], strides = [1, 1]} : vector<8x128xf32> to vector<8x96xf32>
    %232 = arith.negf %231 : vector<8x96xf32>
    %233 = math.exp %232 : vector<8x96xf32>
    %cst_85 = arith.constant 1.000000e+00 : f32
    %234 = vector.broadcast %cst_85 : f32 to vector<8x96xf32>
    %235 = arith.addf %234, %233 : vector<8x96xf32>
    %236 = arith.divf %234, %235 : vector<8x96xf32>
    %237 = vector.extract_strided_slice %230 {offsets = [0, 96], sizes = [8, 32], strides = [1, 1]} : vector<8x128xf32> to vector<8x32xf32>
    %238 = math.tanh %237 : vector<8x32xf32>
    %239 = vector.extract_strided_slice %236 {offsets = [0, 0], sizes = [8, 32], strides = [1, 1]} : vector<8x96xf32> to vector<8x32xf32>
    %240 = vector.extract_strided_slice %236 {offsets = [0, 32], sizes = [8, 32], strides = [1, 1]} : vector<8x96xf32> to vector<8x32xf32>
    %241 = vector.extract_strided_slice %236 {offsets = [0, 64], sizes = [8, 32], strides = [1, 1]} : vector<8x96xf32> to vector<8x32xf32>
    %242 = arith.mulf %240, %222 : vector<8x32xf32>
    %243 = arith.mulf %239, %238 : vector<8x32xf32>
    %244 = arith.addf %242, %243 : vector<8x32xf32>
    %245 = math.tanh %244 : vector<8x32xf32>
    %246 = arith.mulf %241, %245 : vector<8x32xf32>
    %c64 = arith.constant 64 : index
    %c0_86 = arith.constant 0 : index
    %247 = vector.load %arg7[%c64, %c0_86] : memref<256x4xf32, #tpu.memory_space<vmem>>, vector<32x4xf32>
    %cst_87 = arith.constant dense<0.000000e+00> : vector<8x4xf32>
    %248 = tpu.matmul %246, %247, %cst_87 {dimension_numbers = #tpu.dot_dimension_numbers<[1], [0], [0], [1], [0, 0, 1, 1], [], []>} : vector<8x32xf32>, vector<32x4xf32>, vector<8x4xf32> -> vector<8x4xf32>
    %249 = arith.addf %227, %248 : vector<8x4xf32>
    %c24_88 = arith.constant 24 : index
    %c0_89 = arith.constant 0 : index
    %250 = vector.load %arg10[%c24_88, %c0_89] : memref<64x128xf32, #tpu.memory_space<vmem>>, vector<8x128xf32>
    %cst_90 = arith.constant dense<0.000000e+00> : vector<8x128xf32>
    %251 = tpu.matmul %246, %175, %cst_90 {dimension_numbers = #tpu.dot_dimension_numbers<[1], [0], [0], [1], [0, 0, 1, 1], [], []>} : vector<8x32xf32>, vector<32x128xf32>, vector<8x128xf32> -> vector<8x128xf32>
    %252 = arith.addf %250, %251 : vector<8x128xf32>
    %253 = vector.extract_strided_slice %252 {offsets = [0, 0], sizes = [8, 96], strides = [1, 1]} : vector<8x128xf32> to vector<8x96xf32>
    %254 = arith.negf %253 : vector<8x96xf32>
    %255 = math.exp %254 : vector<8x96xf32>
    %cst_91 = arith.constant 1.000000e+00 : f32
    %256 = vector.broadcast %cst_91 : f32 to vector<8x96xf32>
    %257 = arith.addf %256, %255 : vector<8x96xf32>
    %258 = arith.divf %256, %257 : vector<8x96xf32>
    %259 = vector.extract_strided_slice %252 {offsets = [0, 96], sizes = [8, 32], strides = [1, 1]} : vector<8x128xf32> to vector<8x32xf32>
    %260 = math.tanh %259 : vector<8x32xf32>
    %261 = vector.extract_strided_slice %258 {offsets = [0, 0], sizes = [8, 32], strides = [1, 1]} : vector<8x96xf32> to vector<8x32xf32>
    %262 = vector.extract_strided_slice %258 {offsets = [0, 32], sizes = [8, 32], strides = [1, 1]} : vector<8x96xf32> to vector<8x32xf32>
    %263 = vector.extract_strided_slice %258 {offsets = [0, 64], sizes = [8, 32], strides = [1, 1]} : vector<8x96xf32> to vector<8x32xf32>
    %264 = arith.mulf %262, %244 : vector<8x32xf32>
    %265 = arith.mulf %261, %260 : vector<8x32xf32>
    %266 = arith.addf %264, %265 : vector<8x32xf32>
    %267 = math.tanh %266 : vector<8x32xf32>
    %268 = arith.mulf %263, %267 : vector<8x32xf32>
    %c96 = arith.constant 96 : index
    %c0_92 = arith.constant 0 : index
    %269 = vector.load %arg7[%c96, %c0_92] : memref<256x4xf32, #tpu.memory_space<vmem>>, vector<32x4xf32>
    %cst_93 = arith.constant dense<0.000000e+00> : vector<8x4xf32>
    %270 = tpu.matmul %268, %269, %cst_93 {dimension_numbers = #tpu.dot_dimension_numbers<[1], [0], [0], [1], [0, 0, 1, 1], [], []>} : vector<8x32xf32>, vector<32x4xf32>, vector<8x4xf32> -> vector<8x4xf32>
    %271 = arith.addf %249, %270 : vector<8x4xf32>
    %c32_94 = arith.constant 32 : index
    %c0_95 = arith.constant 0 : index
    %272 = vector.load %arg10[%c32_94, %c0_95] : memref<64x128xf32, #tpu.memory_space<vmem>>, vector<8x128xf32>
    %cst_96 = arith.constant dense<0.000000e+00> : vector<8x128xf32>
    %273 = tpu.matmul %268, %175, %cst_96 {dimension_numbers = #tpu.dot_dimension_numbers<[1], [0], [0], [1], [0, 0, 1, 1], [], []>} : vector<8x32xf32>, vector<32x128xf32>, vector<8x128xf32> -> vector<8x128xf32>
    %274 = arith.addf %272, %273 : vector<8x128xf32>
    %275 = vector.extract_strided_slice %274 {offsets = [0, 0], sizes = [8, 96], strides = [1, 1]} : vector<8x128xf32> to vector<8x96xf32>
    %276 = arith.negf %275 : vector<8x96xf32>
    %277 = math.exp %276 : vector<8x96xf32>
    %cst_97 = arith.constant 1.000000e+00 : f32
    %278 = vector.broadcast %cst_97 : f32 to vector<8x96xf32>
    %279 = arith.addf %278, %277 : vector<8x96xf32>
    %280 = arith.divf %278, %279 : vector<8x96xf32>
    %281 = vector.extract_strided_slice %274 {offsets = [0, 96], sizes = [8, 32], strides = [1, 1]} : vector<8x128xf32> to vector<8x32xf32>
    %282 = math.tanh %281 : vector<8x32xf32>
    %283 = vector.extract_strided_slice %280 {offsets = [0, 0], sizes = [8, 32], strides = [1, 1]} : vector<8x96xf32> to vector<8x32xf32>
    %284 = vector.extract_strided_slice %280 {offsets = [0, 32], sizes = [8, 32], strides = [1, 1]} : vector<8x96xf32> to vector<8x32xf32>
    %285 = vector.extract_strided_slice %280 {offsets = [0, 64], sizes = [8, 32], strides = [1, 1]} : vector<8x96xf32> to vector<8x32xf32>
    %286 = arith.mulf %284, %266 : vector<8x32xf32>
    %287 = arith.mulf %283, %282 : vector<8x32xf32>
    %288 = arith.addf %286, %287 : vector<8x32xf32>
    %289 = math.tanh %288 : vector<8x32xf32>
    %290 = arith.mulf %285, %289 : vector<8x32xf32>
    %c128 = arith.constant 128 : index
    %c0_98 = arith.constant 0 : index
    %291 = vector.load %arg7[%c128, %c0_98] : memref<256x4xf32, #tpu.memory_space<vmem>>, vector<32x4xf32>
    %cst_99 = arith.constant dense<0.000000e+00> : vector<8x4xf32>
    %292 = tpu.matmul %290, %291, %cst_99 {dimension_numbers = #tpu.dot_dimension_numbers<[1], [0], [0], [1], [0, 0, 1, 1], [], []>} : vector<8x32xf32>, vector<32x4xf32>, vector<8x4xf32> -> vector<8x4xf32>
    %293 = arith.addf %271, %292 : vector<8x4xf32>
    %c40_100 = arith.constant 40 : index
    %c0_101 = arith.constant 0 : index
    %294 = vector.load %arg10[%c40_100, %c0_101] : memref<64x128xf32, #tpu.memory_space<vmem>>, vector<8x128xf32>
    %cst_102 = arith.constant dense<0.000000e+00> : vector<8x128xf32>
    %295 = tpu.matmul %290, %175, %cst_102 {dimension_numbers = #tpu.dot_dimension_numbers<[1], [0], [0], [1], [0, 0, 1, 1], [], []>} : vector<8x32xf32>, vector<32x128xf32>, vector<8x128xf32> -> vector<8x128xf32>
    %296 = arith.addf %294, %295 : vector<8x128xf32>
    %297 = vector.extract_strided_slice %296 {offsets = [0, 0], sizes = [8, 96], strides = [1, 1]} : vector<8x128xf32> to vector<8x96xf32>
    %298 = arith.negf %297 : vector<8x96xf32>
    %299 = math.exp %298 : vector<8x96xf32>
    %cst_103 = arith.constant 1.000000e+00 : f32
    %300 = vector.broadcast %cst_103 : f32 to vector<8x96xf32>
    %301 = arith.addf %300, %299 : vector<8x96xf32>
    %302 = arith.divf %300, %301 : vector<8x96xf32>
    %303 = vector.extract_strided_slice %296 {offsets = [0, 96], sizes = [8, 32], strides = [1, 1]} : vector<8x128xf32> to vector<8x32xf32>
    %304 = math.tanh %303 : vector<8x32xf32>
    %305 = vector.extract_strided_slice %302 {offsets = [0, 0], sizes = [8, 32], strides = [1, 1]} : vector<8x96xf32> to vector<8x32xf32>
    %306 = vector.extract_strided_slice %302 {offsets = [0, 32], sizes = [8, 32], strides = [1, 1]} : vector<8x96xf32> to vector<8x32xf32>
    %307 = vector.extract_strided_slice %302 {offsets = [0, 64], sizes = [8, 32], strides = [1, 1]} : vector<8x96xf32> to vector<8x32xf32>
    %308 = arith.mulf %306, %288 : vector<8x32xf32>
    %309 = arith.mulf %305, %304 : vector<8x32xf32>
    %310 = arith.addf %308, %309 : vector<8x32xf32>
    %311 = math.tanh %310 : vector<8x32xf32>
    %312 = arith.mulf %307, %311 : vector<8x32xf32>
    %c160 = arith.constant 160 : index
    %c0_104 = arith.constant 0 : index
    %313 = vector.load %arg7[%c160, %c0_104] : memref<256x4xf32, #tpu.memory_space<vmem>>, vector<32x4xf32>
    %cst_105 = arith.constant dense<0.000000e+00> : vector<8x4xf32>
    %314 = tpu.matmul %312, %313, %cst_105 {dimension_numbers = #tpu.dot_dimension_numbers<[1], [0], [0], [1], [0, 0, 1, 1], [], []>} : vector<8x32xf32>, vector<32x4xf32>, vector<8x4xf32> -> vector<8x4xf32>
    %315 = arith.addf %293, %314 : vector<8x4xf32>
    %c48_106 = arith.constant 48 : index
    %c0_107 = arith.constant 0 : index
    %316 = vector.load %arg10[%c48_106, %c0_107] : memref<64x128xf32, #tpu.memory_space<vmem>>, vector<8x128xf32>
    %cst_108 = arith.constant dense<0.000000e+00> : vector<8x128xf32>
    %317 = tpu.matmul %312, %175, %cst_108 {dimension_numbers = #tpu.dot_dimension_numbers<[1], [0], [0], [1], [0, 0, 1, 1], [], []>} : vector<8x32xf32>, vector<32x128xf32>, vector<8x128xf32> -> vector<8x128xf32>
    %318 = arith.addf %316, %317 : vector<8x128xf32>
    %319 = vector.extract_strided_slice %318 {offsets = [0, 0], sizes = [8, 96], strides = [1, 1]} : vector<8x128xf32> to vector<8x96xf32>
    %320 = arith.negf %319 : vector<8x96xf32>
    %321 = math.exp %320 : vector<8x96xf32>
    %cst_109 = arith.constant 1.000000e+00 : f32
    %322 = vector.broadcast %cst_109 : f32 to vector<8x96xf32>
    %323 = arith.addf %322, %321 : vector<8x96xf32>
    %324 = arith.divf %322, %323 : vector<8x96xf32>
    %325 = vector.extract_strided_slice %318 {offsets = [0, 96], sizes = [8, 32], strides = [1, 1]} : vector<8x128xf32> to vector<8x32xf32>
    %326 = math.tanh %325 : vector<8x32xf32>
    %327 = vector.extract_strided_slice %324 {offsets = [0, 0], sizes = [8, 32], strides = [1, 1]} : vector<8x96xf32> to vector<8x32xf32>
    %328 = vector.extract_strided_slice %324 {offsets = [0, 32], sizes = [8, 32], strides = [1, 1]} : vector<8x96xf32> to vector<8x32xf32>
    %329 = vector.extract_strided_slice %324 {offsets = [0, 64], sizes = [8, 32], strides = [1, 1]} : vector<8x96xf32> to vector<8x32xf32>
    %330 = arith.mulf %328, %310 : vector<8x32xf32>
    %331 = arith.mulf %327, %326 : vector<8x32xf32>
    %332 = arith.addf %330, %331 : vector<8x32xf32>
    %333 = math.tanh %332 : vector<8x32xf32>
    %334 = arith.mulf %329, %333 : vector<8x32xf32>
    %c192 = arith.constant 192 : index
    %c0_110 = arith.constant 0 : index
    %335 = vector.load %arg7[%c192, %c0_110] : memref<256x4xf32, #tpu.memory_space<vmem>>, vector<32x4xf32>
    %cst_111 = arith.constant dense<0.000000e+00> : vector<8x4xf32>
    %336 = tpu.matmul %334, %335, %cst_111 {dimension_numbers = #tpu.dot_dimension_numbers<[1], [0], [0], [1], [0, 0, 1, 1], [], []>} : vector<8x32xf32>, vector<32x4xf32>, vector<8x4xf32> -> vector<8x4xf32>
    %337 = arith.addf %315, %336 : vector<8x4xf32>
    %c56_112 = arith.constant 56 : index
    %c0_113 = arith.constant 0 : index
    %338 = vector.load %arg10[%c56_112, %c0_113] : memref<64x128xf32, #tpu.memory_space<vmem>>, vector<8x128xf32>
    %cst_114 = arith.constant dense<0.000000e+00> : vector<8x128xf32>
    %339 = tpu.matmul %334, %175, %cst_114 {dimension_numbers = #tpu.dot_dimension_numbers<[1], [0], [0], [1], [0, 0, 1, 1], [], []>} : vector<8x32xf32>, vector<32x128xf32>, vector<8x128xf32> -> vector<8x128xf32>
    %340 = arith.addf %338, %339 : vector<8x128xf32>
    %341 = vector.extract_strided_slice %340 {offsets = [0, 0], sizes = [8, 96], strides = [1, 1]} : vector<8x128xf32> to vector<8x96xf32>
    %342 = arith.negf %341 : vector<8x96xf32>
    %343 = math.exp %342 : vector<8x96xf32>
    %cst_115 = arith.constant 1.000000e+00 : f32
    %344 = vector.broadcast %cst_115 : f32 to vector<8x96xf32>
    %345 = arith.addf %344, %343 : vector<8x96xf32>
    %346 = arith.divf %344, %345 : vector<8x96xf32>
    %347 = vector.extract_strided_slice %340 {offsets = [0, 96], sizes = [8, 32], strides = [1, 1]} : vector<8x128xf32> to vector<8x32xf32>
    %348 = math.tanh %347 : vector<8x32xf32>
    %349 = vector.extract_strided_slice %346 {offsets = [0, 0], sizes = [8, 32], strides = [1, 1]} : vector<8x96xf32> to vector<8x32xf32>
    %350 = vector.extract_strided_slice %346 {offsets = [0, 32], sizes = [8, 32], strides = [1, 1]} : vector<8x96xf32> to vector<8x32xf32>
    %351 = vector.extract_strided_slice %346 {offsets = [0, 64], sizes = [8, 32], strides = [1, 1]} : vector<8x96xf32> to vector<8x32xf32>
    %352 = arith.mulf %350, %332 : vector<8x32xf32>
    %353 = arith.mulf %349, %348 : vector<8x32xf32>
    %354 = arith.addf %352, %353 : vector<8x32xf32>
    %355 = math.tanh %354 : vector<8x32xf32>
    %356 = arith.mulf %351, %355 : vector<8x32xf32>
    %c224 = arith.constant 224 : index
    %c0_116 = arith.constant 0 : index
    %357 = vector.load %arg7[%c224, %c0_116] : memref<256x4xf32, #tpu.memory_space<vmem>>, vector<32x4xf32>
    %cst_117 = arith.constant dense<0.000000e+00> : vector<8x4xf32>
    %358 = tpu.matmul %356, %357, %cst_117 {dimension_numbers = #tpu.dot_dimension_numbers<[1], [0], [0], [1], [0, 0, 1, 1], [], []>} : vector<8x32xf32>, vector<32x4xf32>, vector<8x4xf32> -> vector<8x4xf32>
    %359 = arith.addf %337, %358 : vector<8x4xf32>
    %c0_118 = arith.constant 0 : index
    %c0_119 = arith.constant 0 : index
    %360 = vector.load %arg9[%c0_118, %c0_119] : memref<8x4xf32, #tpu.memory_space<vmem>>, vector<8x4xf32>
    tpu.vector_store %arg9[%c0_118, %c0_119], %359 {strides = array<i32>} : memref<8x4xf32, #tpu.memory_space<vmem>>, vector<8x4xf32>,
    return
  }
}

</mosaic_0001>

<llo_original>
// kernel: rnn_forward.1
$region0: #{rnn_forward.1}
  #allocation0 [shape = 'u32[]', space=smem, size = 0x4, offset = 0x4, fixed_abs, tag = 'smem constant byte address 0x4 - core index']
  #allocation1 [shape = 'u32[144,128]{1,0:T(1,128)}', space=vmem, size = 0x12000, scoped, tag = 'internal scratch']
  #allocation2 [shape = 'f32[64,128]{1,0:T(8,128)}', space=vmem, size = 0x8000, scoped, tag = 'scratch operand']
  #allocation3 [shape = 'f32[64,32]{1,0:T(8,128)}', space=vmem, size = 0x8000, scoped, tag = 'scratch operand']
  %s0 = inlined_call_operand.vmem [shape: f32[64,8], index: 0, kind: input, shape index: {}]
  %s1 = inlined_call_operand.vmem [shape: f32[8,128], index: 1, kind: input, shape index: {}]
  %s2 = inlined_call_operand.vmem [shape: f32[32,128], index: 2, kind: input, shape index: {}]
  %s3 = inlined_call_operand.vmem [shape: f32[1,128], index: 3, kind: input, shape index: {}]
  %s4 = inlined_call_operand.vmem [shape: f32[32,128], index: 4, kind: input, shape index: {}]
  %s5 = inlined_call_operand.vmem [shape: f32[32,128], index: 5, kind: input, shape index: {}]
  %s6 = inlined_call_operand.vmem [shape: f32[1,128], index: 6, kind: input, shape index: {}]
  %s7 = inlined_call_operand.vmem [shape: f32[256,4], index: 7, kind: input, shape index: {}]
  %s8 = inlined_call_operand.vmem [shape: f32[1,4], index: 8, kind: input, shape index: {}]
  %s9 = inlined_call_operand.vmem [shape: f32[8,4], index: 9, kind: output, shape index: {}]
  %s10 = sld [smem:[#allocation0]]
  $region46: #{rnn_forward.1} parent=0
    _
  %s12 = ssub.s32 1, %s10
  %s13 = scalar_select 0, %s12, %s10
  // Predicated region
  $region2: #{rnn_forward.1} parent=0 // pred_check
    _
  $region3: #{rnn_forward.1} parent=0 // pred_check_branch
    %15 = sbr.rel (0) target = $region5
  $region4: #{rnn_forward.1} parent=0 // pred_region
    _
  $region5: #{rnn_forward.1} parent=0 // pred_fallthru
    _
  // Predicated region
  $region6: #{rnn_forward.1} parent=0 // pred_check
    _
  $region7: #{rnn_forward.1} parent=0 // pred_check_branch
    %17 = sbr.rel (0) target = $region9
  $region8: #{rnn_forward.1} parent=0 // pred_region
    _
  $region9: #{rnn_forward.1} parent=0 // pred_fallthru
    _
  // Predicated region
  $region10: #{rnn_forward.1} parent=0 // pred_check
    _
  $region11: #{rnn_forward.1} parent=0 // pred_check_branch
    %19 = sbr.rel (0) target = $region13
  $region12: #{rnn_forward.1} parent=0 // pred_region
    _
  $region13: #{rnn_forward.1} parent=0 // pred_fallthru
    _
  // Predicated region
  $region14: #{rnn_forward.1} parent=0 // pred_check
    _
  $region15: #{rnn_forward.1} parent=0 // pred_check_branch
    %21 = sbr.rel (0) target = $region17
  $region16: #{rnn_forward.1} parent=0 // pred_region
    _
  $region17: #{rnn_forward.1} parent=0 // pred_fallthru
    _
  // Predicated region
  $region18: #{rnn_forward.1} parent=0 // pred_check
    _
  $region19: #{rnn_forward.1} parent=0 // pred_check_branch
    %23 = sbr.rel (0) target = $region21
  $region20: #{rnn_forward.1} parent=0 // pred_region
    _
  $region21: #{rnn_forward.1} parent=0 // pred_fallthru
    _
  // Predicated region
  $region22: #{rnn_forward.1} parent=0 // pred_check
    _
  $region23: #{rnn_forward.1} parent=0 // pred_check_branch
    %25 = sbr.rel (0) target = $region25
  $region24: #{rnn_forward.1} parent=0 // pred_region
    _
  $region25: #{rnn_forward.1} parent=0 // pred_fallthru
    _
  // Predicated region
  $region26: #{rnn_forward.1} parent=0 // pred_check
    _
  $region27: #{rnn_forward.1} parent=0 // pred_check_branch
    %27 = sbr.rel (0) target = $region29
  $region28: #{rnn_forward.1} parent=0 // pred_region
    _
  $region29: #{rnn_forward.1} parent=0 // pred_fallthru
    _
  // Predicated region
  $region30: #{rnn_forward.1} parent=0 // pred_check
    _
  $region31: #{rnn_forward.1} parent=0 // pred_check_branch
    %29 = sbr.rel (0) target = $region33
  $region32: #{rnn_forward.1} parent=0 // pred_region
    _
  $region33: #{rnn_forward.1} parent=0 // pred_fallthru
    _
  // Predicated region
  $region34: #{rnn_forward.1} parent=0 // pred_check
    _
  $region35: #{rnn_forward.1} parent=0 // pred_check_branch
    %31 = sbr.rel (0) target = $region37
  $region36: #{rnn_forward.1} parent=0 // pred_region
    _
  $region37: #{rnn_forward.1} parent=0 // pred_fallthru
    _
  %v32 = vld [vmem:[%s8] sm:$0x1]
  %v34 = vlaneseq
  %v35 = vshrl.u32 %v34, 7
  %v36 = vsub.s32 0, %v35
  %v37 = vrot.slane %v32, %v36
  %v39 = vadd.f32 %v37, 0.0
  %v40 = vld [vmem:[%s1] sm:$0xff]
  %v41 = vld [vmem:[%s2] sm:$0xff]
  %v42 = vld [vmem:[%s2 + $0x8] sm:$0xff]
  %v43 = vld [vmem:[%s2 + $0x10] sm:$0xff]
  %v44 = vld [vmem:[%s2 + $0x18] sm:$0xff]
  %v45 = vld [vmem:[%s3] sm:$0x1]
  %v46 = vld [vmem:[%s0] sm:$0xff]
  %v47 = vld [vmem:[%s0 + $0x8] sm:$0xff]
  %v48 = vld [vmem:[%s0 + $0x10] sm:$0xff]
  %v49 = vld [vmem:[%s0 + $0x18] sm:$0xff]
  %v50 = vld [vmem:[%s0 + $0x20] sm:$0xff]
  %v51 = vld [vmem:[%s0 + $0x28] sm:$0xff]
  %v52 = vld [vmem:[%s0 + $0x30] sm:$0xff]
  %v53 = vld [vmem:[%s0 + $0x38] sm:$0xff]
  %v55 = vlaneseq
  %v56 = vshrl.u32 %v55, 7
  %v57 = vsub.s32 0, %v56
  %v58 = vrot.slane %v45, %v57
  %vm60 = vcmask 64512
  %v62 = vsel %vm60, %v46, 0
  %v65 = vsel %vm60, %v47, 0
  %v68 = vsel %vm60, %v48, 0
  %v71 = vsel %vm60, %v49, 0
  %v74 = vsel %vm60, %v50, 0
  %v77 = vsel %vm60, %v51, 0
  %v80 = vsel %vm60, %v52, 0
  %v83 = vsel %vm60, %v53, 0
  %85 = vmatprep.subr.mxu0 0.0
  %86 = vmatpush1.msra.mxu0 0.0
  %87 = vmatprep.subr.mxu0 0.0
  %88 = vmatpush1.msra.mxu0 0.0
  %89 = vmatprep.subr.mxu0 0.0
  %90 = vmatpush1.msra.mxu0 0.0
  %91 = vmatprep.subr.mxu0 0.0
  %92 = vmatpush1.msra.mxu0 0.0
  %93 = vmatprep.subr.mxu0 0.0
  %94 = vmatpush1.msra.mxu0 0.0
  %95 = vmatprep.subr.mxu0 0.0
  %96 = vmatpush1.msra.mxu0 0.0
  %97 = vmatprep.subr.mxu0 0.0
  %98 = vmatpush1.msra.mxu0 0.0
  %99 = vmatprep.subr.mxu0 0.0
  %100 = vmatpush1.msra.mxu0 0.0
  %101 = vmatprep.subr.mxu0 0.0
  %102 = vmatpush1.msra.mxu0 0.0
  %103 = vmatprep.subr.mxu0 0.0
  %104 = vmatpush1.msra.mxu0 0.0
  %105 = vmatprep.subr.mxu0 0.0
  %106 = vmatpush1.msra.mxu0 0.0
  %107 = vmatprep.subr.mxu0 0.0
  %108 = vmatpush1.msra.mxu0 0.0
  %109 = vmatprep.subr.mxu0 0.0
  %110 = vmatpush1.msra.mxu0 0.0
  %111 = vmatprep.subr.mxu0 0.0
  %112 = vmatpush1.msra.mxu0 0.0
  %113 = vmatprep.subr.mxu0 0.0
  %114 = vmatpush1.msra.mxu0 0.0
  %115 = vmatprep.subr.mxu0 0.0
  %116 = vmatpush1.msra.mxu0 %v40
  %117 = vmatprep.subr.mxu0 0.0
  %118 = vmatpush2.msra.mxu0 0.0
  %119 = vmatprep.subr.mxu0 0.0
  %120 = vmatpush2.msra.mxu0 0.0
  %121 = vmatprep.subr.mxu0 0.0
  %122 = vmatpush2.msra.mxu0 0.0
  %123 = vmatprep.subr.mxu0 0.0
  %124 = vmatpush2.msra.mxu0 0.0
  %125 = vmatprep.subr.mxu0 0.0
  %126 = vmatpush2.msra.mxu0 0.0
  %127 = vmatprep.subr.mxu0 0.0
  %128 = vmatpush2.msra.mxu0 0.0
  %129 = vmatprep.subr.mxu0 0.0
  %130 = vmatpush2.msra.mxu0 0.0
  %131 = vmatprep.subr.mxu0 0.0
  %132 = vmatpush2.msra.mxu0 0.0
  %133 = vmatprep.subr.mxu0 0.0
  %134 = vmatpush2.msra.mxu0 0.0
  %135 = vmatprep.subr.mxu0 0.0
  %136 = vmatpush2.msra.mxu0 0.0
  %137 = vmatprep.subr.mxu0 0.0
  %138 = vmatpush2.msra.mxu0 0.0
  %139 = vmatprep.subr.mxu0 0.0
  %140 = vmatpush2.msra.mxu0 0.0
  %141 = vmatprep.subr.mxu0 0.0
  %142 = vmatpush2.msra.mxu0 0.0
  %143 = vmatprep.subr.mxu0 0.0
  %144 = vmatpush2.msra.mxu0 0.0
  %145 = vmatprep.subr.mxu0 0.0
  %146 = vmatpush2.msra.mxu0 0.0
  %147 = vmatprep.subr.mxu0 0.0
  %148 = vmatpush2.msra.mxu0 0.0
  %149 = vmatprep.mubr.f32.mxu0 0.0
  %150 = vmatmul.mubr.f32.gmra.mxu0 %v62
  %v151 = vpop.f32.mrf.mxu0
  %v152 = vadd.f32 %v58, %v151
  %v153 = vpop.f32.mrf.mxu0
  %154 = vmatprep.mubr.f32.mxu0 0.0
  %155 = vmatmul.mubr.f32.gmra.mxu0 %v65
  %v156 = vpop.f32.mrf.mxu0
  %v157 = vadd.f32 %v58, %v156
  %v158 = vpop.f32.mrf.mxu0
  %159 = vmatprep.mubr.f32.mxu0 0.0
  %160 = vmatmul.mubr.f32.gmra.mxu0 %v68
  %v161 = vpop.f32.mrf.mxu0
  %v162 = vadd.f32 %v58, %v161
  %v163 = vpop.f32.mrf.mxu0
  %164 = vmatprep.mubr.f32.mxu0 0.0
  %165 = vmatmul.mubr.f32.gmra.mxu0 %v71
  %v166 = vpop.f32.mrf.mxu0
  %v167 = vadd.f32 %v58, %v166
  %v168 = vpop.f32.mrf.mxu0
  %169 = vmatprep.mubr.f32.mxu0 0.0
  %170 = vmatmul.mubr.f32.gmra.mxu0 %v74
  %v171 = vpop.f32.mrf.mxu0
  %v172 = vadd.f32 %v58, %v171
  %v173 = vpop.f32.mrf.mxu0
  %174 = vmatprep.mubr.f32.mxu0 0.0
  %175 = vmatmul.mubr.f32.gmra.mxu0 %v77
  %v176 = vpop.f32.mrf.mxu0
  %v177 = vadd.f32 %v58, %v176
  %v178 = vpop.f32.mrf.mxu0
  %179 = vmatprep.mubr.f32.mxu0 0.0
  %180 = vmatmul.mubr.f32.gmra.mxu0 %v80
  %v181 = vpop.f32.mrf.mxu0
  %v182 = vadd.f32 %v58, %v181
  %v183 = vpop.f32.mrf.mxu0
  %184 = vmatprep.mubr.f32.mxu0 0.0
  %185 = vmatmul.mubr.f32.gmra.mxu0 %v83
  %v186 = vpop.f32.mrf.mxu0
  %v187 = vadd.f32 %v58, %v186
  %v188 = vpop.f32.mrf.mxu0
  %189 = vdwg.mxu0
  %190 = vst [vmem:[#allocation2] sm:$0xff] %v152
  %191 = vst [vmem:[#allocation2 + $0x8] sm:$0xff] %v157
  %192 = vst [vmem:[#allocation2 + $0x10] sm:$0xff] %v162
  %193 = vst [vmem:[#allocation2 + $0x18] sm:$0xff] %v167
  %194 = vst [vmem:[#allocation2 + $0x20] sm:$0xff] %v172
  %195 = vst [vmem:[#allocation2 + $0x28] sm:$0xff] %v177
  %196 = vst [vmem:[#allocation2 + $0x30] sm:$0xff] %v182
  %197 = vst [vmem:[#allocation2 + $0x38] sm:$0xff] %v187
  %v198 = vld [vmem:[#allocation2] sm:$0xff]
  %vm199 = vcmask 261120
  %v201 = vsel %vm199, 0.0, 0
  %203 = vmatprep.subr.mxu0 0.0
  %204 = vmatpush1.msra.mxu0 0.0
  %205 = vmatprep.subr.mxu0 0.0
  %206 = vmatpush1.msra.mxu0 0.0
  %207 = vmatprep.subr.mxu0 0.0
  %208 = vmatpush1.msra.mxu0 0.0
  %209 = vmatprep.subr.mxu0 0.0
  %210 = vmatpush1.msra.mxu0 0.0
  %211 = vmatprep.subr.mxu0 0.0
  %212 = vmatpush1.msra.mxu0 0.0
  %213 = vmatprep.subr.mxu0 0.0
  %214 = vmatpush1.msra.mxu0 0.0
  %215 = vmatprep.subr.mxu0 0.0
  %216 = vmatpush1.msra.mxu0 0.0
  %217 = vmatprep.subr.mxu0 0.0
  %218 = vmatpush1.msra.mxu0 0.0
  %219 = vmatprep.subr.mxu0 0.0
  %220 = vmatpush1.msra.mxu0 0.0
  %221 = vmatprep.subr.mxu0 0.0
  %222 = vmatpush1.msra.mxu0 0.0
  %223 = vmatprep.subr.mxu0 0.0
  %224 = vmatpush1.msra.mxu0 0.0
  %225 = vmatprep.subr.mxu0 0.0
  %226 = vmatpush1.msra.mxu0 0.0
  %227 = vmatprep.subr.mxu0 0.0
  %228 = vmatpush1.msra.mxu0 %v44
  %229 = vmatprep.subr.mxu0 0.0
  %230 = vmatpush1.msra.mxu0 %v43
  %231 = vmatprep.subr.mxu0 0.0
  %232 = vmatpush1.msra.mxu0 %v42
  %233 = vmatprep.subr.mxu0 0.0
  %234 = vmatpush1.msra.mxu0 %v41
  %235 = vmatprep.subr.mxu0 0.0
  %236 = vmatpush2.msra.mxu0 0.0
  %237 = vmatprep.subr.mxu0 0.0
  %238 = vmatpush2.msra.mxu0 0.0
  %239 = vmatprep.subr.mxu0 0.0
  %240 = vmatpush2.msra.mxu0 0.0
  %241 = vmatprep.subr.mxu0 0.0
  %242 = vmatpush2.msra.mxu0 0.0
  %243 = vmatprep.subr.mxu0 0.0
  %244 = vmatpush2.msra.mxu0 0.0
  %245 = vmatprep.subr.mxu0 0.0
  %246 = vmatpush2.msra.mxu0 0.0
  %247 = vmatprep.subr.mxu0 0.0
  %248 = vmatpush2.msra.mxu0 0.0
  %249 = vmatprep.subr.mxu0 0.0
  %250 = vmatpush2.msra.mxu0 0.0
  %251 = vmatprep.subr.mxu0 0.0
  %252 = vmatpush2.msra.mxu0 0.0
  %253 = vmatprep.subr.mxu0 0.0
  %254 = vmatpush2.msra.mxu0 0.0
  %255 = vmatprep.subr.mxu0 0.0
  %256 = vmatpush2.msra.mxu0 0.0
  %257 = vmatprep.subr.mxu0 0.0
  %258 = vmatpush2.msra.mxu0 0.0
  %259 = vmatprep.subr.mxu0 0.0
  %260 = vmatpush2.msra.mxu0 0.0
  %261 = vmatprep.subr.mxu0 0.0
  %262 = vmatpush2.msra.mxu0 0.0
  %263 = vmatprep.subr.mxu0 0.0
  %264 = vmatpush2.msra.mxu0 0.0
  %265 = vmatprep.subr.mxu0 0.0
  %266 = vmatpush2.msra.mxu0 0.0
  %267 = vmatprep.mubr.f32.mxu0 0.0
  %268 = vmatmul.mubr.f32.gmra.mxu0 %v201
  %v269 = vpop.f32.mrf.mxu0
  %v270 = vadd.f32 0.0, %v269
  %v271 = vpop.f32.mrf.mxu0
  %272 = vdwg.mxu0
  %v273 = vadd.f32 %v198, %v270
  %v274 = vxor.u32 %v273, 2147483648
  %v275 = vmul.f32 %v274, 1.442695
  %v276 = vpow.pop %v275
  %v277 = vadd.f32 %v276, 1.0
  %v278 = vrcp.pop %v277
  %v279 = vmul.f32 1.0, %v278
  %v280 = vtanh.pop %v273
  %v281 = vmul.f32 %v279, 0.0
  %283 = vrot.lane.b32.xlu0 %v280, 32
  %v284 = vpop.permute.xlu0 %283
  %v286 = vmul.f32 %v279, %v284
  %288 = vrot.lane.b32.xlu0 %v286, 32
  %v289 = vpop.permute.xlu0 %288
  %v291 = vadd.f32 %v281, %v289
  %v292 = vtanh.pop %v291
  %294 = vrot.lane.b32.xlu0 %v292, 32
  %v295 = vpop.permute.xlu0 %294
  %v297 = vmul.f32 %v279, %v295
  %299 = vrot.lane.b32.xlu0 %v297, 64
  %v300 = vpop.permute.xlu0 %299
  %302 = vst.msk [vmem:[#allocation3] sm:$0xff] %vm199, %v300
  %v303 = vld [vmem:[#allocation2 + $0x8] sm:$0xff]
  %v304 = vsel %vm199, %v300, 0
  %306 = vmatprep.subr.mxu0 0.0
  %307 = vmatpush1.msra.mxu0 0.0
  %308 = vmatprep.subr.mxu0 0.0
  %309 = vmatpush1.msra.mxu0 0.0
  %310 = vmatprep.subr.mxu0 0.0
  %311 = vmatpush1.msra.mxu0 0.0
  %312 = vmatprep.subr.mxu0 0.0
  %313 = vmatpush1.msra.mxu0 0.0
  %314 = vmatprep.subr.mxu0 0.0
  %315 = vmatpush1.msra.mxu0 0.0
  %316 = vmatprep.subr.mxu0 0.0
  %317 = vmatpush1.msra.mxu0 0.0
  %318 = vmatprep.subr.mxu0 0.0
  %319 = vmatpush1.msra.mxu0 0.0
  %320 = vmatprep.subr.mxu0 0.0
  %321 = vmatpush1.msra.mxu0 0.0
  %322 = vmatprep.subr.mxu0 0.0
  %323 = vmatpush1.msra.mxu0 0.0
  %324 = vmatprep.subr.mxu0 0.0
  %325 = vmatpush1.msra.mxu0 0.0
  %326 = vmatprep.subr.mxu0 0.0
  %327 = vmatpush1.msra.mxu0 0.0
  %328 = vmatprep.subr.mxu0 0.0
  %329 = vmatpush1.msra.mxu0 0.0
  %330 = vmatprep.subr.mxu0 0.0
  %331 = vmatpush1.msra.mxu0 %v44
  %332 = vmatprep.subr.mxu0 0.0
  %333 = vmatpush1.msra.mxu0 %v43
  %334 = vmatprep.subr.mxu0 0.0
  %335 = vmatpush1.msra.mxu0 %v42
  %336 = vmatprep.subr.mxu0 0.0
  %337 = vmatpush1.msra.mxu0 %v41
  %338 = vmatprep.subr.mxu0 0.0
  %339 = vmatpush2.msra.mxu0 0.0
  %340 = vmatprep.subr.mxu0 0.0
  %341 = vmatpush2.msra.mxu0 0.0
  %342 = vmatprep.subr.mxu0 0.0
  %343 = vmatpush2.msra.mxu0 0.0
  %344 = vmatprep.subr.mxu0 0.0
  %345 = vmatpush2.msra.mxu0 0.0
  %346 = vmatprep.subr.mxu0 0.0
  %347 = vmatpush2.msra.mxu0 0.0
  %348 = vmatprep.subr.mxu0 0.0
  %349 = vmatpush2.msra.mxu0 0.0
  %350 = vmatprep.subr.mxu0 0.0
  %351 = vmatpush2.msra.mxu0 0.0
  %352 = vmatprep.subr.mxu0 0.0
  %353 = vmatpush2.msra.mxu0 0.0
  %354 = vmatprep.subr.mxu0 0.0
  %355 = vmatpush2.msra.mxu0 0.0
  %356 = vmatprep.subr.mxu0 0.0
  %357 = vmatpush2.msra.mxu0 0.0
  %358 = vmatprep.subr.mxu0 0.0
  %359 = vmatpush2.msra.mxu0 0.0
  %360 = vmatprep.subr.mxu0 0.0
  %361 = vmatpush2.msra.mxu0 0.0
  %362 = vmatprep.subr.mxu0 0.0
  %363 = vmatpush2.msra.mxu0 0.0
  %364 = vmatprep.subr.mxu0 0.0
  %365 = vmatpush2.msra.mxu0 0.0
  %366 = vmatprep.subr.mxu0 0.0
  %367 = vmatpush2.msra.mxu0 0.0
  %368 = vmatprep.subr.mxu0 0.0
  %369 = vmatpush2.msra.mxu0 0.0
  %370 = vmatprep.mubr.f32.mxu0 0.0
  %371 = vmatmul.mubr.f32.gmra.mxu0 %v304
  %v372 = vpop.f32.mrf.mxu0
  %v373 = vadd.f32 0.0, %v372
  %v374 = vpop.f32.mrf.mxu0
  %375 = vdwg.mxu0
  %v376 = vadd.f32 %v303, %v373
  %v377 = vxor.u32 %v376, 2147483648
  %v378 = vmul.f32 %v377, 1.442695
  %v379 = vpow.pop %v378
  %v380 = vadd.f32 %v379, 1.0
  %v381 = vrcp.pop %v380
  %v382 = vmul.f32 1.0, %v381
  %v383 = vtanh.pop %v376
  %v384 = vmul.f32 %v382, %v291
  %386 = vrot.lane.b32.xlu0 %v383, 32
  %v387 = vpop.permute.xlu0 %386
  %v389 = vmul.f32 %v382, %v387
  %391 = vrot.lane.b32.xlu0 %v389, 32
  %v392 = vpop.permute.xlu0 %391
  %v394 = vadd.f32 %v384, %v392
  %v395 = vtanh.pop %v394
  %397 = vrot.lane.b32.xlu0 %v395, 32
  %v398 = vpop.permute.xlu0 %397
  %v400 = vmul.f32 %v382, %v398
  %402 = vrot.lane.b32.xlu0 %v400, 64
  %v403 = vpop.permute.xlu0 %402
  %405 = vst.msk [vmem:[#allocation3 + $0x8] sm:$0xff] %vm199, %v403
  %v406 = vld [vmem:[#allocation2 + $0x10] sm:$0xff]
  %v407 = vsel %vm199, %v403, 0
  %409 = vmatprep.subr.mxu0 0.0
  %410 = vmatpush1.msra.mxu0 0.0
  %411 = vmatprep.subr.mxu0 0.0
  %412 = vmatpush1.msra.mxu0 0.0
  %413 = vmatprep.subr.mxu0 0.0
  %414 = vmatpush1.msra.mxu0 0.0
  %415 = vmatprep.subr.mxu0 0.0
  %416 = vmatpush1.msra.mxu0 0.0
  %417 = vmatprep.subr.mxu0 0.0
  %418 = vmatpush1.msra.mxu0 0.0
  %419 = vmatprep.subr.mxu0 0.0
  %420 = vmatpush1.msra.mxu0 0.0
  %421 = vmatprep.subr.mxu0 0.0
  %422 = vmatpush1.msra.mxu0 0.0
  %423 = vmatprep.subr.mxu0 0.0
  %424 = vmatpush1.msra.mxu0 0.0
  %425 = vmatprep.subr.mxu0 0.0
  %426 = vmatpush1.msra.mxu0 0.0
  %427 = vmatprep.subr.mxu0 0.0
  %428 = vmatpush1.msra.mxu0 0.0
  %429 = vmatprep.subr.mxu0 0.0
  %430 = vmatpush1.msra.mxu0 0.0
  %431 = vmatprep.subr.mxu0 0.0
  %432 = vmatpush1.msra.mxu0 0.0
  %433 = vmatprep.subr.mxu0 0.0
  %434 = vmatpush1.msra.mxu0 %v44
  %435 = vmatprep.subr.mxu0 0.0
  %436 = vmatpush1.msra.mxu0 %v43
  %437 = vmatprep.subr.mxu0 0.0
  %438 = vmatpush1.msra.mxu0 %v42
  %439 = vmatprep.subr.mxu0 0.0
  %440 = vmatpush1.msra.mxu0 %v41
  %441 = vmatprep.subr.mxu0 0.0
  %442 = vmatpush2.msra.mxu0 0.0
  %443 = vmatprep.subr.mxu0 0.0
  %444 = vmatpush2.msra.mxu0 0.0
  %445 = vmatprep.subr.mxu0 0.0
  %446 = vmatpush2.msra.mxu0 0.0
  %447 = vmatprep.subr.mxu0 0.0
  %448 = vmatpush2.msra.mxu0 0.0
  %449 = vmatprep.subr.mxu0 0.0
  %450 = vmatpush2.msra.mxu0 0.0
  %451 = vmatprep.subr.mxu0 0.0
  %452 = vmatpush2.msra.mxu0 0.0
  %453 = vmatprep.subr.mxu0 0.0
  %454 = vmatpush2.msra.mxu0 0.0
  %455 = vmatprep.subr.mxu0 0.0
  %456 = vmatpush2.msra.mxu0 0.0
  %457 = vmatprep.subr.mxu0 0.0
  %458 = vmatpush2.msra.mxu0 0.0
  %459 = vmatprep.subr.mxu0 0.0
  %460 = vmatpush2.msra.mxu0 0.0
  %461 = vmatprep.subr.mxu0 0.0
  %462 = vmatpush2.msra.mxu0 0.0
  %463 = vmatprep.subr.mxu0 0.0
  %464 = vmatpush2.msra.mxu0 0.0
  %465 = vmatprep.subr.mxu0 0.0
  %466 = vmatpush2.msra.mxu0 0.0
  %467 = vmatprep.subr.mxu0 0.0
  %468 = vmatpush2.msra.mxu0 0.0
  %469 = vmatprep.subr.mxu0 0.0
  %470 = vmatpush2.msra.mxu0 0.0
  %471 = vmatprep.subr.mxu0 0.0
  %472 = vmatpush2.msra.mxu0 0.0
  %473 = vmatprep.mubr.f32.mxu0 0.0
  %474 = vmatmul.mubr.f32.gmra.mxu0 %v407
  %v475 = vpop.f32.mrf.mxu0
  %v476 = vadd.f32 0.0, %v475
  %v477 = vpop.f32.mrf.mxu0
  %478 = vdwg.mxu0
  %v479 = vadd.f32 %v406, %v476
  %v480 = vxor.u32 %v479, 2147483648
  %v481 = vmul.f32 %v480, 1.442695
  %v482 = vpow.pop %v481
  %v483 = vadd.f32 %v482, 1.0
  %v484 = vrcp.pop %v483
  %v485 = vmul.f32 1.0, %v484
  %v486 = vtanh.pop %v479
  %v487 = vmul.f32 %v485, %v394
  %489 = vrot.lane.b32.xlu0 %v486, 32
  %v490 = vpop.permute.xlu0 %489
  %v492 = vmul.f32 %v485, %v490
  %494 = vrot.lane.b32.xlu0 %v492, 32
  %v495 = vpop.permute.xlu0 %494
  %v497 = vadd.f32 %v487, %v495
  %v498 = vtanh.pop %v497
  %500 = vrot.lane.b32.xlu0 %v498, 32
  %v501 = vpop.permute.xlu0 %500
  %v503 = vmul.f32 %v485, %v501
  %505 = vrot.lane.b32.xlu0 %v503, 64
  %v506 = vpop.permute.xlu0 %505
  %508 = vst.msk [vmem:[#allocation3 + $0x10] sm:$0xff] %vm199, %v506
  %v509 = vld [vmem:[#allocation2 + $0x18] sm:$0xff]
  %v510 = vsel %vm199, %v506, 0
  %512 = vmatprep.subr.mxu0 0.0
  %513 = vmatpush1.msra.mxu0 0.0
  %514 = vmatprep.subr.mxu0 0.0
  %515 = vmatpush1.msra.mxu0 0.0
  %516 = vmatprep.subr.mxu0 0.0
  %517 = vmatpush1.msra.mxu0 0.0
  %518 = vmatprep.subr.mxu0 0.0
  %519 = vmatpush1.msra.mxu0 0.0
  %520 = vmatprep.subr.mxu0 0.0
  %521 = vmatpush1.msra.mxu0 0.0
  %522 = vmatprep.subr.mxu0 0.0
  %523 = vmatpush1.msra.mxu0 0.0
  %524 = vmatprep.subr.mxu0 0.0
  %525 = vmatpush1.msra.mxu0 0.0
  %526 = vmatprep.subr.mxu0 0.0
  %527 = vmatpush1.msra.mxu0 0.0
  %528 = vmatprep.subr.mxu0 0.0
  %529 = vmatpush1.msra.mxu0 0.0
  %530 = vmatprep.subr.mxu0 0.0
  %531 = vmatpush1.msra.mxu0 0.0
  %532 = vmatprep.subr.mxu0 0.0
  %533 = vmatpush1.msra.mxu0 0.0
  %534 = vmatprep.subr.mxu0 0.0
  %535 = vmatpush1.msra.mxu0 0.0
  %536 = vmatprep.subr.mxu0 0.0
  %537 = vmatpush1.msra.mxu0 %v44
  %538 = vmatprep.subr.mxu0 0.0
  %539 = vmatpush1.msra.mxu0 %v43
  %540 = vmatprep.subr.mxu0 0.0
  %541 = vmatpush1.msra.mxu0 %v42
  %542 = vmatprep.subr.mxu0 0.0
  %543 = vmatpush1.msra.mxu0 %v41
  %544 = vmatprep.subr.mxu0 0.0
  %545 = vmatpush2.msra.mxu0 0.0
  %546 = vmatprep.subr.mxu0 0.0
  %547 = vmatpush2.msra.mxu0 0.0
  %548 = vmatprep.subr.mxu0 0.0
  %549 = vmatpush2.msra.mxu0 0.0
  %550 = vmatprep.subr.mxu0 0.0
  %551 = vmatpush2.msra.mxu0 0.0
  %552 = vmatprep.subr.mxu0 0.0
  %553 = vmatpush2.msra.mxu0 0.0
  %554 = vmatprep.subr.mxu0 0.0
  %555 = vmatpush2.msra.mxu0 0.0
  %556 = vmatprep.subr.mxu0 0.0
  %557 = vmatpush2.msra.mxu0 0.0
  %558 = vmatprep.subr.mxu0 0.0
  %559 = vmatpush2.msra.mxu0 0.0
  %560 = vmatprep.subr.mxu0 0.0
  %561 = vmatpush2.msra.mxu0 0.0
  %562 = vmatprep.subr.mxu0 0.0
  %563 = vmatpush2.msra.mxu0 0.0
  %564 = vmatprep.subr.mxu0 0.0
  %565 = vmatpush2.msra.mxu0 0.0
  %566 = vmatprep.subr.mxu0 0.0
  %567 = vmatpush2.msra.mxu0 0.0
  %568 = vmatprep.subr.mxu0 0.0
  %569 = vmatpush2.msra.mxu0 0.0
  %570 = vmatprep.subr.mxu0 0.0
  %571 = vmatpush2.msra.mxu0 0.0
  %572 = vmatprep.subr.mxu0 0.0
  %573 = vmatpush2.msra.mxu0 0.0
  %574 = vmatprep.subr.mxu0 0.0
  %575 = vmatpush2.msra.mxu0 0.0
  %576 = vmatprep.mubr.f32.mxu0 0.0
  %577 = vmatmul.mubr.f32.gmra.mxu0 %v510
  %v578 = vpop.f32.mrf.mxu0
  %v579 = vadd.f32 0.0, %v578
  %v580 = vpop.f32.mrf.mxu0
  %581 = vdwg.mxu0
  %v582 = vadd.f32 %v509, %v579
  %v583 = vxor.u32 %v582, 2147483648
  %v584 = vmul.f32 %v583, 1.442695
  %v585 = vpow.pop %v584
  %v586 = vadd.f32 %v585, 1.0
  %v587 = vrcp.pop %v586
  %v588 = vmul.f32 1.0, %v587
  %v589 = vtanh.pop %v582
  %v590 = vmul.f32 %v588, %v497
  %592 = vrot.lane.b32.xlu0 %v589, 32
  %v593 = vpop.permute.xlu0 %592
  %v595 = vmul.f32 %v588, %v593
  %597 = vrot.lane.b32.xlu0 %v595, 32
  %v598 = vpop.permute.xlu0 %597
  %v600 = vadd.f32 %v590, %v598
  %v601 = vtanh.pop %v600
  %603 = vrot.lane.b32.xlu0 %v601, 32
  %v604 = vpop.permute.xlu0 %603
  %v606 = vmul.f32 %v588, %v604
  %608 = vrot.lane.b32.xlu0 %v606, 64
  %v609 = vpop.permute.xlu0 %608
  %611 = vst.msk [vmem:[#allocation3 + $0x18] sm:$0xff] %vm199, %v609
  %v612 = vld [vmem:[#allocation2 + $0x20] sm:$0xff]
  %v613 = vsel %vm199, %v609, 0
  %615 = vmatprep.subr.mxu0 0.0
  %616 = vmatpush1.msra.mxu0 0.0
  %617 = vmatprep.subr.mxu0 0.0
  %618 = vmatpush1.msra.mxu0 0.0
  %619 = vmatprep.subr.mxu0 0.0
  %620 = vmatpush1.msra.mxu0 0.0
  %621 = vmatprep.subr.mxu0 0.0
  %622 = vmatpush1.msra.mxu0 0.0
  %623 = vmatprep.subr.mxu0 0.0
  %624 = vmatpush1.msra.mxu0 0.0
  %625 = vmatprep.subr.mxu0 0.0
  %626 = vmatpush1.msra.mxu0 0.0
  %627 = vmatprep.subr.mxu0 0.0
  %628 = vmatpush1.msra.mxu0 0.0
  %629 = vmatprep.subr.mxu0 0.0
  %630 = vmatpush1.msra.mxu0 0.0
  %631 = vmatprep.subr.mxu0 0.0
  %632 = vmatpush1.msra.mxu0 0.0
  %633 = vmatprep.subr.mxu0 0.0
  %634 = vmatpush1.msra.mxu0 0.0
  %635 = vmatprep.subr.mxu0 0.0
  %636 = vmatpush1.msra.mxu0 0.0
  %637 = vmatprep.subr.mxu0 0.0
  %638 = vmatpush1.msra.mxu0 0.0
  %639 = vmatprep.subr.mxu0 0.0
  %640 = vmatpush1.msra.mxu0 %v44
  %641 = vmatprep.subr.mxu0 0.0
  %642 = vmatpush1.msra.mxu0 %v43
  %643 = vmatprep.subr.mxu0 0.0
  %644 = vmatpush1.msra.mxu0 %v42
  %645 = vmatprep.subr.mxu0 0.0
  %646 = vmatpush1.msra.mxu0 %v41
  %647 = vmatprep.subr.mxu0 0.0
  %648 = vmatpush2.msra.mxu0 0.0
  %649 = vmatprep.subr.mxu0 0.0
  %650 = vmatpush2.msra.mxu0 0.0
  %651 = vmatprep.subr.mxu0 0.0
  %652 = vmatpush2.msra.mxu0 0.0
  %653 = vmatprep.subr.mxu0 0.0
  %654 = vmatpush2.msra.mxu0 0.0
  %655 = vmatprep.subr.mxu0 0.0
  %656 = vmatpush2.msra.mxu0 0.0
  %657 = vmatprep.subr.mxu0 0.0
  %658 = vmatpush2.msra.mxu0 0.0
  %659 = vmatprep.subr.mxu0 0.0
  %660 = vmatpush2.msra.mxu0 0.0
  %661 = vmatprep.subr.mxu0 0.0
  %662 = vmatpush2.msra.mxu0 0.0
  %663 = vmatprep.subr.mxu0 0.0
  %664 = vmatpush2.msra.mxu0 0.0
  %665 = vmatprep.subr.mxu0 0.0
  %666 = vmatpush2.msra.mxu0 0.0
  %667 = vmatprep.subr.mxu0 0.0
  %668 = vmatpush2.msra.mxu0 0.0
  %669 = vmatprep.subr.mxu0 0.0
  %670 = vmatpush2.msra.mxu0 0.0
  %671 = vmatprep.subr.mxu0 0.0
  %672 = vmatpush2.msra.mxu0 0.0
  %673 = vmatprep.subr.mxu0 0.0
  %674 = vmatpush2.msra.mxu0 0.0
  %675 = vmatprep.subr.mxu0 0.0
  %676 = vmatpush2.msra.mxu0 0.0
  %677 = vmatprep.subr.mxu0 0.0
  %678 = vmatpush2.msra.mxu0 0.0
  %679 = vmatprep.mubr.f32.mxu0 0.0
  %680 = vmatmul.mubr.f32.gmra.mxu0 %v613
  %v681 = vpop.f32.mrf.mxu0
  %v682 = vadd.f32 0.0, %v681
  %v683 = vpop.f32.mrf.mxu0
  %684 = vdwg.mxu0
  %v685 = vadd.f32 %v612, %v682
  %v686 = vxor.u32 %v685, 2147483648
  %v687 = vmul.f32 %v686, 1.442695
  %v688 = vpow.pop %v687
  %v689 = vadd.f32 %v688, 1.0
  %v690 = vrcp.pop %v689
  %v691 = vmul.f32 1.0, %v690
  %v692 = vtanh.pop %v685
  %v693 = vmul.f32 %v691, %v600
  %695 = vrot.lane.b32.xlu0 %v692, 32
  %v696 = vpop.permute.xlu0 %695
  %v698 = vmul.f32 %v691, %v696
  %700 = vrot.lane.b32.xlu0 %v698, 32
  %v701 = vpop.permute.xlu0 %700
  %v703 = vadd.f32 %v693, %v701
  %v704 = vtanh.pop %v703
  %706 = vrot.lane.b32.xlu0 %v704, 32
  %v707 = vpop.permute.xlu0 %706
  %v709 = vmul.f32 %v691, %v707
  %711 = vrot.lane.b32.xlu0 %v709, 64
  %v712 = vpop.permute.xlu0 %711
  %714 = vst.msk [vmem:[#allocation3 + $0x20] sm:$0xff] %vm199, %v712
  %v715 = vld [vmem:[#allocation2 + $0x28] sm:$0xff]
  %v716 = vsel %vm199, %v712, 0
  %718 = vmatprep.subr.mxu0 0.0
  %719 = vmatpush1.msra.mxu0 0.0
  %720 = vmatprep.subr.mxu0 0.0
  %721 = vmatpush1.msra.mxu0 0.0
  %722 = vmatprep.subr.mxu0 0.0
  %723 = vmatpush1.msra.mxu0 0.0
  %724 = vmatprep.subr.mxu0 0.0
  %725 = vmatpush1.msra.mxu0 0.0
  %726 = vmatprep.subr.mxu0 0.0
  %727 = vmatpush1.msra.mxu0 0.0
  %728 = vmatprep.subr.mxu0 0.0
  %729 = vmatpush1.msra.mxu0 0.0
  %730 = vmatprep.subr.mxu0 0.0
  %731 = vmatpush1.msra.mxu0 0.0
  %732 = vmatprep.subr.mxu0 0.0
  %733 = vmatpush1.msra.mxu0 0.0
  %734 = vmatprep.subr.mxu0 0.0
  %735 = vmatpush1.msra.mxu0 0.0
  %736 = vmatprep.subr.mxu0 0.0
  %737 = vmatpush1.msra.mxu0 0.0
  %738 = vmatprep.subr.mxu0 0.0
  %739 = vmatpush1.msra.mxu0 0.0
  %740 = vmatprep.subr.mxu0 0.0
  %741 = vmatpush1.msra.mxu0 0.0
  %742 = vmatprep.subr.mxu0 0.0
  %743 = vmatpush1.msra.mxu0 %v44
  %744 = vmatprep.subr.mxu0 0.0
  %745 = vmatpush1.msra.mxu0 %v43
  %746 = vmatprep.subr.mxu0 0.0
  %747 = vmatpush1.msra.mxu0 %v42
  %748 = vmatprep.subr.mxu0 0.0
  %749 = vmatpush1.msra.mxu0 %v41
  %750 = vmatprep.subr.mxu0 0.0
  %751 = vmatpush2.msra.mxu0 0.0
  %752 = vmatprep.subr.mxu0 0.0
  %753 = vmatpush2.msra.mxu0 0.0
  %754 = vmatprep.subr.mxu0 0.0
  %755 = vmatpush2.msra.mxu0 0.0
  %756 = vmatprep.subr.mxu0 0.0
  %757 = vmatpush2.msra.mxu0 0.0
  %758 = vmatprep.subr.mxu0 0.0
  %759 = vmatpush2.msra.mxu0 0.0
  %760 = vmatprep.subr.mxu0 0.0
  %761 = vmatpush2.msra.mxu0 0.0
  %762 = vmatprep.subr.mxu0 0.0
  %763 = vmatpush2.msra.mxu0 0.0
  %764 = vmatprep.subr.mxu0 0.0
  %765 = vmatpush2.msra.mxu0 0.0
  %766 = vmatprep.subr.mxu0 0.0
  %767 = vmatpush2.msra.mxu0 0.0
  %768 = vmatprep.subr.mxu0 0.0
  %769 = vmatpush2.msra.mxu0 0.0
  %770 = vmatprep.subr.mxu0 0.0
  %771 = vmatpush2.msra.mxu0 0.0
  %772 = vmatprep.subr.mxu0 0.0
  %773 = vmatpush2.msra.mxu0 0.0
  %774 = vmatprep.subr.mxu0 0.0
  %775 = vmatpush2.msra.mxu0 0.0
  %776 = vmatprep.subr.mxu0 0.0
  %777 = vmatpush2.msra.mxu0 0.0
  %778 = vmatprep.subr.mxu0 0.0
  %779 = vmatpush2.msra.mxu0 0.0
  %780 = vmatprep.subr.mxu0 0.0
  %781 = vmatpush2.msra.mxu0 0.0
  %782 = vmatprep.mubr.f32.mxu0 0.0
  %783 = vmatmul.mubr.f32.gmra.mxu0 %v716
  %v784 = vpop.f32.mrf.mxu0
  %v785 = vadd.f32 0.0, %v784
  %v786 = vpop.f32.mrf.mxu0
  %787 = vdwg.mxu0
  %v788 = vadd.f32 %v715, %v785
  %v789 = vxor.u32 %v788, 2147483648
  %v790 = vmul.f32 %v789, 1.442695
  %v791 = vpow.pop %v790
  %v792 = vadd.f32 %v791, 1.0
  %v793 = vrcp.pop %v792
  %v794 = vmul.f32 1.0, %v793
  %v795 = vtanh.pop %v788
  %v796 = vmul.f32 %v794, %v703
  %798 = vrot.lane.b32.xlu0 %v795, 32
  %v799 = vpop.permute.xlu0 %798
  %v801 = vmul.f32 %v794, %v799
  %803 = vrot.lane.b32.xlu0 %v801, 32
  %v804 = vpop.permute.xlu0 %803
  %v806 = vadd.f32 %v796, %v804
  %v807 = vtanh.pop %v806
  %809 = vrot.lane.b32.xlu0 %v807, 32
  %v810 = vpop.permute.xlu0 %809
  %v812 = vmul.f32 %v794, %v810
  %814 = vrot.lane.b32.xlu0 %v812, 64
  %v815 = vpop.permute.xlu0 %814
  %817 = vst.msk [vmem:[#allocation3 + $0x28] sm:$0xff] %vm199, %v815
  %v818 = vld [vmem:[#allocation2 + $0x30] sm:$0xff]
  %v819 = vsel %vm199, %v815, 0
  %821 = vmatprep.subr.mxu0 0.0
  %822 = vmatpush1.msra.mxu0 0.0
  %823 = vmatprep.subr.mxu0 0.0
  %824 = vmatpush1.msra.mxu0 0.0
  %825 = vmatprep.subr.mxu0 0.0
  %826 = vmatpush1.msra.mxu0 0.0
  %827 = vmatprep.subr.mxu0 0.0
  %828 = vmatpush1.msra.mxu0 0.0
  %829 = vmatprep.subr.mxu0 0.0
  %830 = vmatpush1.msra.mxu0 0.0
  %831 = vmatprep.subr.mxu0 0.0
  %832 = vmatpush1.msra.mxu0 0.0
  %833 = vmatprep.subr.mxu0 0.0
  %834 = vmatpush1.msra.mxu0 0.0
  %835 = vmatprep.subr.mxu0 0.0
  %836 = vmatpush1.msra.mxu0 0.0
  %837 = vmatprep.subr.mxu0 0.0
  %838 = vmatpush1.msra.mxu0 0.0
  %839 = vmatprep.subr.mxu0 0.0
  %840 = vmatpush1.msra.mxu0 0.0
  %841 = vmatprep.subr.mxu0 0.0
  %842 = vmatpush1.msra.mxu0 0.0
  %843 = vmatprep.subr.mxu0 0.0
  %844 = vmatpush1.msra.mxu0 0.0
  %845 = vmatprep.subr.mxu0 0.0
  %846 = vmatpush1.msra.mxu0 %v44
  %847 = vmatprep.subr.mxu0 0.0
  %848 = vmatpush1.msra.mxu0 %v43
  %849 = vmatprep.subr.mxu0 0.0
  %850 = vmatpush1.msra.mxu0 %v42
  %851 = vmatprep.subr.mxu0 0.0
  %852 = vmatpush1.msra.mxu0 %v41
  %853 = vmatprep.subr.mxu0 0.0
  %854 = vmatpush2.msra.mxu0 0.0
  %855 = vmatprep.subr.mxu0 0.0
  %856 = vmatpush2.msra.mxu0 0.0
  %857 = vmatprep.subr.mxu0 0.0
  %858 = vmatpush2.msra.mxu0 0.0
  %859 = vmatprep.subr.mxu0 0.0
  %860 = vmatpush2.msra.mxu0 0.0
  %861 = vmatprep.subr.mxu0 0.0
  %862 = vmatpush2.msra.mxu0 0.0
  %863 = vmatprep.subr.mxu0 0.0
  %864 = vmatpush2.msra.mxu0 0.0
  %865 = vmatprep.subr.mxu0 0.0
  %866 = vmatpush2.msra.mxu0 0.0
  %867 = vmatprep.subr.mxu0 0.0
  %868 = vmatpush2.msra.mxu0 0.0
  %869 = vmatprep.subr.mxu0 0.0
  %870 = vmatpush2.msra.mxu0 0.0
  %871 = vmatprep.subr.mxu0 0.0
  %872 = vmatpush2.msra.mxu0 0.0
  %873 = vmatprep.subr.mxu0 0.0
  %874 = vmatpush2.msra.mxu0 0.0
  %875 = vmatprep.subr.mxu0 0.0
  %876 = vmatpush2.msra.mxu0 0.0
  %877 = vmatprep.subr.mxu0 0.0
  %878 = vmatpush2.msra.mxu0 0.0
  %879 = vmatprep.subr.mxu0 0.0
  %880 = vmatpush2.msra.mxu0 0.0
  %881 = vmatprep.subr.mxu0 0.0
  %882 = vmatpush2.msra.mxu0 0.0
  %883 = vmatprep.subr.mxu0 0.0
  %884 = vmatpush2.msra.mxu0 0.0
  %885 = vmatprep.mubr.f32.mxu0 0.0
  %886 = vmatmul.mubr.f32.gmra.mxu0 %v819
  %v887 = vpop.f32.mrf.mxu0
  %v888 = vadd.f32 0.0, %v887
  %v889 = vpop.f32.mrf.mxu0
  %890 = vdwg.mxu0
  %v891 = vadd.f32 %v818, %v888
  %v892 = vxor.u32 %v891, 2147483648
  %v893 = vmul.f32 %v892, 1.442695
  %v894 = vpow.pop %v893
  %v895 = vadd.f32 %v894, 1.0
  %v896 = vrcp.pop %v895
  %v897 = vmul.f32 1.0, %v896
  %v898 = vtanh.pop %v891
  %v899 = vmul.f32 %v897, %v806
  %901 = vrot.lane.b32.xlu0 %v898, 32
  %v902 = vpop.permute.xlu0 %901
  %v904 = vmul.f32 %v897, %v902
  %906 = vrot.lane.b32.xlu0 %v904, 32
  %v907 = vpop.permute.xlu0 %906
  %v909 = vadd.f32 %v899, %v907
  %v910 = vtanh.pop %v909
  %912 = vrot.lane.b32.xlu0 %v910, 32
  %v913 = vpop.permute.xlu0 %912
  %v915 = vmul.f32 %v897, %v913
  %917 = vrot.lane.b32.xlu0 %v915, 64
  %v918 = vpop.permute.xlu0 %917
  %920 = vst.msk [vmem:[#allocation3 + $0x30] sm:$0xff] %vm199, %v918
  %v921 = vld [vmem:[#allocation2 + $0x38] sm:$0xff]
  %v922 = vsel %vm199, %v918, 0
  %924 = vmatprep.subr.mxu0 0.0
  %925 = vmatpush1.msra.mxu0 0.0
  %926 = vmatprep.subr.mxu0 0.0
  %927 = vmatpush1.msra.mxu0 0.0
  %928 = vmatprep.subr.mxu0 0.0
  %929 = vmatpush1.msra.mxu0 0.0
  %930 = vmatprep.subr.mxu0 0.0
  %931 = vmatpush1.msra.mxu0 0.0
  %932 = vmatprep.subr.mxu0 0.0
  %933 = vmatpush1.msra.mxu0 0.0
  %934 = vmatprep.subr.mxu0 0.0
  %935 = vmatpush1.msra.mxu0 0.0
  %936 = vmatprep.subr.mxu0 0.0
  %937 = vmatpush1.msra.mxu0 0.0
  %938 = vmatprep.subr.mxu0 0.0
  %939 = vmatpush1.msra.mxu0 0.0
  %940 = vmatprep.subr.mxu0 0.0
  %941 = vmatpush1.msra.mxu0 0.0
  %942 = vmatprep.subr.mxu0 0.0
  %943 = vmatpush1.msra.mxu0 0.0
  %944 = vmatprep.subr.mxu0 0.0
  %945 = vmatpush1.msra.mxu0 0.0
  %946 = vmatprep.subr.mxu0 0.0
  %947 = vmatpush1.msra.mxu0 0.0
  %948 = vmatprep.subr.mxu0 0.0
  %949 = vmatpush1.msra.mxu0 %v44
  %950 = vmatprep.subr.mxu0 0.0
  %951 = vmatpush1.msra.mxu0 %v43
  %952 = vmatprep.subr.mxu0 0.0
  %953 = vmatpush1.msra.mxu0 %v42
  %954 = vmatprep.subr.mxu0 0.0
  %955 = vmatpush1.msra.mxu0 %v41
  %956 = vmatprep.subr.mxu0 0.0
  %957 = vmatpush2.msra.mxu0 0.0
  %958 = vmatprep.subr.mxu0 0.0
  %959 = vmatpush2.msra.mxu0 0.0
  %960 = vmatprep.subr.mxu0 0.0
  %961 = vmatpush2.msra.mxu0 0.0
  %962 = vmatprep.subr.mxu0 0.0
  %963 = vmatpush2.msra.mxu0 0.0
  %964 = vmatprep.subr.mxu0 0.0
  %965 = vmatpush2.msra.mxu0 0.0
  %966 = vmatprep.subr.mxu0 0.0
  %967 = vmatpush2.msra.mxu0 0.0
  %968 = vmatprep.subr.mxu0 0.0
  %969 = vmatpush2.msra.mxu0 0.0
  %970 = vmatprep.subr.mxu0 0.0
  %971 = vmatpush2.msra.mxu0 0.0
  %972 = vmatprep.subr.mxu0 0.0
  %973 = vmatpush2.msra.mxu0 0.0
  %974 = vmatprep.subr.mxu0 0.0
  %975 = vmatpush2.msra.mxu0 0.0
  %976 = vmatprep.subr.mxu0 0.0
  %977 = vmatpush2.msra.mxu0 0.0
  %978 = vmatprep.subr.mxu0 0.0
  %979 = vmatpush2.msra.mxu0 0.0
  %980 = vmatprep.subr.mxu0 0.0
  %981 = vmatpush2.msra.mxu0 0.0
  %982 = vmatprep.subr.mxu0 0.0
  %983 = vmatpush2.msra.mxu0 0.0
  %984 = vmatprep.subr.mxu0 0.0
  %985 = vmatpush2.msra.mxu0 0.0
  %986 = vmatprep.subr.mxu0 0.0
  %987 = vmatpush2.msra.mxu0 0.0
  %988 = vmatprep.mubr.f32.mxu0 0.0
  %989 = vmatmul.mubr.f32.gmra.mxu0 %v922
  %v990 = vpop.f32.mrf.mxu0
  %v991 = vadd.f32 0.0, %v990
  %v992 = vpop.f32.mrf.mxu0
  %993 = vdwg.mxu0
  %v994 = vadd.f32 %v921, %v991
  %v995 = vxor.u32 %v994, 2147483648
  %v996 = vmul.f32 %v995, 1.442695
  %v997 = vpow.pop %v996
  %v998 = vadd.f32 %v997, 1.0
  %v999 = vrcp.pop %v998
  %v1000 = vmul.f32 1.0, %v999
  %v1001 = vtanh.pop %v994
  %v1002 = vmul.f32 %v1000, %v909
  %1004 = vrot.lane.b32.xlu0 %v1001, 32
  %v1005 = vpop.permute.xlu0 %1004
  %v1007 = vmul.f32 %v1000, %v1005
  %1009 = vrot.lane.b32.xlu0 %v1007, 32
  %v1010 = vpop.permute.xlu0 %1009
  %v1012 = vadd.f32 %v1002, %v1010
  %v1013 = vtanh.pop %v1012
  %1015 = vrot.lane.b32.xlu0 %v1013, 32
  %v1016 = vpop.permute.xlu0 %1015
  %v1018 = vmul.f32 %v1000, %v1016
  %1020 = vrot.lane.b32.xlu0 %v1018, 64
  %v1021 = vpop.permute.xlu0 %1020
  %1023 = vst.msk [vmem:[#allocation3 + $0x38] sm:$0xff] %vm199, %v1021
  %v1024 = vld [vmem:[%s4] sm:$0xff]
  %v1025 = vld [vmem:[%s4 + $0x8] sm:$0xff]
  %v1026 = vld [vmem:[%s4 + $0x10] sm:$0xff]
  %v1027 = vld [vmem:[%s4 + $0x18] sm:$0xff]
  %v1028 = vld [vmem:[%s5] sm:$0xff]
  %v1029 = vld [vmem:[%s5 + $0x8] sm:$0xff]
  %v1030 = vld [vmem:[%s5 + $0x10] sm:$0xff]
  %v1031 = vld [vmem:[%s5 + $0x18] sm:$0xff]
  %v1032 = vld [vmem:[%s6] sm:$0x1]
  %v1033 = vld [vmem:[#allocation3] sm:$0xff]
  %v1034 = vld [vmem:[#allocation3 + $0x8] sm:$0xff]
  %v1035 = vld [vmem:[#allocation3 + $0x10] sm:$0xff]
  %v1036 = vld [vmem:[#allocation3 + $0x18] sm:$0xff]
  %v1037 = vld [vmem:[#allocation3 + $0x20] sm:$0xff]
  %v1038 = vld [vmem:[#allocation3 + $0x28] sm:$0xff]
  %v1039 = vld [vmem:[#allocation3 + $0x30] sm:$0xff]
  %v1040 = vld [vmem:[#allocation3 + $0x38] sm:$0xff]
  %v1042 = vlaneseq
  %v1043 = vshrl.u32 %v1042, 7
  %v1044 = vsub.s32 0, %v1043
  %v1045 = vrot.slane %v1032, %v1044
  %v1048 = vsel %vm199, %v1033, 0
  %v1051 = vsel %vm199, %v1034, 0
  %v1054 = vsel %vm199, %v1035, 0
  %v1057 = vsel %vm199, %v1036, 0
  %v1060 = vsel %vm199, %v1037, 0
  %v1063 = vsel %vm199, %v1038, 0
  %v1066 = vsel %vm199, %v1039, 0
  %v1069 = vsel %vm199, %v1040, 0
  %1071 = vmatprep.subr.mxu0 0.0
  %1072 = vmatpush1.msra.mxu0 0.0
  %1073 = vmatprep.subr.mxu0 0.0
  %1074 = vmatpush1.msra.mxu0 0.0
  %1075 = vmatprep.subr.mxu0 0.0
  %1076 = vmatpush1.msra.mxu0 0.0
  %1077 = vmatprep.subr.mxu0 0.0
  %1078 = vmatpush1.msra.mxu0 0.0
  %1079 = vmatprep.subr.mxu0 0.0
  %1080 = vmatpush1.msra.mxu0 0.0
  %1081 = vmatprep.subr.mxu0 0.0
  %1082 = vmatpush1.msra.mxu0 0.0
  %1083 = vmatprep.subr.mxu0 0.0
  %1084 = vmatpush1.msra.mxu0 0.0
  %1085 = vmatprep.subr.mxu0 0.0
  %1086 = vmatpush1.msra.mxu0 0.0
  %1087 = vmatprep.subr.mxu0 0.0
  %1088 = vmatpush1.msra.mxu0 0.0
  %1089 = vmatprep.subr.mxu0 0.0
  %1090 = vmatpush1.msra.mxu0 0.0
  %1091 = vmatprep.subr.mxu0 0.0
  %1092 = vmatpush1.msra.mxu0 0.0
  %1093 = vmatprep.subr.mxu0 0.0
  %1094 = vmatpush1.msra.mxu0 0.0
  %1095 = vmatprep.subr.mxu0 0.0
  %1096 = vmatpush1.msra.mxu0 %v1027
  %1097 = vmatprep.subr.mxu0 0.0
  %1098 = vmatpush1.msra.mxu0 %v1026
  %1099 = vmatprep.subr.mxu0 0.0
  %1100 = vmatpush1.msra.mxu0 %v1025
  %1101 = vmatprep.subr.mxu0 0.0
  %1102 = vmatpush1.msra.mxu0 %v1024
  %1103 = vmatprep.subr.mxu0 0.0
  %1104 = vmatpush2.msra.mxu0 0.0
  %1105 = vmatprep.subr.mxu0 0.0
  %1106 = vmatpush2.msra.mxu0 0.0
  %1107 = vmatprep.subr.mxu0 0.0
  %1108 = vmatpush2.msra.mxu0 0.0
  %1109 = vmatprep.subr.mxu0 0.0
  %1110 = vmatpush2.msra.mxu0 0.0
  %1111 = vmatprep.subr.mxu0 0.0
  %1112 = vmatpush2.msra.mxu0 0.0
  %1113 = vmatprep.subr.mxu0 0.0
  %1114 = vmatpush2.msra.mxu0 0.0
  %1115 = vmatprep.subr.mxu0 0.0
  %1116 = vmatpush2.msra.mxu0 0.0
  %1117 = vmatprep.subr.mxu0 0.0
  %1118 = vmatpush2.msra.mxu0 0.0
  %1119 = vmatprep.subr.mxu0 0.0
  %1120 = vmatpush2.msra.mxu0 0.0
  %1121 = vmatprep.subr.mxu0 0.0
  %1122 = vmatpush2.msra.mxu0 0.0
  %1123 = vmatprep.subr.mxu0 0.0
  %1124 = vmatpush2.msra.mxu0 0.0
  %1125 = vmatprep.subr.mxu0 0.0
  %1126 = vmatpush2.msra.mxu0 0.0
  %1127 = vmatprep.subr.mxu0 0.0
  %1128 = vmatpush2.msra.mxu0 0.0
  %1129 = vmatprep.subr.mxu0 0.0
  %1130 = vmatpush2.msra.mxu0 0.0
  %1131 = vmatprep.subr.mxu0 0.0
  %1132 = vmatpush2.msra.mxu0 0.0
  %1133 = vmatprep.subr.mxu0 0.0
  %1134 = vmatpush2.msra.mxu0 0.0
  %1135 = vmatprep.mubr.f32.mxu0 0.0
  %1136 = vmatmul.mubr.f32.gmra.mxu0 %v1048
  %v1137 = vpop.f32.mrf.mxu0
  %v1138 = vadd.f32 %v1045, %v1137
  %v1139 = vpop.f32.mrf.mxu0
  %1140 = vmatprep.mubr.f32.mxu0 0.0
  %1141 = vmatmul.mubr.f32.gmra.mxu0 %v1051
  %v1142 = vpop.f32.mrf.mxu0
  %v1143 = vadd.f32 %v1045, %v1142
  %v1144 = vpop.f32.mrf.mxu0
  %1145 = vmatprep.mubr.f32.mxu0 0.0
  %1146 = vmatmul.mubr.f32.gmra.mxu0 %v1054
  %v1147 = vpop.f32.mrf.mxu0
  %v1148 = vadd.f32 %v1045, %v1147
  %v1149 = vpop.f32.mrf.mxu0
  %1150 = vmatprep.mubr.f32.mxu0 0.0
  %1151 = vmatmul.mubr.f32.gmra.mxu0 %v1057
  %v1152 = vpop.f32.mrf.mxu0
  %v1153 = vadd.f32 %v1045, %v1152
  %v1154 = vpop.f32.mrf.mxu0
  %1155 = vmatprep.mubr.f32.mxu0 0.0
  %1156 = vmatmul.mubr.f32.gmra.mxu0 %v1060
  %v1157 = vpop.f32.mrf.mxu0
  %v1158 = vadd.f32 %v1045, %v1157
  %v1159 = vpop.f32.mrf.mxu0
  %1160 = vmatprep.mubr.f32.mxu0 0.0
  %1161 = vmatmul.mubr.f32.gmra.mxu0 %v1063
  %v1162 = vpop.f32.mrf.mxu0
  %v1163 = vadd.f32 %v1045, %v1162
  %v1164 = vpop.f32.mrf.mxu0
  %1165 = vmatprep.mubr.f32.mxu0 0.0
  %1166 = vmatmul.mubr.f32.gmra.mxu0 %v1066
  %v1167 = vpop.f32.mrf.mxu0
  %v1168 = vadd.f32 %v1045, %v1167
  %v1169 = vpop.f32.mrf.mxu0
  %1170 = vmatprep.mubr.f32.mxu0 0.0
  %1171 = vmatmul.mubr.f32.gmra.mxu0 %v1069
  %v1172 = vpop.f32.mrf.mxu0
  %v1173 = vadd.f32 %v1045, %v1172
  %v1174 = vpop.f32.mrf.mxu0
  %1175 = vdwg.mxu0
  %1176 = vst [vmem:[#allocation2] sm:$0xff] %v1138
  %1177 = vst [vmem:[#allocation2 + $0x8] sm:$0xff] %v1143
  %1178 = vst [vmem:[#allocation2 + $0x10] sm:$0xff] %v1148
  %1179 = vst [vmem:[#allocation2 + $0x18] sm:$0xff] %v1153
  %1180 = vst [vmem:[#allocation2 + $0x20] sm:$0xff] %v1158
  %1181 = vst [vmem:[#allocation2 + $0x28] sm:$0xff] %v1163
  %1182 = vst [vmem:[#allocation2 + $0x30] sm:$0xff] %v1168
  %1183 = vst [vmem:[#allocation2 + $0x38] sm:$0xff] %v1173
  %v1184 = vld [vmem:[#allocation2] sm:$0xff]
  %1185 = vmatprep.subr.mxu0 0.0
  %1186 = vmatpush1.msra.mxu0 0.0
  %1187 = vmatprep.subr.mxu0 0.0
  %1188 = vmatpush1.msra.mxu0 0.0
  %1189 = vmatprep.subr.mxu0 0.0
  %1190 = vmatpush1.msra.mxu0 0.0
  %1191 = vmatprep.subr.mxu0 0.0
  %1192 = vmatpush1.msra.mxu0 0.0
  %1193 = vmatprep.subr.mxu0 0.0
  %1194 = vmatpush1.msra.mxu0 0.0
  %1195 = vmatprep.subr.mxu0 0.0
  %1196 = vmatpush1.msra.mxu0 0.0
  %1197 = vmatprep.subr.mxu0 0.0
  %1198 = vmatpush1.msra.mxu0 0.0
  %1199 = vmatprep.subr.mxu0 0.0
  %1200 = vmatpush1.msra.mxu0 0.0
  %1201 = vmatprep.subr.mxu0 0.0
  %1202 = vmatpush1.msra.mxu0 0.0
  %1203 = vmatprep.subr.mxu0 0.0
  %1204 = vmatpush1.msra.mxu0 0.0
  %1205 = vmatprep.subr.mxu0 0.0
  %1206 = vmatpush1.msra.mxu0 0.0
  %1207 = vmatprep.subr.mxu0 0.0
  %1208 = vmatpush1.msra.mxu0 0.0
  %1209 = vmatprep.subr.mxu0 0.0
  %1210 = vmatpush1.msra.mxu0 %v1031
  %1211 = vmatprep.subr.mxu0 0.0
  %1212 = vmatpush1.msra.mxu0 %v1030
  %1213 = vmatprep.subr.mxu0 0.0
  %1214 = vmatpush1.msra.mxu0 %v1029
  %1215 = vmatprep.subr.mxu0 0.0
  %1216 = vmatpush1.msra.mxu0 %v1028
  %1217 = vmatprep.subr.mxu0 0.0
  %1218 = vmatpush2.msra.mxu0 0.0
  %1219 = vmatprep.subr.mxu0 0.0
  %1220 = vmatpush2.msra.mxu0 0.0
  %1221 = vmatprep.subr.mxu0 0.0
  %1222 = vmatpush2.msra.mxu0 0.0
  %1223 = vmatprep.subr.mxu0 0.0
  %1224 = vmatpush2.msra.mxu0 0.0
  %1225 = vmatprep.subr.mxu0 0.0
  %1226 = vmatpush2.msra.mxu0 0.0
  %1227 = vmatprep.subr.mxu0 0.0
  %1228 = vmatpush2.msra.mxu0 0.0
  %1229 = vmatprep.subr.mxu0 0.0
  %1230 = vmatpush2.msra.mxu0 0.0
  %1231 = vmatprep.subr.mxu0 0.0
  %1232 = vmatpush2.msra.mxu0 0.0
  %1233 = vmatprep.subr.mxu0 0.0
  %1234 = vmatpush2.msra.mxu0 0.0
  %1235 = vmatprep.subr.mxu0 0.0
  %1236 = vmatpush2.msra.mxu0 0.0
  %1237 = vmatprep.subr.mxu0 0.0
  %1238 = vmatpush2.msra.mxu0 0.0
  %1239 = vmatprep.subr.mxu0 0.0
  %1240 = vmatpush2.msra.mxu0 0.0
  %1241 = vmatprep.subr.mxu0 0.0
  %1242 = vmatpush2.msra.mxu0 0.0
  %1243 = vmatprep.subr.mxu0 0.0
  %1244 = vmatpush2.msra.mxu0 0.0
  %1245 = vmatprep.subr.mxu0 0.0
  %1246 = vmatpush2.msra.mxu0 0.0
  %1247 = vmatprep.subr.mxu0 0.0
  %1248 = vmatpush2.msra.mxu0 0.0
  %1249 = vmatprep.mubr.f32.mxu0 0.0
  %1250 = vmatmul.mubr.f32.gmra.mxu0 %v201
  %v1251 = vpop.f32.mrf.mxu0
  %v1252 = vadd.f32 0.0, %v1251
  %v1253 = vpop.f32.mrf.mxu0
  %1254 = vdwg.mxu0
  %v1255 = vadd.f32 %v1184, %v1252
  %v1256 = vxor.u32 %v1255, 2147483648
  %v1257 = vmul.f32 %v1256, 1.442695
  %v1258 = vpow.pop %v1257
  %v1259 = vadd.f32 %v1258, 1.0
  %v1260 = vrcp.pop %v1259
  %v1261 = vmul.f32 1.0, %v1260
  %v1262 = vtanh.pop %v1255
  %v1263 = vmul.f32 %v1261, 0.0
  %1265 = vrot.lane.b32.xlu0 %v1262, 32
  %v1266 = vpop.permute.xlu0 %1265
  %v1268 = vmul.f32 %v1261, %v1266
  %1270 = vrot.lane.b32.xlu0 %v1268, 32
  %v1271 = vpop.permute.xlu0 %1270
  %v1273 = vadd.f32 %v1263, %v1271
  %v1274 = vtanh.pop %v1273
  %1276 = vrot.lane.b32.xlu0 %v1274, 32
  %v1277 = vpop.permute.xlu0 %1276
  %v1279 = vmul.f32 %v1261, %v1277
  %v1280 = vld [vmem:[%s7] sm:$0xff]
  %v1281 = vld [vmem:[%s7 + $0x8] sm:$0xff]
  %v1282 = vld [vmem:[%s7 + $0x10] sm:$0xff]
  %v1283 = vld [vmem:[%s7 + $0x18] sm:$0xff]
  %1285 = vrot.lane.b32.xlu0 %v1279, 64
  %v1286 = vpop.permute.xlu0 %1285
  %v1287 = vsel %vm199, %v1286, 0
  %1289 = vmatprep.subr.mxu0 0.0
  %1290 = vmatpush1.msra.mxu0 0.0
  %1291 = vmatprep.subr.mxu0 0.0
  %1292 = vmatpush1.msra.mxu0 0.0
  %1293 = vmatprep.subr.mxu0 0.0
  %1294 = vmatpush1.msra.mxu0 0.0
  %1295 = vmatprep.subr.mxu0 0.0
  %1296 = vmatpush1.msra.mxu0 0.0
  %1297 = vmatprep.subr.mxu0 0.0
  %1298 = vmatpush1.msra.mxu0 0.0
  %1299 = vmatprep.subr.mxu0 0.0
  %1300 = vmatpush1.msra.mxu0 0.0
  %1301 = vmatprep.subr.mxu0 0.0
  %1302 = vmatpush1.msra.mxu0 0.0
  %1303 = vmatprep.subr.mxu0 0.0
  %1304 = vmatpush1.msra.mxu0 0.0
  %1305 = vmatprep.subr.mxu0 0.0
  %1306 = vmatpush1.msra.mxu0 0.0
  %1307 = vmatprep.subr.mxu0 0.0
  %1308 = vmatpush1.msra.mxu0 0.0
  %1309 = vmatprep.subr.mxu0 0.0
  %1310 = vmatpush1.msra.mxu0 0.0
  %1311 = vmatprep.subr.mxu0 0.0
  %1312 = vmatpush1.msra.mxu0 0.0
  %1313 = vmatprep.subr.mxu0 0.0
  %1314 = vmatpush1.msra.mxu0 %v1283
  %1315 = vmatprep.subr.mxu0 0.0
  %1316 = vmatpush1.msra.mxu0 %v1282
  %1317 = vmatprep.subr.mxu0 0.0
  %1318 = vmatpush1.msra.mxu0 %v1281
  %1319 = vmatprep.subr.mxu0 0.0
  %1320 = vmatpush1.msra.mxu0 %v1280
  %1321 = vmatprep.subr.mxu0 0.0
  %1322 = vmatpush2.msra.mxu0 0.0
  %1323 = vmatprep.subr.mxu0 0.0
  %1324 = vmatpush2.msra.mxu0 0.0
  %1325 = vmatprep.subr.mxu0 0.0
  %1326 = vmatpush2.msra.mxu0 0.0
  %1327 = vmatprep.subr.mxu0 0.0
  %1328 = vmatpush2.msra.mxu0 0.0
  %1329 = vmatprep.subr.mxu0 0.0
  %1330 = vmatpush2.msra.mxu0 0.0
  %1331 = vmatprep.subr.mxu0 0.0
  %1332 = vmatpush2.msra.mxu0 0.0
  %1333 = vmatprep.subr.mxu0 0.0
  %1334 = vmatpush2.msra.mxu0 0.0
  %1335 = vmatprep.subr.mxu0 0.0
  %1336 = vmatpush2.msra.mxu0 0.0
  %1337 = vmatprep.subr.mxu0 0.0
  %1338 = vmatpush2.msra.mxu0 0.0
  %1339 = vmatprep.subr.mxu0 0.0
  %1340 = vmatpush2.msra.mxu0 0.0
  %1341 = vmatprep.subr.mxu0 0.0
  %1342 = vmatpush2.msra.mxu0 0.0
  %1343 = vmatprep.subr.mxu0 0.0
  %1344 = vmatpush2.msra.mxu0 0.0
  %1345 = vmatprep.subr.mxu0 0.0
  %1346 = vmatpush2.msra.mxu0 0.0
  %1347 = vmatprep.subr.mxu0 0.0
  %1348 = vmatpush2.msra.mxu0 0.0
  %1349 = vmatprep.subr.mxu0 0.0
  %1350 = vmatpush2.msra.mxu0 0.0
  %1351 = vmatprep.subr.mxu0 0.0
  %1352 = vmatpush2.msra.mxu0 0.0
  %1353 = vmatprep.mubr.f32.mxu0 0.0
  %1354 = vmatmul.mubr.f32.gmra.mxu0 %v1287
  %v1355 = vpop.f32.mrf.mxu0
  %v1356 = vadd.f32 0.0, %v1355
  %v1357 = vpop.f32.mrf.mxu0
  %1358 = vdwg.mxu0
  %v1359 = vadd.f32 %v39, %v1356
  %v1360 = vld [vmem:[#allocation2 + $0x8] sm:$0xff]
  %1361 = vmatprep.subr.mxu0 0.0
  %1362 = vmatpush1.msra.mxu0 0.0
  %1363 = vmatprep.subr.mxu0 0.0
  %1364 = vmatpush1.msra.mxu0 0.0
  %1365 = vmatprep.subr.mxu0 0.0
  %1366 = vmatpush1.msra.mxu0 0.0
  %1367 = vmatprep.subr.mxu0 0.0
  %1368 = vmatpush1.msra.mxu0 0.0
  %1369 = vmatprep.subr.mxu0 0.0
  %1370 = vmatpush1.msra.mxu0 0.0
  %1371 = vmatprep.subr.mxu0 0.0
  %1372 = vmatpush1.msra.mxu0 0.0
  %1373 = vmatprep.subr.mxu0 0.0
  %1374 = vmatpush1.msra.mxu0 0.0
  %1375 = vmatprep.subr.mxu0 0.0
  %1376 = vmatpush1.msra.mxu0 0.0
  %1377 = vmatprep.subr.mxu0 0.0
  %1378 = vmatpush1.msra.mxu0 0.0
  %1379 = vmatprep.subr.mxu0 0.0
  %1380 = vmatpush1.msra.mxu0 0.0
  %1381 = vmatprep.subr.mxu0 0.0
  %1382 = vmatpush1.msra.mxu0 0.0
  %1383 = vmatprep.subr.mxu0 0.0
  %1384 = vmatpush1.msra.mxu0 0.0
  %1385 = vmatprep.subr.mxu0 0.0
  %1386 = vmatpush1.msra.mxu0 %v1031
  %1387 = vmatprep.subr.mxu0 0.0
  %1388 = vmatpush1.msra.mxu0 %v1030
  %1389 = vmatprep.subr.mxu0 0.0
  %1390 = vmatpush1.msra.mxu0 %v1029
  %1391 = vmatprep.subr.mxu0 0.0
  %1392 = vmatpush1.msra.mxu0 %v1028
  %1393 = vmatprep.subr.mxu0 0.0
  %1394 = vmatpush2.msra.mxu0 0.0
  %1395 = vmatprep.subr.mxu0 0.0
  %1396 = vmatpush2.msra.mxu0 0.0
  %1397 = vmatprep.subr.mxu0 0.0
  %1398 = vmatpush2.msra.mxu0 0.0
  %1399 = vmatprep.subr.mxu0 0.0
  %1400 = vmatpush2.msra.mxu0 0.0
  %1401 = vmatprep.subr.mxu0 0.0
  %1402 = vmatpush2.msra.mxu0 0.0
  %1403 = vmatprep.subr.mxu0 0.0
  %1404 = vmatpush2.msra.mxu0 0.0
  %1405 = vmatprep.subr.mxu0 0.0
  %1406 = vmatpush2.msra.mxu0 0.0
  %1407 = vmatprep.subr.mxu0 0.0
  %1408 = vmatpush2.msra.mxu0 0.0
  %1409 = vmatprep.subr.mxu0 0.0
  %1410 = vmatpush2.msra.mxu0 0.0
  %1411 = vmatprep.subr.mxu0 0.0
  %1412 = vmatpush2.msra.mxu0 0.0
  %1413 = vmatprep.subr.mxu0 0.0
  %1414 = vmatpush2.msra.mxu0 0.0
  %1415 = vmatprep.subr.mxu0 0.0
  %1416 = vmatpush2.msra.mxu0 0.0
  %1417 = vmatprep.subr.mxu0 0.0
  %1418 = vmatpush2.msra.mxu0 0.0
  %1419 = vmatprep.subr.mxu0 0.0
  %1420 = vmatpush2.msra.mxu0 0.0
  %1421 = vmatprep.subr.mxu0 0.0
  %1422 = vmatpush2.msra.mxu0 0.0
  %1423 = vmatprep.subr.mxu0 0.0
  %1424 = vmatpush2.msra.mxu0 0.0
  %1425 = vmatprep.mubr.f32.mxu0 0.0
  %1426 = vmatmul.mubr.f32.gmra.mxu0 %v1287
  %v1427 = vpop.f32.mrf.mxu0
  %v1428 = vadd.f32 0.0, %v1427
  %v1429 = vpop.f32.mrf.mxu0
  %1430 = vdwg.mxu0
  %v1431 = vadd.f32 %v1360, %v1428
  %v1432 = vxor.u32 %v1431, 2147483648
  %v1433 = vmul.f32 %v1432, 1.442695
  %v1434 = vpow.pop %v1433
  %v1435 = vadd.f32 %v1434, 1.0
  %v1436 = vrcp.pop %v1435
  %v1437 = vmul.f32 1.0, %v1436
  %v1438 = vtanh.pop %v1431
  %v1439 = vmul.f32 %v1437, %v1273
  %1441 = vrot.lane.b32.xlu0 %v1438, 32
  %v1442 = vpop.permute.xlu0 %1441
  %v1444 = vmul.f32 %v1437, %v1442
  %1446 = vrot.lane.b32.xlu0 %v1444, 32
  %v1447 = vpop.permute.xlu0 %1446
  %v1449 = vadd.f32 %v1439, %v1447
  %v1450 = vtanh.pop %v1449
  %1452 = vrot.lane.b32.xlu0 %v1450, 32
  %v1453 = vpop.permute.xlu0 %1452
  %v1455 = vmul.f32 %v1437, %v1453
  %v1456 = vld [vmem:[%s7 + $0x20] sm:$0xff]
  %v1457 = vld [vmem:[%s7 + $0x28] sm:$0xff]
  %v1458 = vld [vmem:[%s7 + $0x30] sm:$0xff]
  %v1459 = vld [vmem:[%s7 + $0x38] sm:$0xff]
  %1461 = vrot.lane.b32.xlu0 %v1455, 64
  %v1462 = vpop.permute.xlu0 %1461
  %v1463 = vsel %vm199, %v1462, 0
  %1465 = vmatprep.subr.mxu0 0.0
  %1466 = vmatpush1.msra.mxu0 0.0
  %1467 = vmatprep.subr.mxu0 0.0
  %1468 = vmatpush1.msra.mxu0 0.0
  %1469 = vmatprep.subr.mxu0 0.0
  %1470 = vmatpush1.msra.mxu0 0.0
  %1471 = vmatprep.subr.mxu0 0.0
  %1472 = vmatpush1.msra.mxu0 0.0
  %1473 = vmatprep.subr.mxu0 0.0
  %1474 = vmatpush1.msra.mxu0 0.0
  %1475 = vmatprep.subr.mxu0 0.0
  %1476 = vmatpush1.msra.mxu0 0.0
  %1477 = vmatprep.subr.mxu0 0.0
  %1478 = vmatpush1.msra.mxu0 0.0
  %1479 = vmatprep.subr.mxu0 0.0
  %1480 = vmatpush1.msra.mxu0 0.0
  %1481 = vmatprep.subr.mxu0 0.0
  %1482 = vmatpush1.msra.mxu0 0.0
  %1483 = vmatprep.subr.mxu0 0.0
  %1484 = vmatpush1.msra.mxu0 0.0
  %1485 = vmatprep.subr.mxu0 0.0
  %1486 = vmatpush1.msra.mxu0 0.0
  %1487 = vmatprep.subr.mxu0 0.0
  %1488 = vmatpush1.msra.mxu0 0.0
  %1489 = vmatprep.subr.mxu0 0.0
  %1490 = vmatpush1.msra.mxu0 %v1459
  %1491 = vmatprep.subr.mxu0 0.0
  %1492 = vmatpush1.msra.mxu0 %v1458
  %1493 = vmatprep.subr.mxu0 0.0
  %1494 = vmatpush1.msra.mxu0 %v1457
  %1495 = vmatprep.subr.mxu0 0.0
  %1496 = vmatpush1.msra.mxu0 %v1456
  %1497 = vmatprep.subr.mxu0 0.0
  %1498 = vmatpush2.msra.mxu0 0.0
  %1499 = vmatprep.subr.mxu0 0.0
  %1500 = vmatpush2.msra.mxu0 0.0
  %1501 = vmatprep.subr.mxu0 0.0
  %1502 = vmatpush2.msra.mxu0 0.0
  %1503 = vmatprep.subr.mxu0 0.0
  %1504 = vmatpush2.msra.mxu0 0.0
  %1505 = vmatprep.subr.mxu0 0.0
  %1506 = vmatpush2.msra.mxu0 0.0
  %1507 = vmatprep.subr.mxu0 0.0
  %1508 = vmatpush2.msra.mxu0 0.0
  %1509 = vmatprep.subr.mxu0 0.0
  %1510 = vmatpush2.msra.mxu0 0.0
  %1511 = vmatprep.subr.mxu0 0.0
  %1512 = vmatpush2.msra.mxu0 0.0
  %1513 = vmatprep.subr.mxu0 0.0
  %1514 = vmatpush2.msra.mxu0 0.0
  %1515 = vmatprep.subr.mxu0 0.0
  %1516 = vmatpush2.msra.mxu0 0.0
  %1517 = vmatprep.subr.mxu0 0.0
  %1518 = vmatpush2.msra.mxu0 0.0
  %1519 = vmatprep.subr.mxu0 0.0
  %1520 = vmatpush2.msra.mxu0 0.0
  %1521 = vmatprep.subr.mxu0 0.0
  %1522 = vmatpush2.msra.mxu0 0.0
  %1523 = vmatprep.subr.mxu0 0.0
  %1524 = vmatpush2.msra.mxu0 0.0
  %1525 = vmatprep.subr.mxu0 0.0
  %1526 = vmatpush2.msra.mxu0 0.0
  %1527 = vmatprep.subr.mxu0 0.0
  %1528 = vmatpush2.msra.mxu0 0.0
  %1529 = vmatprep.mubr.f32.mxu0 0.0
  %1530 = vmatmul.mubr.f32.gmra.mxu0 %v1463
  %v1531 = vpop.f32.mrf.mxu0
  %v1532 = vadd.f32 0.0, %v1531
  %v1533 = vpop.f32.mrf.mxu0
  %1534 = vdwg.mxu0
  %v1535 = vadd.f32 %v1359, %v1532
  %v1536 = vld [vmem:[#allocation2 + $0x10] sm:$0xff]
  %1537 = vmatprep.subr.mxu0 0.0
  %1538 = vmatpush1.msra.mxu0 0.0
  %1539 = vmatprep.subr.mxu0 0.0
  %1540 = vmatpush1.msra.mxu0 0.0
  %1541 = vmatprep.subr.mxu0 0.0
  %1542 = vmatpush1.msra.mxu0 0.0
  %1543 = vmatprep.subr.mxu0 0.0
  %1544 = vmatpush1.msra.mxu0 0.0
  %1545 = vmatprep.subr.mxu0 0.0
  %1546 = vmatpush1.msra.mxu0 0.0
  %1547 = vmatprep.subr.mxu0 0.0
  %1548 = vmatpush1.msra.mxu0 0.0
  %1549 = vmatprep.subr.mxu0 0.0
  %1550 = vmatpush1.msra.mxu0 0.0
  %1551 = vmatprep.subr.mxu0 0.0
  %1552 = vmatpush1.msra.mxu0 0.0
  %1553 = vmatprep.subr.mxu0 0.0
  %1554 = vmatpush1.msra.mxu0 0.0
  %1555 = vmatprep.subr.mxu0 0.0
  %1556 = vmatpush1.msra.mxu0 0.0
  %1557 = vmatprep.subr.mxu0 0.0
  %1558 = vmatpush1.msra.mxu0 0.0
  %1559 = vmatprep.subr.mxu0 0.0
  %1560 = vmatpush1.msra.mxu0 0.0
  %1561 = vmatprep.subr.mxu0 0.0
  %1562 = vmatpush1.msra.mxu0 %v1031
  %1563 = vmatprep.subr.mxu0 0.0
  %1564 = vmatpush1.msra.mxu0 %v1030
  %1565 = vmatprep.subr.mxu0 0.0
  %1566 = vmatpush1.msra.mxu0 %v1029
  %1567 = vmatprep.subr.mxu0 0.0
  %1568 = vmatpush1.msra.mxu0 %v1028
  %1569 = vmatprep.subr.mxu0 0.0
  %1570 = vmatpush2.msra.mxu0 0.0
  %1571 = vmatprep.subr.mxu0 0.0
  %1572 = vmatpush2.msra.mxu0 0.0
  %1573 = vmatprep.subr.mxu0 0.0
  %1574 = vmatpush2.msra.mxu0 0.0
  %1575 = vmatprep.subr.mxu0 0.0
  %1576 = vmatpush2.msra.mxu0 0.0
  %1577 = vmatprep.subr.mxu0 0.0
  %1578 = vmatpush2.msra.mxu0 0.0
  %1579 = vmatprep.subr.mxu0 0.0
  %1580 = vmatpush2.msra.mxu0 0.0
  %1581 = vmatprep.subr.mxu0 0.0
  %1582 = vmatpush2.msra.mxu0 0.0
  %1583 = vmatprep.subr.mxu0 0.0
  %1584 = vmatpush2.msra.mxu0 0.0
  %1585 = vmatprep.subr.mxu0 0.0
  %1586 = vmatpush2.msra.mxu0 0.0
  %1587 = vmatprep.subr.mxu0 0.0
  %1588 = vmatpush2.msra.mxu0 0.0
  %1589 = vmatprep.subr.mxu0 0.0
  %1590 = vmatpush2.msra.mxu0 0.0
  %1591 = vmatprep.subr.mxu0 0.0
  %1592 = vmatpush2.msra.mxu0 0.0
  %1593 = vmatprep.subr.mxu0 0.0
  %1594 = vmatpush2.msra.mxu0 0.0
  %1595 = vmatprep.subr.mxu0 0.0
  %1596 = vmatpush2.msra.mxu0 0.0
  %1597 = vmatprep.subr.mxu0 0.0
  %1598 = vmatpush2.msra.mxu0 0.0
  %1599 = vmatprep.subr.mxu0 0.0
  %1600 = vmatpush2.msra.mxu0 0.0
  %1601 = vmatprep.mubr.f32.mxu0 0.0
  %1602 = vmatmul.mubr.f32.gmra.mxu0 %v1463
  %v1603 = vpop.f32.mrf.mxu0
  %v1604 = vadd.f32 0.0, %v1603
  %v1605 = vpop.f32.mrf.mxu0
  %1606 = vdwg.mxu0
  %v1607 = vadd.f32 %v1536, %v1604
  %v1608 = vxor.u32 %v1607, 2147483648
  %v1609 = vmul.f32 %v1608, 1.442695
  %v1610 = vpow.pop %v1609
  %v1611 = vadd.f32 %v1610, 1.0
  %v1612 = vrcp.pop %v1611
  %v1613 = vmul.f32 1.0, %v1612
  %v1614 = vtanh.pop %v1607
  %v1615 = vmul.f32 %v1613, %v1449
  %1617 = vrot.lane.b32.xlu0 %v1614, 32
  %v1618 = vpop.permute.xlu0 %1617
  %v1620 = vmul.f32 %v1613, %v1618
  %1622 = vrot.lane.b32.xlu0 %v1620, 32
  %v1623 = vpop.permute.xlu0 %1622
  %v1625 = vadd.f32 %v1615, %v1623
  %v1626 = vtanh.pop %v1625
  %1628 = vrot.lane.b32.xlu0 %v1626, 32
  %v1629 = vpop.permute.xlu0 %1628
  %v1631 = vmul.f32 %v1613, %v1629
  %v1632 = vld [vmem:[%s7 + $0x40] sm:$0xff]
  %v1633 = vld [vmem:[%s7 + $0x48] sm:$0xff]
  %v1634 = vld [vmem:[%s7 + $0x50] sm:$0xff]
  %v1635 = vld [vmem:[%s7 + $0x58] sm:$0xff]
  %1637 = vrot.lane.b32.xlu0 %v1631, 64
  %v1638 = vpop.permute.xlu0 %1637
  %v1639 = vsel %vm199, %v1638, 0
  %1641 = vmatprep.subr.mxu0 0.0
  %1642 = vmatpush1.msra.mxu0 0.0
  %1643 = vmatprep.subr.mxu0 0.0
  %1644 = vmatpush1.msra.mxu0 0.0
  %1645 = vmatprep.subr.mxu0 0.0
  %1646 = vmatpush1.msra.mxu0 0.0
  %1647 = vmatprep.subr.mxu0 0.0
  %1648 = vmatpush1.msra.mxu0 0.0
  %1649 = vmatprep.subr.mxu0 0.0
  %1650 = vmatpush1.msra.mxu0 0.0
  %1651 = vmatprep.subr.mxu0 0.0
  %1652 = vmatpush1.msra.mxu0 0.0
  %1653 = vmatprep.subr.mxu0 0.0
  %1654 = vmatpush1.msra.mxu0 0.0
  %1655 = vmatprep.subr.mxu0 0.0
  %1656 = vmatpush1.msra.mxu0 0.0
  %1657 = vmatprep.subr.mxu0 0.0
  %1658 = vmatpush1.msra.mxu0 0.0
  %1659 = vmatprep.subr.mxu0 0.0
  %1660 = vmatpush1.msra.mxu0 0.0
  %1661 = vmatprep.subr.mxu0 0.0
  %1662 = vmatpush1.msra.mxu0 0.0
  %1663 = vmatprep.subr.mxu0 0.0
  %1664 = vmatpush1.msra.mxu0 0.0
  %1665 = vmatprep.subr.mxu0 0.0
  %1666 = vmatpush1.msra.mxu0 %v1635
  %1667 = vmatprep.subr.mxu0 0.0
  %1668 = vmatpush1.msra.mxu0 %v1634
  %1669 = vmatprep.subr.mxu0 0.0
  %1670 = vmatpush1.msra.mxu0 %v1633
  %1671 = vmatprep.subr.mxu0 0.0
  %1672 = vmatpush1.msra.mxu0 %v1632
  %1673 = vmatprep.subr.mxu0 0.0
  %1674 = vmatpush2.msra.mxu0 0.0
  %1675 = vmatprep.subr.mxu0 0.0
  %1676 = vmatpush2.msra.mxu0 0.0
  %1677 = vmatprep.subr.mxu0 0.0
  %1678 = vmatpush2.msra.mxu0 0.0
  %1679 = vmatprep.subr.mxu0 0.0
  %1680 = vmatpush2.msra.mxu0 0.0
  %1681 = vmatprep.subr.mxu0 0.0
  %1682 = vmatpush2.msra.mxu0 0.0
  %1683 = vmatprep.subr.mxu0 0.0
  %1684 = vmatpush2.msra.mxu0 0.0
  %1685 = vmatprep.subr.mxu0 0.0
  %1686 = vmatpush2.msra.mxu0 0.0
  %1687 = vmatprep.subr.mxu0 0.0
  %1688 = vmatpush2.msra.mxu0 0.0
  %1689 = vmatprep.subr.mxu0 0.0
  %1690 = vmatpush2.msra.mxu0 0.0
  %1691 = vmatprep.subr.mxu0 0.0
  %1692 = vmatpush2.msra.mxu0 0.0
  %1693 = vmatprep.subr.mxu0 0.0
  %1694 = vmatpush2.msra.mxu0 0.0
  %1695 = vmatprep.subr.mxu0 0.0
  %1696 = vmatpush2.msra.mxu0 0.0
  %1697 = vmatprep.subr.mxu0 0.0
  %1698 = vmatpush2.msra.mxu0 0.0
  %1699 = vmatprep.subr.mxu0 0.0
  %1700 = vmatpush2.msra.mxu0 0.0
  %1701 = vmatprep.subr.mxu0 0.0
  %1702 = vmatpush2.msra.mxu0 0.0
  %1703 = vmatprep.subr.mxu0 0.0
  %1704 = vmatpush2.msra.mxu0 0.0
  %1705 = vmatprep.mubr.f32.mxu0 0.0
  %1706 = vmatmul.mubr.f32.gmra.mxu0 %v1639
  %v1707 = vpop.f32.mrf.mxu0
  %v1708 = vadd.f32 0.0, %v1707
  %v1709 = vpop.f32.mrf.mxu0
  %1710 = vdwg.mxu0
  %v1711 = vadd.f32 %v1535, %v1708
  %v1712 = vld [vmem:[#allocation2 + $0x18] sm:$0xff]
  %1713 = vmatprep.subr.mxu0 0.0
  %1714 = vmatpush1.msra.mxu0 0.0
  %1715 = vmatprep.subr.mxu0 0.0
  %1716 = vmatpush1.msra.mxu0 0.0
  %1717 = vmatprep.subr.mxu0 0.0
  %1718 = vmatpush1.msra.mxu0 0.0
  %1719 = vmatprep.subr.mxu0 0.0
  %1720 = vmatpush1.msra.mxu0 0.0
  %1721 = vmatprep.subr.mxu0 0.0
  %1722 = vmatpush1.msra.mxu0 0.0
  %1723 = vmatprep.subr.mxu0 0.0
  %1724 = vmatpush1.msra.mxu0 0.0
  %1725 = vmatprep.subr.mxu0 0.0
  %1726 = vmatpush1.msra.mxu0 0.0
  %1727 = vmatprep.subr.mxu0 0.0
  %1728 = vmatpush1.msra.mxu0 0.0
  %1729 = vmatprep.subr.mxu0 0.0
  %1730 = vmatpush1.msra.mxu0 0.0
  %1731 = vmatprep.subr.mxu0 0.0
  %1732 = vmatpush1.msra.mxu0 0.0
  %1733 = vmatprep.subr.mxu0 0.0
  %1734 = vmatpush1.msra.mxu0 0.0
  %1735 = vmatprep.subr.mxu0 0.0
  %1736 = vmatpush1.msra.mxu0 0.0
  %1737 = vmatprep.subr.mxu0 0.0
  %1738 = vmatpush1.msra.mxu0 %v1031
  %1739 = vmatprep.subr.mxu0 0.0
  %1740 = vmatpush1.msra.mxu0 %v1030
  %1741 = vmatprep.subr.mxu0 0.0
  %1742 = vmatpush1.msra.mxu0 %v1029
  %1743 = vmatprep.subr.mxu0 0.0
  %1744 = vmatpush1.msra.mxu0 %v1028
  %1745 = vmatprep.subr.mxu0 0.0
  %1746 = vmatpush2.msra.mxu0 0.0
  %1747 = vmatprep.subr.mxu0 0.0
  %1748 = vmatpush2.msra.mxu0 0.0
  %1749 = vmatprep.subr.mxu0 0.0
  %1750 = vmatpush2.msra.mxu0 0.0
  %1751 = vmatprep.subr.mxu0 0.0
  %1752 = vmatpush2.msra.mxu0 0.0
  %1753 = vmatprep.subr.mxu0 0.0
  %1754 = vmatpush2.msra.mxu0 0.0
  %1755 = vmatprep.subr.mxu0 0.0
  %1756 = vmatpush2.msra.mxu0 0.0
  %1757 = vmatprep.subr.mxu0 0.0
  %1758 = vmatpush2.msra.mxu0 0.0
  %1759 = vmatprep.subr.mxu0 0.0
  %1760 = vmatpush2.msra.mxu0 0.0
  %1761 = vmatprep.subr.mxu0 0.0
  %1762 = vmatpush2.msra.mxu0 0.0
  %1763 = vmatprep.subr.mxu0 0.0
  %1764 = vmatpush2.msra.mxu0 0.0
  %1765 = vmatprep.subr.mxu0 0.0
  %1766 = vmatpush2.msra.mxu0 0.0
  %1767 = vmatprep.subr.mxu0 0.0
  %1768 = vmatpush2.msra.mxu0 0.0
  %1769 = vmatprep.subr.mxu0 0.0
  %1770 = vmatpush2.msra.mxu0 0.0
  %1771 = vmatprep.subr.mxu0 0.0
  %1772 = vmatpush2.msra.mxu0 0.0
  %1773 = vmatprep.subr.mxu0 0.0
  %1774 = vmatpush2.msra.mxu0 0.0
  %1775 = vmatprep.subr.mxu0 0.0
  %1776 = vmatpush2.msra.mxu0 0.0
  %1777 = vmatprep.mubr.f32.mxu0 0.0
  %1778 = vmatmul.mubr.f32.gmra.mxu0 %v1639
  %v1779 = vpop.f32.mrf.mxu0
  %v1780 = vadd.f32 0.0, %v1779
  %v1781 = vpop.f32.mrf.mxu0
  %1782 = vdwg.mxu0
  %v1783 = vadd.f32 %v1712, %v1780
  %v1784 = vxor.u32 %v1783, 2147483648
  %v1785 = vmul.f32 %v1784, 1.442695
  %v1786 = vpow.pop %v1785
  %v1787 = vadd.f32 %v1786, 1.0
  %v1788 = vrcp.pop %v1787
  %v1789 = vmul.f32 1.0, %v1788
  %v1790 = vtanh.pop %v1783
  %v1791 = vmul.f32 %v1789, %v1625
  %1793 = vrot.lane.b32.xlu0 %v1790, 32
  %v1794 = vpop.permute.xlu0 %1793
  %v1796 = vmul.f32 %v1789, %v1794
  %1798 = vrot.lane.b32.xlu0 %v1796, 32
  %v1799 = vpop.permute.xlu0 %1798
  %v1801 = vadd.f32 %v1791, %v1799
  %v1802 = vtanh.pop %v1801
  %1804 = vrot.lane.b32.xlu0 %v1802, 32
  %v1805 = vpop.permute.xlu0 %1804
  %v1807 = vmul.f32 %v1789, %v1805
  %v1808 = vld [vmem:[%s7 + $0x60] sm:$0xff]
  %v1809 = vld [vmem:[%s7 + $0x68] sm:$0xff]
  %v1810 = vld [vmem:[%s7 + $0x70] sm:$0xff]
  %v1811 = vld [vmem:[%s7 + $0x78] sm:$0xff]
  %1813 = vrot.lane.b32.xlu0 %v1807, 64
  %v1814 = vpop.permute.xlu0 %1813
  %v1815 = vsel %vm199, %v1814, 0
  %1817 = vmatprep.subr.mxu0 0.0
  %1818 = vmatpush1.msra.mxu0 0.0
  %1819 = vmatprep.subr.mxu0 0.0
  %1820 = vmatpush1.msra.mxu0 0.0
  %1821 = vmatprep.subr.mxu0 0.0
  %1822 = vmatpush1.msra.mxu0 0.0
  %1823 = vmatprep.subr.mxu0 0.0
  %1824 = vmatpush1.msra.mxu0 0.0
  %1825 = vmatprep.subr.mxu0 0.0
  %1826 = vmatpush1.msra.mxu0 0.0
  %1827 = vmatprep.subr.mxu0 0.0
  %1828 = vmatpush1.msra.mxu0 0.0
  %1829 = vmatprep.subr.mxu0 0.0
  %1830 = vmatpush1.msra.mxu0 0.0
  %1831 = vmatprep.subr.mxu0 0.0
  %1832 = vmatpush1.msra.mxu0 0.0
  %1833 = vmatprep.subr.mxu0 0.0
  %1834 = vmatpush1.msra.mxu0 0.0
  %1835 = vmatprep.subr.mxu0 0.0
  %1836 = vmatpush1.msra.mxu0 0.0
  %1837 = vmatprep.subr.mxu0 0.0
  %1838 = vmatpush1.msra.mxu0 0.0
  %1839 = vmatprep.subr.mxu0 0.0
  %1840 = vmatpush1.msra.mxu0 0.0
  %1841 = vmatprep.subr.mxu0 0.0
  %1842 = vmatpush1.msra.mxu0 %v1811
  %1843 = vmatprep.subr.mxu0 0.0
  %1844 = vmatpush1.msra.mxu0 %v1810
  %1845 = vmatprep.subr.mxu0 0.0
  %1846 = vmatpush1.msra.mxu0 %v1809
  %1847 = vmatprep.subr.mxu0 0.0
  %1848 = vmatpush1.msra.mxu0 %v1808
  %1849 = vmatprep.subr.mxu0 0.0
  %1850 = vmatpush2.msra.mxu0 0.0
  %1851 = vmatprep.subr.mxu0 0.0
  %1852 = vmatpush2.msra.mxu0 0.0
  %1853 = vmatprep.subr.mxu0 0.0
  %1854 = vmatpush2.msra.mxu0 0.0
  %1855 = vmatprep.subr.mxu0 0.0
  %1856 = vmatpush2.msra.mxu0 0.0
  %1857 = vmatprep.subr.mxu0 0.0
  %1858 = vmatpush2.msra.mxu0 0.0
  %1859 = vmatprep.subr.mxu0 0.0
  %1860 = vmatpush2.msra.mxu0 0.0
  %1861 = vmatprep.subr.mxu0 0.0
  %1862 = vmatpush2.msra.mxu0 0.0
  %1863 = vmatprep.subr.mxu0 0.0
  %1864 = vmatpush2.msra.mxu0 0.0
  %1865 = vmatprep.subr.mxu0 0.0
  %1866 = vmatpush2.msra.mxu0 0.0
  %1867 = vmatprep.subr.mxu0 0.0
  %1868 = vmatpush2.msra.mxu0 0.0
  %1869 = vmatprep.subr.mxu0 0.0
  %1870 = vmatpush2.msra.mxu0 0.0
  %1871 = vmatprep.subr.mxu0 0.0
  %1872 = vmatpush2.msra.mxu0 0.0
  %1873 = vmatprep.subr.mxu0 0.0
  %1874 = vmatpush2.msra.mxu0 0.0
  %1875 = vmatprep.subr.mxu0 0.0
  %1876 = vmatpush2.msra.mxu0 0.0
  %1877 = vmatprep.subr.mxu0 0.0
  %1878 = vmatpush2.msra.mxu0 0.0
  %1879 = vmatprep.subr.mxu0 0.0
  %1880 = vmatpush2.msra.mxu0 0.0
  %1881 = vmatprep.mubr.f32.mxu0 0.0
  %1882 = vmatmul.mubr.f32.gmra.mxu0 %v1815
  %v1883 = vpop.f32.mrf.mxu0
  %v1884 = vadd.f32 0.0, %v1883
  %v1885 = vpop.f32.mrf.mxu0
  %1886 = vdwg.mxu0
  %v1887 = vadd.f32 %v1711, %v1884
  %v1888 = vld [vmem:[#allocation2 + $0x20] sm:$0xff]
  %1889 = vmatprep.subr.mxu0 0.0
  %1890 = vmatpush1.msra.mxu0 0.0
  %1891 = vmatprep.subr.mxu0 0.0
  %1892 = vmatpush1.msra.mxu0 0.0
  %1893 = vmatprep.subr.mxu0 0.0
  %1894 = vmatpush1.msra.mxu0 0.0
  %1895 = vmatprep.subr.mxu0 0.0
  %1896 = vmatpush1.msra.mxu0 0.0
  %1897 = vmatprep.subr.mxu0 0.0
  %1898 = vmatpush1.msra.mxu0 0.0
  %1899 = vmatprep.subr.mxu0 0.0
  %1900 = vmatpush1.msra.mxu0 0.0
  %1901 = vmatprep.subr.mxu0 0.0
  %1902 = vmatpush1.msra.mxu0 0.0
  %1903 = vmatprep.subr.mxu0 0.0
  %1904 = vmatpush1.msra.mxu0 0.0
  %1905 = vmatprep.subr.mxu0 0.0
  %1906 = vmatpush1.msra.mxu0 0.0
  %1907 = vmatprep.subr.mxu0 0.0
  %1908 = vmatpush1.msra.mxu0 0.0
  %1909 = vmatprep.subr.mxu0 0.0
  %1910 = vmatpush1.msra.mxu0 0.0
  %1911 = vmatprep.subr.mxu0 0.0
  %1912 = vmatpush1.msra.mxu0 0.0
  %1913 = vmatprep.subr.mxu0 0.0
  %1914 = vmatpush1.msra.mxu0 %v1031
  %1915 = vmatprep.subr.mxu0 0.0
  %1916 = vmatpush1.msra.mxu0 %v1030
  %1917 = vmatprep.subr.mxu0 0.0
  %1918 = vmatpush1.msra.mxu0 %v1029
  %1919 = vmatprep.subr.mxu0 0.0
  %1920 = vmatpush1.msra.mxu0 %v1028
  %1921 = vmatprep.subr.mxu0 0.0
  %1922 = vmatpush2.msra.mxu0 0.0
  %1923 = vmatprep.subr.mxu0 0.0
  %1924 = vmatpush2.msra.mxu0 0.0
  %1925 = vmatprep.subr.mxu0 0.0
  %1926 = vmatpush2.msra.mxu0 0.0
  %1927 = vmatprep.subr.mxu0 0.0
  %1928 = vmatpush2.msra.mxu0 0.0
  %1929 = vmatprep.subr.mxu0 0.0
  %1930 = vmatpush2.msra.mxu0 0.0
  %1931 = vmatprep.subr.mxu0 0.0
  %1932 = vmatpush2.msra.mxu0 0.0
  %1933 = vmatprep.subr.mxu0 0.0
  %1934 = vmatpush2.msra.mxu0 0.0
  %1935 = vmatprep.subr.mxu0 0.0
  %1936 = vmatpush2.msra.mxu0 0.0
  %1937 = vmatprep.subr.mxu0 0.0
  %1938 = vmatpush2.msra.mxu0 0.0
  %1939 = vmatprep.subr.mxu0 0.0
  %1940 = vmatpush2.msra.mxu0 0.0
  %1941 = vmatprep.subr.mxu0 0.0
  %1942 = vmatpush2.msra.mxu0 0.0
  %1943 = vmatprep.subr.mxu0 0.0
  %1944 = vmatpush2.msra.mxu0 0.0
  %1945 = vmatprep.subr.mxu0 0.0
  %1946 = vmatpush2.msra.mxu0 0.0
  %1947 = vmatprep.subr.mxu0 0.0
  %1948 = vmatpush2.msra.mxu0 0.0
  %1949 = vmatprep.subr.mxu0 0.0
  %1950 = vmatpush2.msra.mxu0 0.0
  %1951 = vmatprep.subr.mxu0 0.0
  %1952 = vmatpush2.msra.mxu0 0.0
  %1953 = vmatprep.mubr.f32.mxu0 0.0
  %1954 = vmatmul.mubr.f32.gmra.mxu0 %v1815
  %v1955 = vpop.f32.mrf.mxu0
  %v1956 = vadd.f32 0.0, %v1955
  %v1957 = vpop.f32.mrf.mxu0
  %1958 = vdwg.mxu0
  %v1959 = vadd.f32 %v1888, %v1956
  %v1960 = vxor.u32 %v1959, 2147483648
  %v1961 = vmul.f32 %v1960, 1.442695
  %v1962 = vpow.pop %v1961
  %v1963 = vadd.f32 %v1962, 1.0
  %v1964 = vrcp.pop %v1963
  %v1965 = vmul.f32 1.0, %v1964
  %v1966 = vtanh.pop %v1959
  %v1967 = vmul.f32 %v1965, %v1801
  %1969 = vrot.lane.b32.xlu0 %v1966, 32
  %v1970 = vpop.permute.xlu0 %1969
  %v1972 = vmul.f32 %v1965, %v1970
  %1974 = vrot.lane.b32.xlu0 %v1972, 32
  %v1975 = vpop.permute.xlu0 %1974
  %v1977 = vadd.f32 %v1967, %v1975
  %v1978 = vtanh.pop %v1977
  %1980 = vrot.lane.b32.xlu0 %v1978, 32
  %v1981 = vpop.permute.xlu0 %1980
  %v1983 = vmul.f32 %v1965, %v1981
  %v1984 = vld [vmem:[%s7 + $0x80] sm:$0xff]
  %v1985 = vld [vmem:[%s7 + $0x88] sm:$0xff]
  %v1986 = vld [vmem:[%s7 + $0x90] sm:$0xff]
  %v1987 = vld [vmem:[%s7 + $0x98] sm:$0xff]
  %1989 = vrot.lane.b32.xlu0 %v1983, 64
  %v1990 = vpop.permute.xlu0 %1989
  %v1991 = vsel %vm199, %v1990, 0
  %1993 = vmatprep.subr.mxu0 0.0
  %1994 = vmatpush1.msra.mxu0 0.0
  %1995 = vmatprep.subr.mxu0 0.0
  %1996 = vmatpush1.msra.mxu0 0.0
  %1997 = vmatprep.subr.mxu0 0.0
  %1998 = vmatpush1.msra.mxu0 0.0
  %1999 = vmatprep.subr.mxu0 0.0
  %2000 = vmatpush1.msra.mxu0 0.0
  %2001 = vmatprep.subr.mxu0 0.0
  %2002 = vmatpush1.msra.mxu0 0.0
  %2003 = vmatprep.subr.mxu0 0.0
  %2004 = vmatpush1.msra.mxu0 0.0
  %2005 = vmatprep.subr.mxu0 0.0
  %2006 = vmatpush1.msra.mxu0 0.0
  %2007 = vmatprep.subr.mxu0 0.0
  %2008 = vmatpush1.msra.mxu0 0.0
  %2009 = vmatprep.subr.mxu0 0.0
  %2010 = vmatpush1.msra.mxu0 0.0
  %2011 = vmatprep.subr.mxu0 0.0
  %2012 = vmatpush1.msra.mxu0 0.0
  %2013 = vmatprep.subr.mxu0 0.0
  %2014 = vmatpush1.msra.mxu0 0.0
  %2015 = vmatprep.subr.mxu0 0.0
  %2016 = vmatpush1.msra.mxu0 0.0
  %2017 = vmatprep.subr.mxu0 0.0
  %2018 = vmatpush1.msra.mxu0 %v1987
  %2019 = vmatprep.subr.mxu0 0.0
  %2020 = vmatpush1.msra.mxu0 %v1986
  %2021 = vmatprep.subr.mxu0 0.0
  %2022 = vmatpush1.msra.mxu0 %v1985
  %2023 = vmatprep.subr.mxu0 0.0
  %2024 = vmatpush1.msra.mxu0 %v1984
  %2025 = vmatprep.subr.mxu0 0.0
  %2026 = vmatpush2.msra.mxu0 0.0
  %2027 = vmatprep.subr.mxu0 0.0
  %2028 = vmatpush2.msra.mxu0 0.0
  %2029 = vmatprep.subr.mxu0 0.0
  %2030 = vmatpush2.msra.mxu0 0.0
  %2031 = vmatprep.subr.mxu0 0.0
  %2032 = vmatpush2.msra.mxu0 0.0
  %2033 = vmatprep.subr.mxu0 0.0
  %2034 = vmatpush2.msra.mxu0 0.0
  %2035 = vmatprep.subr.mxu0 0.0
  %2036 = vmatpush2.msra.mxu0 0.0
  %2037 = vmatprep.subr.mxu0 0.0
  %2038 = vmatpush2.msra.mxu0 0.0
  %2039 = vmatprep.subr.mxu0 0.0
  %2040 = vmatpush2.msra.mxu0 0.0
  %2041 = vmatprep.subr.mxu0 0.0
  %2042 = vmatpush2.msra.mxu0 0.0
  %2043 = vmatprep.subr.mxu0 0.0
  %2044 = vmatpush2.msra.mxu0 0.0
  %2045 = vmatprep.subr.mxu0 0.0
  %2046 = vmatpush2.msra.mxu0 0.0
  %2047 = vmatprep.subr.mxu0 0.0
  %2048 = vmatpush2.msra.mxu0 0.0
  %2049 = vmatprep.subr.mxu0 0.0
  %2050 = vmatpush2.msra.mxu0 0.0
  %2051 = vmatprep.subr.mxu0 0.0
  %2052 = vmatpush2.msra.mxu0 0.0
  %2053 = vmatprep.subr.mxu0 0.0
  %2054 = vmatpush2.msra.mxu0 0.0
  %2055 = vmatprep.subr.mxu0 0.0
  %2056 = vmatpush2.msra.mxu0 0.0
  %2057 = vmatprep.mubr.f32.mxu0 0.0
  %2058 = vmatmul.mubr.f32.gmra.mxu0 %v1991
  %v2059 = vpop.f32.mrf.mxu0
  %v2060 = vadd.f32 0.0, %v2059
  %v2061 = vpop.f32.mrf.mxu0
  %2062 = vdwg.mxu0
  %v2063 = vadd.f32 %v1887, %v2060
  %v2064 = vld [vmem:[#allocation2 + $0x28] sm:$0xff]
  %2065 = vmatprep.subr.mxu0 0.0
  %2066 = vmatpush1.msra.mxu0 0.0
  %2067 = vmatprep.subr.mxu0 0.0
  %2068 = vmatpush1.msra.mxu0 0.0
  %2069 = vmatprep.subr.mxu0 0.0
  %2070 = vmatpush1.msra.mxu0 0.0
  %2071 = vmatprep.subr.mxu0 0.0
  %2072 = vmatpush1.msra.mxu0 0.0
  %2073 = vmatprep.subr.mxu0 0.0
  %2074 = vmatpush1.msra.mxu0 0.0
  %2075 = vmatprep.subr.mxu0 0.0
  %2076 = vmatpush1.msra.mxu0 0.0
  %2077 = vmatprep.subr.mxu0 0.0
  %2078 = vmatpush1.msra.mxu0 0.0
  %2079 = vmatprep.subr.mxu0 0.0
  %2080 = vmatpush1.msra.mxu0 0.0
  %2081 = vmatprep.subr.mxu0 0.0
  %2082 = vmatpush1.msra.mxu0 0.0
  %2083 = vmatprep.subr.mxu0 0.0
  %2084 = vmatpush1.msra.mxu0 0.0
  %2085 = vmatprep.subr.mxu0 0.0
  %2086 = vmatpush1.msra.mxu0 0.0
  %2087 = vmatprep.subr.mxu0 0.0
  %2088 = vmatpush1.msra.mxu0 0.0
  %2089 = vmatprep.subr.mxu0 0.0
  %2090 = vmatpush1.msra.mxu0 %v1031
  %2091 = vmatprep.subr.mxu0 0.0
  %2092 = vmatpush1.msra.mxu0 %v1030
  %2093 = vmatprep.subr.mxu0 0.0
  %2094 = vmatpush1.msra.mxu0 %v1029
  %2095 = vmatprep.subr.mxu0 0.0
  %2096 = vmatpush1.msra.mxu0 %v1028
  %2097 = vmatprep.subr.mxu0 0.0
  %2098 = vmatpush2.msra.mxu0 0.0
  %2099 = vmatprep.subr.mxu0 0.0
  %2100 = vmatpush2.msra.mxu0 0.0
  %2101 = vmatprep.subr.mxu0 0.0
  %2102 = vmatpush2.msra.mxu0 0.0
  %2103 = vmatprep.subr.mxu0 0.0
  %2104 = vmatpush2.msra.mxu0 0.0
  %2105 = vmatprep.subr.mxu0 0.0
  %2106 = vmatpush2.msra.mxu0 0.0
  %2107 = vmatprep.subr.mxu0 0.0
  %2108 = vmatpush2.msra.mxu0 0.0
  %2109 = vmatprep.subr.mxu0 0.0
  %2110 = vmatpush2.msra.mxu0 0.0
  %2111 = vmatprep.subr.mxu0 0.0
  %2112 = vmatpush2.msra.mxu0 0.0
  %2113 = vmatprep.subr.mxu0 0.0
  %2114 = vmatpush2.msra.mxu0 0.0
  %2115 = vmatprep.subr.mxu0 0.0
  %2116 = vmatpush2.msra.mxu0 0.0
  %2117 = vmatprep.subr.mxu0 0.0
  %2118 = vmatpush2.msra.mxu0 0.0
  %2119 = vmatprep.subr.mxu0 0.0
  %2120 = vmatpush2.msra.mxu0 0.0
  %2121 = vmatprep.subr.mxu0 0.0
  %2122 = vmatpush2.msra.mxu0 0.0
  %2123 = vmatprep.subr.mxu0 0.0
  %2124 = vmatpush2.msra.mxu0 0.0
  %2125 = vmatprep.subr.mxu0 0.0
  %2126 = vmatpush2.msra.mxu0 0.0
  %2127 = vmatprep.subr.mxu0 0.0
  %2128 = vmatpush2.msra.mxu0 0.0
  %2129 = vmatprep.mubr.f32.mxu0 0.0
  %2130 = vmatmul.mubr.f32.gmra.mxu0 %v1991
  %v2131 = vpop.f32.mrf.mxu0
  %v2132 = vadd.f32 0.0, %v2131
  %v2133 = vpop.f32.mrf.mxu0
  %2134 = vdwg.mxu0
  %v2135 = vadd.f32 %v2064, %v2132
  %v2136 = vxor.u32 %v2135, 2147483648
  %v2137 = vmul.f32 %v2136, 1.442695
  %v2138 = vpow.pop %v2137
  %v2139 = vadd.f32 %v2138, 1.0
  %v2140 = vrcp.pop %v2139
  %v2141 = vmul.f32 1.0, %v2140
  %v2142 = vtanh.pop %v2135
  %v2143 = vmul.f32 %v2141, %v1977
  %2145 = vrot.lane.b32.xlu0 %v2142, 32
  %v2146 = vpop.permute.xlu0 %2145
  %v2148 = vmul.f32 %v2141, %v2146
  %2150 = vrot.lane.b32.xlu0 %v2148, 32
  %v2151 = vpop.permute.xlu0 %2150
  %v2153 = vadd.f32 %v2143, %v2151
  %v2154 = vtanh.pop %v2153
  %2156 = vrot.lane.b32.xlu0 %v2154, 32
  %v2157 = vpop.permute.xlu0 %2156
  %v2159 = vmul.f32 %v2141, %v2157
  %v2160 = vld [vmem:[%s7 + $0xa0] sm:$0xff]
  %v2161 = vld [vmem:[%s7 + $0xa8] sm:$0xff]
  %v2162 = vld [vmem:[%s7 + $0xb0] sm:$0xff]
  %v2163 = vld [vmem:[%s7 + $0xb8] sm:$0xff]
  %2165 = vrot.lane.b32.xlu0 %v2159, 64
  %v2166 = vpop.permute.xlu0 %2165
  %v2167 = vsel %vm199, %v2166, 0
  %2169 = vmatprep.subr.mxu0 0.0
  %2170 = vmatpush1.msra.mxu0 0.0
  %2171 = vmatprep.subr.mxu0 0.0
  %2172 = vmatpush1.msra.mxu0 0.0
  %2173 = vmatprep.subr.mxu0 0.0
  %2174 = vmatpush1.msra.mxu0 0.0
  %2175 = vmatprep.subr.mxu0 0.0
  %2176 = vmatpush1.msra.mxu0 0.0
  %2177 = vmatprep.subr.mxu0 0.0
  %2178 = vmatpush1.msra.mxu0 0.0
  %2179 = vmatprep.subr.mxu0 0.0
  %2180 = vmatpush1.msra.mxu0 0.0
  %2181 = vmatprep.subr.mxu0 0.0
  %2182 = vmatpush1.msra.mxu0 0.0
  %2183 = vmatprep.subr.mxu0 0.0
  %2184 = vmatpush1.msra.mxu0 0.0
  %2185 = vmatprep.subr.mxu0 0.0
  %2186 = vmatpush1.msra.mxu0 0.0
  %2187 = vmatprep.subr.mxu0 0.0
  %2188 = vmatpush1.msra.mxu0 0.0
  %2189 = vmatprep.subr.mxu0 0.0
  %2190 = vmatpush1.msra.mxu0 0.0
  %2191 = vmatprep.subr.mxu0 0.0
  %2192 = vmatpush1.msra.mxu0 0.0
  %2193 = vmatprep.subr.mxu0 0.0
  %2194 = vmatpush1.msra.mxu0 %v2163
  %2195 = vmatprep.subr.mxu0 0.0
  %2196 = vmatpush1.msra.mxu0 %v2162
  %2197 = vmatprep.subr.mxu0 0.0
  %2198 = vmatpush1.msra.mxu0 %v2161
  %2199 = vmatprep.subr.mxu0 0.0
  %2200 = vmatpush1.msra.mxu0 %v2160
  %2201 = vmatprep.subr.mxu0 0.0
  %2202 = vmatpush2.msra.mxu0 0.0
  %2203 = vmatprep.subr.mxu0 0.0
  %2204 = vmatpush2.msra.mxu0 0.0
  %2205 = vmatprep.subr.mxu0 0.0
  %2206 = vmatpush2.msra.mxu0 0.0
  %2207 = vmatprep.subr.mxu0 0.0
  %2208 = vmatpush2.msra.mxu0 0.0
  %2209 = vmatprep.subr.mxu0 0.0
  %2210 = vmatpush2.msra.mxu0 0.0
  %2211 = vmatprep.subr.mxu0 0.0
  %2212 = vmatpush2.msra.mxu0 0.0
  %2213 = vmatprep.subr.mxu0 0.0
  %2214 = vmatpush2.msra.mxu0 0.0
  %2215 = vmatprep.subr.mxu0 0.0
  %2216 = vmatpush2.msra.mxu0 0.0
  %2217 = vmatprep.subr.mxu0 0.0
  %2218 = vmatpush2.msra.mxu0 0.0
  %2219 = vmatprep.subr.mxu0 0.0
  %2220 = vmatpush2.msra.mxu0 0.0
  %2221 = vmatprep.subr.mxu0 0.0
  %2222 = vmatpush2.msra.mxu0 0.0
  %2223 = vmatprep.subr.mxu0 0.0
  %2224 = vmatpush2.msra.mxu0 0.0
  %2225 = vmatprep.subr.mxu0 0.0
  %2226 = vmatpush2.msra.mxu0 0.0
  %2227 = vmatprep.subr.mxu0 0.0
  %2228 = vmatpush2.msra.mxu0 0.0
  %2229 = vmatprep.subr.mxu0 0.0
  %2230 = vmatpush2.msra.mxu0 0.0
  %2231 = vmatprep.subr.mxu0 0.0
  %2232 = vmatpush2.msra.mxu0 0.0
  %2233 = vmatprep.mubr.f32.mxu0 0.0
  %2234 = vmatmul.mubr.f32.gmra.mxu0 %v2167
  %v2235 = vpop.f32.mrf.mxu0
  %v2236 = vadd.f32 0.0, %v2235
  %v2237 = vpop.f32.mrf.mxu0
  %2238 = vdwg.mxu0
  %v2239 = vadd.f32 %v2063, %v2236
  %v2240 = vld [vmem:[#allocation2 + $0x30] sm:$0xff]
  %2241 = vmatprep.subr.mxu0 0.0
  %2242 = vmatpush1.msra.mxu0 0.0
  %2243 = vmatprep.subr.mxu0 0.0
  %2244 = vmatpush1.msra.mxu0 0.0
  %2245 = vmatprep.subr.mxu0 0.0
  %2246 = vmatpush1.msra.mxu0 0.0
  %2247 = vmatprep.subr.mxu0 0.0
  %2248 = vmatpush1.msra.mxu0 0.0
  %2249 = vmatprep.subr.mxu0 0.0
  %2250 = vmatpush1.msra.mxu0 0.0
  %2251 = vmatprep.subr.mxu0 0.0
  %2252 = vmatpush1.msra.mxu0 0.0
  %2253 = vmatprep.subr.mxu0 0.0
  %2254 = vmatpush1.msra.mxu0 0.0
  %2255 = vmatprep.subr.mxu0 0.0
  %2256 = vmatpush1.msra.mxu0 0.0
  %2257 = vmatprep.subr.mxu0 0.0
  %2258 = vmatpush1.msra.mxu0 0.0
  %2259 = vmatprep.subr.mxu0 0.0
  %2260 = vmatpush1.msra.mxu0 0.0
  %2261 = vmatprep.subr.mxu0 0.0
  %2262 = vmatpush1.msra.mxu0 0.0
  %2263 = vmatprep.subr.mxu0 0.0
  %2264 = vmatpush1.msra.mxu0 0.0
  %2265 = vmatprep.subr.mxu0 0.0
  %2266 = vmatpush1.msra.mxu0 %v1031
  %2267 = vmatprep.subr.mxu0 0.0
  %2268 = vmatpush1.msra.mxu0 %v1030
  %2269 = vmatprep.subr.mxu0 0.0
  %2270 = vmatpush1.msra.mxu0 %v1029
  %2271 = vmatprep.subr.mxu0 0.0
  %2272 = vmatpush1.msra.mxu0 %v1028
  %2273 = vmatprep.subr.mxu0 0.0
  %2274 = vmatpush2.msra.mxu0 0.0
  %2275 = vmatprep.subr.mxu0 0.0
  %2276 = vmatpush2.msra.mxu0 0.0
  %2277 = vmatprep.subr.mxu0 0.0
  %2278 = vmatpush2.msra.mxu0 0.0
  %2279 = vmatprep.subr.mxu0 0.0
  %2280 = vmatpush2.msra.mxu0 0.0
  %2281 = vmatprep.subr.mxu0 0.0
  %2282 = vmatpush2.msra.mxu0 0.0
  %2283 = vmatprep.subr.mxu0 0.0
  %2284 = vmatpush2.msra.mxu0 0.0
  %2285 = vmatprep.subr.mxu0 0.0
  %2286 = vmatpush2.msra.mxu0 0.0
  %2287 = vmatprep.subr.mxu0 0.0
  %2288 = vmatpush2.msra.mxu0 0.0
  %2289 = vmatprep.subr.mxu0 0.0
  %2290 = vmatpush2.msra.mxu0 0.0
  %2291 = vmatprep.subr.mxu0 0.0
  %2292 = vmatpush2.msra.mxu0 0.0
  %2293 = vmatprep.subr.mxu0 0.0
  %2294 = vmatpush2.msra.mxu0 0.0
  %2295 = vmatprep.subr.mxu0 0.0
  %2296 = vmatpush2.msra.mxu0 0.0
  %2297 = vmatprep.subr.mxu0 0.0
  %2298 = vmatpush2.msra.mxu0 0.0
  %2299 = vmatprep.subr.mxu0 0.0
  %2300 = vmatpush2.msra.mxu0 0.0
  %2301 = vmatprep.subr.mxu0 0.0
  %2302 = vmatpush2.msra.mxu0 0.0
  %2303 = vmatprep.subr.mxu0 0.0
  %2304 = vmatpush2.msra.mxu0 0.0
  %2305 = vmatprep.mubr.f32.mxu0 0.0
  %2306 = vmatmul.mubr.f32.gmra.mxu0 %v2167
  %v2307 = vpop.f32.mrf.mxu0
  %v2308 = vadd.f32 0.0, %v2307
  %v2309 = vpop.f32.mrf.mxu0
  %2310 = vdwg.mxu0
  %v2311 = vadd.f32 %v2240, %v2308
  %v2312 = vxor.u32 %v2311, 2147483648
  %v2313 = vmul.f32 %v2312, 1.442695
  %v2314 = vpow.pop %v2313
  %v2315 = vadd.f32 %v2314, 1.0
  %v2316 = vrcp.pop %v2315
  %v2317 = vmul.f32 1.0, %v2316
  %v2318 = vtanh.pop %v2311
  %v2319 = vmul.f32 %v2317, %v2153
  %2321 = vrot.lane.b32.xlu0 %v2318, 32
  %v2322 = vpop.permute.xlu0 %2321
  %v2324 = vmul.f32 %v2317, %v2322
  %2326 = vrot.lane.b32.xlu0 %v2324, 32
  %v2327 = vpop.permute.xlu0 %2326
  %v2329 = vadd.f32 %v2319, %v2327
  %v2330 = vtanh.pop %v2329
  %2332 = vrot.lane.b32.xlu0 %v2330, 32
  %v2333 = vpop.permute.xlu0 %2332
  %v2335 = vmul.f32 %v2317, %v2333
  %v2336 = vld [vmem:[%s7 + $0xc0] sm:$0xff]
  %v2337 = vld [vmem:[%s7 + $0xc8] sm:$0xff]
  %v2338 = vld [vmem:[%s7 + $0xd0] sm:$0xff]
  %v2339 = vld [vmem:[%s7 + $0xd8] sm:$0xff]
  %2341 = vrot.lane.b32.xlu0 %v2335, 64
  %v2342 = vpop.permute.xlu0 %2341
  %v2343 = vsel %vm199, %v2342, 0
  %2345 = vmatprep.subr.mxu0 0.0
  %2346 = vmatpush1.msra.mxu0 0.0
  %2347 = vmatprep.subr.mxu0 0.0
  %2348 = vmatpush1.msra.mxu0 0.0
  %2349 = vmatprep.subr.mxu0 0.0
  %2350 = vmatpush1.msra.mxu0 0.0
  %2351 = vmatprep.subr.mxu0 0.0
  %2352 = vmatpush1.msra.mxu0 0.0
  %2353 = vmatprep.subr.mxu0 0.0
  %2354 = vmatpush1.msra.mxu0 0.0
  %2355 = vmatprep.subr.mxu0 0.0
  %2356 = vmatpush1.msra.mxu0 0.0
  %2357 = vmatprep.subr.mxu0 0.0
  %2358 = vmatpush1.msra.mxu0 0.0
  %2359 = vmatprep.subr.mxu0 0.0
  %2360 = vmatpush1.msra.mxu0 0.0
  %2361 = vmatprep.subr.mxu0 0.0
  %2362 = vmatpush1.msra.mxu0 0.0
  %2363 = vmatprep.subr.mxu0 0.0
  %2364 = vmatpush1.msra.mxu0 0.0
  %2365 = vmatprep.subr.mxu0 0.0
  %2366 = vmatpush1.msra.mxu0 0.0
  %2367 = vmatprep.subr.mxu0 0.0
  %2368 = vmatpush1.msra.mxu0 0.0
  %2369 = vmatprep.subr.mxu0 0.0
  %2370 = vmatpush1.msra.mxu0 %v2339
  %2371 = vmatprep.subr.mxu0 0.0
  %2372 = vmatpush1.msra.mxu0 %v2338
  %2373 = vmatprep.subr.mxu0 0.0
  %2374 = vmatpush1.msra.mxu0 %v2337
  %2375 = vmatprep.subr.mxu0 0.0
  %2376 = vmatpush1.msra.mxu0 %v2336
  %2377 = vmatprep.subr.mxu0 0.0
  %2378 = vmatpush2.msra.mxu0 0.0
  %2379 = vmatprep.subr.mxu0 0.0
  %2380 = vmatpush2.msra.mxu0 0.0
  %2381 = vmatprep.subr.mxu0 0.0
  %2382 = vmatpush2.msra.mxu0 0.0
  %2383 = vmatprep.subr.mxu0 0.0
  %2384 = vmatpush2.msra.mxu0 0.0
  %2385 = vmatprep.subr.mxu0 0.0
  %2386 = vmatpush2.msra.mxu0 0.0
  %2387 = vmatprep.subr.mxu0 0.0
  %2388 = vmatpush2.msra.mxu0 0.0
  %2389 = vmatprep.subr.mxu0 0.0
  %2390 = vmatpush2.msra.mxu0 0.0
  %2391 = vmatprep.subr.mxu0 0.0
  %2392 = vmatpush2.msra.mxu0 0.0
  %2393 = vmatprep.subr.mxu0 0.0
  %2394 = vmatpush2.msra.mxu0 0.0
  %2395 = vmatprep.subr.mxu0 0.0
  %2396 = vmatpush2.msra.mxu0 0.0
  %2397 = vmatprep.subr.mxu0 0.0
  %2398 = vmatpush2.msra.mxu0 0.0
  %2399 = vmatprep.subr.mxu0 0.0
  %2400 = vmatpush2.msra.mxu0 0.0
  %2401 = vmatprep.subr.mxu0 0.0
  %2402 = vmatpush2.msra.mxu0 0.0
  %2403 = vmatprep.subr.mxu0 0.0
  %2404 = vmatpush2.msra.mxu0 0.0
  %2405 = vmatprep.subr.mxu0 0.0
  %2406 = vmatpush2.msra.mxu0 0.0
  %2407 = vmatprep.subr.mxu0 0.0
  %2408 = vmatpush2.msra.mxu0 0.0
  %2409 = vmatprep.mubr.f32.mxu0 0.0
  %2410 = vmatmul.mubr.f32.gmra.mxu0 %v2343
  %v2411 = vpop.f32.mrf.mxu0
  %v2412 = vadd.f32 0.0, %v2411
  %v2413 = vpop.f32.mrf.mxu0
  %2414 = vdwg.mxu0
  %v2415 = vadd.f32 %v2239, %v2412
  %v2416 = vld [vmem:[#allocation2 + $0x38] sm:$0xff]
  %2417 = vmatprep.subr.mxu0 0.0
  %2418 = vmatpush1.msra.mxu0 0.0
  %2419 = vmatprep.subr.mxu0 0.0
  %2420 = vmatpush1.msra.mxu0 0.0
  %2421 = vmatprep.subr.mxu0 0.0
  %2422 = vmatpush1.msra.mxu0 0.0
  %2423 = vmatprep.subr.mxu0 0.0
  %2424 = vmatpush1.msra.mxu0 0.0
  %2425 = vmatprep.subr.mxu0 0.0
  %2426 = vmatpush1.msra.mxu0 0.0
  %2427 = vmatprep.subr.mxu0 0.0
  %2428 = vmatpush1.msra.mxu0 0.0
  %2429 = vmatprep.subr.mxu0 0.0
  %2430 = vmatpush1.msra.mxu0 0.0
  %2431 = vmatprep.subr.mxu0 0.0
  %2432 = vmatpush1.msra.mxu0 0.0
  %2433 = vmatprep.subr.mxu0 0.0
  %2434 = vmatpush1.msra.mxu0 0.0
  %2435 = vmatprep.subr.mxu0 0.0
  %2436 = vmatpush1.msra.mxu0 0.0
  %2437 = vmatprep.subr.mxu0 0.0
  %2438 = vmatpush1.msra.mxu0 0.0
  %2439 = vmatprep.subr.mxu0 0.0
  %2440 = vmatpush1.msra.mxu0 0.0
  %2441 = vmatprep.subr.mxu0 0.0
  %2442 = vmatpush1.msra.mxu0 %v1031
  %2443 = vmatprep.subr.mxu0 0.0
  %2444 = vmatpush1.msra.mxu0 %v1030
  %2445 = vmatprep.subr.mxu0 0.0
  %2446 = vmatpush1.msra.mxu0 %v1029
  %2447 = vmatprep.subr.mxu0 0.0
  %2448 = vmatpush1.msra.mxu0 %v1028
  %2449 = vmatprep.subr.mxu0 0.0
  %2450 = vmatpush2.msra.mxu0 0.0
  %2451 = vmatprep.subr.mxu0 0.0
  %2452 = vmatpush2.msra.mxu0 0.0
  %2453 = vmatprep.subr.mxu0 0.0
  %2454 = vmatpush2.msra.mxu0 0.0
  %2455 = vmatprep.subr.mxu0 0.0
  %2456 = vmatpush2.msra.mxu0 0.0
  %2457 = vmatprep.subr.mxu0 0.0
  %2458 = vmatpush2.msra.mxu0 0.0
  %2459 = vmatprep.subr.mxu0 0.0
  %2460 = vmatpush2.msra.mxu0 0.0
  %2461 = vmatprep.subr.mxu0 0.0
  %2462 = vmatpush2.msra.mxu0 0.0
  %2463 = vmatprep.subr.mxu0 0.0
  %2464 = vmatpush2.msra.mxu0 0.0
  %2465 = vmatprep.subr.mxu0 0.0
  %2466 = vmatpush2.msra.mxu0 0.0
  %2467 = vmatprep.subr.mxu0 0.0
  %2468 = vmatpush2.msra.mxu0 0.0
  %2469 = vmatprep.subr.mxu0 0.0
  %2470 = vmatpush2.msra.mxu0 0.0
  %2471 = vmatprep.subr.mxu0 0.0
  %2472 = vmatpush2.msra.mxu0 0.0
  %2473 = vmatprep.subr.mxu0 0.0
  %2474 = vmatpush2.msra.mxu0 0.0
  %2475 = vmatprep.subr.mxu0 0.0
  %2476 = vmatpush2.msra.mxu0 0.0
  %2477 = vmatprep.subr.mxu0 0.0
  %2478 = vmatpush2.msra.mxu0 0.0
  %2479 = vmatprep.subr.mxu0 0.0
  %2480 = vmatpush2.msra.mxu0 0.0
  %2481 = vmatprep.mubr.f32.mxu0 0.0
  %2482 = vmatmul.mubr.f32.gmra.mxu0 %v2343
  %v2483 = vpop.f32.mrf.mxu0
  %v2484 = vadd.f32 0.0, %v2483
  %v2485 = vpop.f32.mrf.mxu0
  %2486 = vdwg.mxu0
  %v2487 = vadd.f32 %v2416, %v2484
  %v2488 = vxor.u32 %v2487, 2147483648
  %v2489 = vmul.f32 %v2488, 1.442695
  %v2490 = vpow.pop %v2489
  %v2491 = vadd.f32 %v2490, 1.0
  %v2492 = vrcp.pop %v2491
  %v2493 = vmul.f32 1.0, %v2492
  %v2494 = vtanh.pop %v2487
  %v2495 = vmul.f32 %v2493, %v2329
  %2497 = vrot.lane.b32.xlu0 %v2494, 32
  %v2498 = vpop.permute.xlu0 %2497
  %v2500 = vmul.f32 %v2493, %v2498
  %2502 = vrot.lane.b32.xlu0 %v2500, 32
  %v2503 = vpop.permute.xlu0 %2502
  %v2505 = vadd.f32 %v2495, %v2503
  %v2506 = vtanh.pop %v2505
  %2508 = vrot.lane.b32.xlu0 %v2506, 32
  %v2509 = vpop.permute.xlu0 %2508
  %v2511 = vmul.f32 %v2493, %v2509
  %v2512 = vld [vmem:[%s7 + $0xe0] sm:$0xff]
  %v2513 = vld [vmem:[%s7 + $0xe8] sm:$0xff]
  %v2514 = vld [vmem:[%s7 + $0xf0] sm:$0xff]
  %v2515 = vld [vmem:[%s7 + $0xf8] sm:$0xff]
  %2517 = vrot.lane.b32.xlu0 %v2511, 64
  %v2518 = vpop.permute.xlu0 %2517
  %v2519 = vsel %vm199, %v2518, 0
  %2521 = vmatprep.subr.mxu0 0.0
  %2522 = vmatpush1.msra.mxu0 0.0
  %2523 = vmatprep.subr.mxu0 0.0
  %2524 = vmatpush1.msra.mxu0 0.0
  %2525 = vmatprep.subr.mxu0 0.0
  %2526 = vmatpush1.msra.mxu0 0.0
  %2527 = vmatprep.subr.mxu0 0.0
  %2528 = vmatpush1.msra.mxu0 0.0
  %2529 = vmatprep.subr.mxu0 0.0
  %2530 = vmatpush1.msra.mxu0 0.0
  %2531 = vmatprep.subr.mxu0 0.0
  %2532 = vmatpush1.msra.mxu0 0.0
  %2533 = vmatprep.subr.mxu0 0.0
  %2534 = vmatpush1.msra.mxu0 0.0
  %2535 = vmatprep.subr.mxu0 0.0
  %2536 = vmatpush1.msra.mxu0 0.0
  %2537 = vmatprep.subr.mxu0 0.0
  %2538 = vmatpush1.msra.mxu0 0.0
  %2539 = vmatprep.subr.mxu0 0.0
  %2540 = vmatpush1.msra.mxu0 0.0
  %2541 = vmatprep.subr.mxu0 0.0
  %2542 = vmatpush1.msra.mxu0 0.0
  %2543 = vmatprep.subr.mxu0 0.0
  %2544 = vmatpush1.msra.mxu0 0.0
  %2545 = vmatprep.subr.mxu0 0.0
  %2546 = vmatpush1.msra.mxu0 %v2515
  %2547 = vmatprep.subr.mxu0 0.0
  %2548 = vmatpush1.msra.mxu0 %v2514
  %2549 = vmatprep.subr.mxu0 0.0
  %2550 = vmatpush1.msra.mxu0 %v2513
  %2551 = vmatprep.subr.mxu0 0.0
  %2552 = vmatpush1.msra.mxu0 %v2512
  %2553 = vmatprep.subr.mxu0 0.0
  %2554 = vmatpush2.msra.mxu0 0.0
  %2555 = vmatprep.subr.mxu0 0.0
  %2556 = vmatpush2.msra.mxu0 0.0
  %2557 = vmatprep.subr.mxu0 0.0
  %2558 = vmatpush2.msra.mxu0 0.0
  %2559 = vmatprep.subr.mxu0 0.0
  %2560 = vmatpush2.msra.mxu0 0.0
  %2561 = vmatprep.subr.mxu0 0.0
  %2562 = vmatpush2.msra.mxu0 0.0
  %2563 = vmatprep.subr.mxu0 0.0
  %2564 = vmatpush2.msra.mxu0 0.0
  %2565 = vmatprep.subr.mxu0 0.0
  %2566 = vmatpush2.msra.mxu0 0.0
  %2567 = vmatprep.subr.mxu0 0.0
  %2568 = vmatpush2.msra.mxu0 0.0
  %2569 = vmatprep.subr.mxu0 0.0
  %2570 = vmatpush2.msra.mxu0 0.0
  %2571 = vmatprep.subr.mxu0 0.0
  %2572 = vmatpush2.msra.mxu0 0.0
  %2573 = vmatprep.subr.mxu0 0.0
  %2574 = vmatpush2.msra.mxu0 0.0
  %2575 = vmatprep.subr.mxu0 0.0
  %2576 = vmatpush2.msra.mxu0 0.0
  %2577 = vmatprep.subr.mxu0 0.0
  %2578 = vmatpush2.msra.mxu0 0.0
  %2579 = vmatprep.subr.mxu0 0.0
  %2580 = vmatpush2.msra.mxu0 0.0
  %2581 = vmatprep.subr.mxu0 0.0
  %2582 = vmatpush2.msra.mxu0 0.0
  %2583 = vmatprep.subr.mxu0 0.0
  %2584 = vmatpush2.msra.mxu0 0.0
  %2585 = vmatprep.mubr.f32.mxu0 0.0
  %2586 = vmatmul.mubr.f32.gmra.mxu0 %v2519
  %v2587 = vpop.f32.mrf.mxu0
  %v2588 = vadd.f32 0.0, %v2587
  %v2589 = vpop.f32.mrf.mxu0
  %2590 = vdwg.mxu0
  %v2591 = vadd.f32 %v2415, %v2588
  %vm2592 = vcmask 31744
  %2593 = vst.msk [vmem:[%s9] sm:$0xff] %vm2592, %v2591
  // Predicated region
  $region38: #{rnn_forward.1} parent=0 // pred_check
    _
  $region39: #{rnn_forward.1} parent=0 // pred_check_branch
    %2595 = sbr.rel (0) target = $region41
  $region40: #{rnn_forward.1} parent=0 // pred_region
    _
  $region41: #{rnn_forward.1} parent=0 // pred_fallthru
    _
  // Predicated region
  $region42: #{rnn_forward.1} parent=0 // pred_check
    _
  $region43: #{rnn_forward.1} parent=0 // pred_check_branch
    %2597 = sbr.rel (0) target = $region45
  $region44: #{rnn_forward.1} parent=0 // pred_region
    _
  $region45: #{rnn_forward.1} parent=0 // pred_fallthru
    _

</llo_original>
